<compile_context>
chip_gen: v7x
topology: tpu7x:2x2x1
jax: 0.10.0
libtpu: 0.0.40
codegen_flags: <defaults>
</compile_context>

<pallas_src>
import jax
import jax.numpy as jnp
from jax.experimental import pallas as pl
from jax.experimental.pallas import tpu as pltpu


# ----------------------------------------------------------------------------
# Generation-aware helpers (all guarded so detection can never break the run).
# ----------------------------------------------------------------------------
def _device_kind():
    try:
        return jax.devices()[0].device_kind.lower()
    except Exception:
        return ""


def _has_multiple_tensorcores(kind):
    # v4 / v5p / v7x expose two TensorCores per chip ("megacore"); keep >=2
    # "parallel" grid steps there so both cores get work.  Unknown -> assume
    # multi-core (an extra ~0.35us grid step is cheaper than idling a core).
    if not kind:
        return True
    return any(tag in kind for tag in ("v7", "v5p", "v4"))


def _bf16_softmax_ok(kind):
    # v5e (and older) VPU/EUP have no native bf16 path; keep softmax f32 there.
    return any(tag in kind for tag in ("v6", "v7"))


def _vmem_capacity_bytes():
    try:
        return int(pltpu.get_tpu_info().vmem_capacity_bytes)
    except Exception:
        return 64 << 20          # v7x floor — safe on every generation


def _pick_batch_block(B_, N, multi_core):
    """Fold batch into the block, bounded by softmax working-set / unroll size."""
    if B_ <= 1:
        return max(B_, 1)
    # One head's (N, N) f32 score tile is live per unrolled batch element; keep
    # the unrolled live set well under the vreg file + VMEM headroom.
    cap = max(1, (512 * 1024) // (N * N * 4))
    cap = min(cap, 8, B_)
    if multi_core:
        cap = min(cap, max(B_ // 2, 1))      # keep >=2 grid steps for 2 TCs
    for d in range(cap, 0, -1):
        if B_ % d == 0:
            return d
    return 1


def _vmem_limit_bytes(batch_block, N, C, num_heads):
    blk = batch_block * N * C * 4                        # one x / out block (f32)
    params = (3 * C * C + C * C) * 2 + (3 * C + C) * 4   # bf16 weights + f32 biases
    bias = num_heads * N * N * 2                         # bf16 rel-pos bias
    work = (batch_block * N * 3 * C * 6                  # qkv f32 + bf16 copies
            + 4 * N * N * 4                              # score / prob tiles
            + num_heads * N * N * 4)                     # hoisted f32 bias
    est = 4 * blk + 2 * (params + bias) + work           # double-buffered blocks/operands
    cap = (3 * _vmem_capacity_bytes()) // 4
    return int(min(cap, max(2 * est, 32 << 20)))


# ----------------------------------------------------------------------------
# Pallas kernel: fused multi-head attention for a (batch_block, N, C) block.
# ----------------------------------------------------------------------------
def _make_attention_kernel(num_heads, use_bf16_softmax):
    nh = num_heads

    def kernel(x_ref, wqkv_ref, bqkv_ref, bias_ref, pw_ref, pb_ref, o_ref):
        Bt, N, C = x_ref.shape
        hd = C // nh

        # ---- batch-invariant operands: read (and upcast) exactly once ----
        wqkv = wqkv_ref[...]                        # (C, 3C)  bf16, scale folded
        bqkv = bqkv_ref[...]                        # (1, 3C)  f32
        bias = bias_ref[...].astype(jnp.float32)    # (nh, N, N), upcast once
        pw = pw_ref[...]                            # (C, C)   bf16
        pb = pb_ref[...]                            # (1, C)   f32

        # ---- fused QKV projection: one wide MXU matmul for the whole block ----
        x2 = x_ref[...].reshape(Bt * N, C).astype(jnp.bfloat16)
        qkv = jnp.dot(x2, wqkv, preferred_element_type=jnp.float32) + bqkv
        qkv = qkv.astype(jnp.bfloat16)              # (Bt*N, 3C)

        # ---- per (batch, head) scores / softmax / PV (bounded static unroll) ----
        o_rows = []
        for b in range(Bt):
            r0 = b * N
            o_heads = []
            for h in range(nh):
                qh = qkv[r0:r0 + N, h * hd:(h + 1) * hd]                  # (N, hd)
                kh = qkv[r0:r0 + N, C + h * hd:C + (h + 1) * hd]
                vh = qkv[r0:r0 + N, 2 * C + h * hd:2 * C + (h + 1) * hd]

                s = jnp.einsum("nd,md->nm", qh, kh,
                               preferred_element_type=jnp.float32) + bias[h]
                s = s - jnp.max(s, axis=-1, keepdims=True)
                if use_bf16_softmax:
                    p = jnp.exp(s.astype(jnp.bfloat16))        # bf16 EUP (v6e/v7x)
                    l = jnp.sum(p, axis=-1, keepdims=True, dtype=jnp.float32)
                else:
                    pf = jnp.exp(s)                            # f32 path (v5e)
                    l = jnp.sum(pf, axis=-1, keepdims=True)
                    p = pf.astype(jnp.bfloat16)

                oh = jnp.einsum("nm,md->nd", p, vh,
                                preferred_element_type=jnp.float32)
                # Normalize the (N, hd) result, not the (N, N) probs; approx
                # reciprocal goes to the EUP slot.
                o_heads.append(oh * pl.reciprocal(l, approx=True))

            # Lane-concat over heads == reference's transpose(1,2).reshape(N, C).
            o_rows.append(jnp.concatenate(o_heads, axis=-1).astype(jnp.bfloat16))

        # ---- fused output projection: contraction over heads*head_dim = C ----
        o_nc = o_rows[0] if Bt == 1 else jnp.concatenate(o_rows, axis=0)  # (Bt*N, C)
        y = jnp.dot(o_nc, pw, preferred_element_type=jnp.float32) + pb
        # TODO(synk): with C < 128 the final store is lane-masked; a lane-dense
        # (Bt, N*C) out layout would need an in-kernel relayout, so keep (Bt, N, C).
        o_ref[...] = y.reshape(Bt, N, C).astype(o_ref.dtype)

    return kernel


def pallas_attention(x, qkv_w, qkv_b, rel_pos_bias, proj_w, proj_b,
                     *, num_heads, batch_block=None):
    """x: (B_, N, C); rel_pos_bias: (num_heads, N, N).  Returns (B_, N, C)."""
    B_, N, C = x.shape
    nh = num_heads
    hd = C // nh
    scale = hd ** (-0.5)

    kind = _device_kind()
    if batch_block is None:
        batch_block = _pick_batch_block(B_, N, _has_multiple_tensorcores(kind))
    assert B_ % batch_block == 0
    n_blocks = B_ // batch_block

    # Fused qkv weight/bias; qk scale folded into the q third (columns [0:C]).
    wqkv = jnp.concatenate([qkv_w[:, :C] * scale, qkv_w[:, C:]], axis=1)
    wqkv = wqkv.astype(jnp.bfloat16)                             # (C, 3C)
    bqkv = jnp.concatenate([qkv_b[:C] * scale, qkv_b[C:]])
    bqkv = bqkv.reshape(1, 3 * C).astype(jnp.float32)            # (1, 3C)
    pw = proj_w.astype(jnp.bfloat16)                             # (C, C)
    pb = proj_b.reshape(1, C).astype(jnp.float32)                # (1, C)
    bias = rel_pos_bias.astype(jnp.bfloat16)                     # (nh, N, N) — half DMA/VMEM
    # TODO(synk): for very large windows (N >= 512) tile the kv axis
    # (flash-style) instead of materializing (nh, N, N) scores per head.

    kernel = _make_attention_kernel(nh, _bf16_softmax_ok(kind))

    fixed2 = lambda b: (0, 0)
    grid_spec = pltpu.PrefetchScalarGridSpec(
        num_scalar_prefetch=0,
        grid=(n_blocks,),
        in_specs=[
            pl.BlockSpec((batch_block, N, C), lambda b: (b, 0, 0)),   # x
            pl.BlockSpec((C, 3 * C), fixed2),                         # fused qkv weight
            pl.BlockSpec((1, 3 * C), fixed2),                         # fused qkv bias
            pl.BlockSpec((nh, N, N), lambda b: (0, 0, 0)),            # rel-pos bias (bf16)
            pl.BlockSpec((C, C), fixed2),                             # proj weight
            pl.BlockSpec((1, C), fixed2),                             # proj bias
        ],
        out_specs=pl.BlockSpec((batch_block, N, C), lambda b: (b, 0, 0)),
    )

    return pl.pallas_call(
        kernel,
        out_shape=jax.ShapeDtypeStruct((B_, N, C), x.dtype),
        grid_spec=grid_spec,
        compiler_params=pltpu.CompilerParams(
            dimension_semantics=("parallel",),
            vmem_limit_bytes=_vmem_limit_bytes(batch_block, N, C, nh)),
    )(x, wqkv, bqkv, bias, pw, pb)


# ----------------------------------------------------------------------------
# DynamicPosBias (tiny MLP) + relative position index — plain JAX glue.
# ----------------------------------------------------------------------------
def _layernorm(x, gamma, beta, eps=1e-5):
    mu = x.mean(-1, keepdims=True)
    var = ((x - mu) ** 2).mean(-1, keepdims=True)
    return (x - mu) / jnp.sqrt(var + eps) * gamma + beta


def dynamic_pos_bias(params, biases):
    x = biases @ params["proj_w"] + params["proj_b"]
    for blk in ("pos1", "pos2", "pos3"):
        g, b, w, lb = params[blk]
        x = _layernorm(x, g, b)
        x = jnp.maximum(x, 0.0)
        x = x @ w + lb
    return x  # (M, num_heads)


def relative_position_bias(pos_params, H, W, num_heads):
    ph = jnp.arange(1 - H, H, dtype=jnp.float32)
    pw = jnp.arange(1 - W, W, dtype=jnp.float32)
    bh, bw = jnp.meshgrid(ph, pw, indexing="ij")
    biases = jnp.stack([bh.reshape(-1), bw.reshape(-1)], axis=1)   # (M, 2)

    ch = jnp.arange(H)
    cw = jnp.arange(W)
    gh, gw = jnp.meshgrid(ch, cw, indexing="ij")
    coords = jnp.stack([gh.reshape(-1), gw.reshape(-1)], axis=0)   # (2, N)
    rel = coords[:, :, None] - coords[:, None, :]                  # (2, N, N)
    rel = rel.transpose(1, 2, 0)
    rel = rel.at[:, :, 0].add(H - 1)
    rel = rel.at[:, :, 1].add(W - 1)
    rel = rel.at[:, :, 0].multiply(2 * W - 1)
    rel_index = rel.sum(-1)                                        # (N, N)

    pos = dynamic_pos_bias(pos_params, biases)                     # (M, num_heads)
    N = H * W
    rpb = jnp.take(pos, rel_index.reshape(-1), axis=0).reshape(N, N, num_heads)
    return rpb.transpose(2, 0, 1)                                  # (heads, N, N)


# ----------------------------------------------------------------------------
# Deterministic parameter init + pure-JAX reference for verification.
# ----------------------------------------------------------------------------
def init_params(key, dim, num_heads):
    pos_in_dim = dim // 4          # DynamicPosBias(dim // 4, num_heads)
    pos_dim = pos_in_dim // 4
    ks = jax.random.split(key, 12)
    s = 0.05

    def lin(k, fan_in, fan_out):
        kw, kb = jax.random.split(k)
        return (s * jax.random.normal(kw, (fan_in, fan_out), jnp.float32),
                s * jax.random.normal(kb, (fan_out,), jnp.float32))

    qkv_w, qkv_b = lin(ks[0], dim, 3 * dim)
    proj_w, proj_b = lin(ks[1], dim, dim)

    pj_w, pj_b = lin(ks[2], 2, pos_dim)
    p1_w, p1_b = lin(ks[3], pos_dim, pos_dim)
    p2_w, p2_b = lin(ks[4], pos_dim, pos_dim)
    p3_w, p3_b = lin(ks[5], pos_dim, num_heads)

    def ln_params(k, d):
        kg, kb = jax.random.split(k)
        return (1.0 + s * jax.random.normal(kg, (d,), jnp.float32),
                s * jax.random.normal(kb, (d,), jnp.float32))

    pos_params = {
        "proj_w": pj_w, "proj_b": pj_b,
        "pos1": (*ln_params(ks[6], pos_dim), p1_w, p1_b),
        "pos2": (*ln_params(ks[7], pos_dim), p2_w, p2_b),
        "pos3": (*ln_params(ks[8], pos_dim), p3_w, p3_b),
    }
    return {"qkv_w": qkv_w, "qkv_b": qkv_b,
            "proj_w": proj_w, "proj_b": proj_b,
            "pos": pos_params}


def reference_attention(params, x, H, W, num_heads):
    """Pure-JAX (f32) mirror of the PyTorch forward (mask=None, dropout=0)."""
    B_, N, C = x.shape
    head_dim = C // num_heads
    scale = head_dim ** (-0.5)

    qkv = x @ params["qkv_w"] + params["qkv_b"]                     # (B_, N, 3C)
    qkv = qkv.reshape(B_, N, 3, num_heads, head_dim).transpose(2, 0, 3, 1, 4)
    q, k, v = qkv[0], qkv[1], qkv[2]
    q = q * scale
    attn = jnp.einsum("bhnd,bhmd->bhnm", q, k)
    attn = attn + relative_position_bias(params["pos"], H, W, num_heads)[None]
    attn = jax.nn.softmax(attn, axis=-1)
    out = jnp.einsum("bhnm,bhmd->bhnd", attn, v)
    out = out.transpose(0, 2, 1, 3).reshape(B_, N, C)
    return out @ params["proj_w"] + params["proj_b"]


# ----------------------------------------------------------------------------
if __name__ == "__main__":
    # Shapes consistent with the module: num_groups*B = 4, H = W = 8 -> N = 64,
    # dim = 64, 4 heads (head_dim = 16).  batch_block is picked automatically:
    # one grid step on single-core parts (v5e/v6e), two on dual-core parts.
    B_, H, W = 4, 8, 8
    dim, num_heads = 64, 4
    N = H * W

    key = jax.random.PRNGKey(0)
    kx, kp = jax.random.split(key)
    x = jax.random.normal(kx, (B_, N, dim), jnp.float32)
    params = init_params(kp, dim, num_heads)

    # Dynamic position bias table (glue: tiny MLP + gather).
    rpb = relative_position_bias(params["pos"], H, W, num_heads)    # (heads, N, N)

    out = pallas_attention(x, params["qkv_w"], params["qkv_b"], rpb,
                           params["proj_w"], params["proj_b"],
                           num_heads=num_heads)
    out = jax.block_until_ready(out)

    ref = jax.block_until_ready(reference_attention(params, x, H, W, num_heads))
    assert out.shape == (B_, N, dim)
    err = float(jnp.max(jnp.abs(out - ref)))
    # bf16 matmul operands / bf16 rel-pos bias with f32 accumulation ->
    # loosened tolerance vs the f32 reference.
    assert err < 2e-2, f"mismatch vs. reference: max abs err {err}"

    print("KERNEL_OK")
</pallas_src>

<mosaic_0001>
module attributes {stable_mosaic.version = 11 : i64} {
  func.func @kernel(%arg0: i32, %arg1: memref<4x64x64xf32, #tpu.memory_space<vmem>>, %arg2: memref<64x192xbf16, #tpu.memory_space<vmem>>, %arg3: memref<1x192xf32, #tpu.memory_space<vmem>>, %arg4: memref<4x64x64xbf16, #tpu.memory_space<vmem>>, %arg5: memref<64x64xbf16, #tpu.memory_space<vmem>>, %arg6: memref<1x64xf32, #tpu.memory_space<vmem>>, %arg7: memref<4x64x64xf32, #tpu.memory_space<vmem>>) attributes {dimension_semantics = [#tpu.dimension_semantics<parallel>], iteration_bounds = array<i64: 1>, scalar_prefetch = 0 : i64, scratch_operands = 0 : i64, tpu.core_type = #tpu.core_type<tc>, window_params = [{transform_indices = @transform_0, window_bounds = array<i64: 4, 64, 64>}, {pipeline_mode = #tpu.pipeline_mode<synchronous>, transform_indices = @transform_1, window_bounds = array<i64: 64, 192>}, {pipeline_mode = #tpu.pipeline_mode<synchronous>, transform_indices = @transform_2, window_bounds = array<i64: 1, 192>}, {pipeline_mode = #tpu.pipeline_mode<synchronous>, transform_indices = @transform_3, window_bounds = array<i64: 4, 64, 64>}, {pipeline_mode = #tpu.pipeline_mode<synchronous>, transform_indices = @transform_4, window_bounds = array<i64: 64, 64>}, {pipeline_mode = #tpu.pipeline_mode<synchronous>, transform_indices = @transform_5, window_bounds = array<i64: 1, 64>}, {transform_indices = @transform_6, window_bounds = array<i64: 4, 64, 64>}]} {
    %c0 = arith.constant 0 : index
    %c0_0 = arith.constant 0 : index
    %0 = vector.load %arg2[%c0, %c0_0] : memref<64x192xbf16, #tpu.memory_space<vmem>>, vector<64x192xbf16>
    %c0_1 = arith.constant 0 : index
    %c0_2 = arith.constant 0 : index
    %1 = vector.load %arg3[%c0_1, %c0_2] : memref<1x192xf32, #tpu.memory_space<vmem>>, vector<1x192xf32>
    %c0_3 = arith.constant 0 : index
    %c0_4 = arith.constant 0 : index
    %c0_5 = arith.constant 0 : index
    %2 = vector.load %arg4[%c0_3, %c0_4, %c0_5] : memref<4x64x64xbf16, #tpu.memory_space<vmem>>, vector<4x64x64xbf16>
    %3 = arith.extf %2 : vector<4x64x64xbf16> to vector<4x64x64xf32>
    %c0_6 = arith.constant 0 : index
    %c0_7 = arith.constant 0 : index
    %4 = vector.load %arg5[%c0_6, %c0_7] : memref<64x64xbf16, #tpu.memory_space<vmem>>, vector<64x64xbf16>
    %c0_8 = arith.constant 0 : index
    %c0_9 = arith.constant 0 : index
    %5 = vector.load %arg6[%c0_8, %c0_9] : memref<1x64xf32, #tpu.memory_space<vmem>>, vector<1x64xf32>
    %c0_10 = arith.constant 0 : index
    %c0_11 = arith.constant 0 : index
    %c0_12 = arith.constant 0 : index
    %6 = vector.load %arg1[%c0_10, %c0_11, %c0_12] : memref<4x64x64xf32, #tpu.memory_space<vmem>>, vector<4x64x64xf32>
    %7 = vector.shape_cast %6 : vector<4x64x64xf32> to vector<256x64xf32>
    %8 = arith.truncf %7 : vector<256x64xf32> to vector<256x64xbf16>
    %cst = arith.constant dense<0.000000e+00> : vector<256x192xf32>
    %9 = tpu.matmul %8, %0, %cst {dimension_numbers = #tpu.dot_dimension_numbers<[1], [0], [0], [1], [0, 0, 1, 1], [], []>} : vector<256x64xbf16>, vector<64x192xbf16>, vector<256x192xf32> -> vector<256x192xf32>
    %10 = vector.broadcast %1 : vector<1x192xf32> to vector<256x192xf32>
    %11 = arith.addf %9, %10 : vector<256x192xf32>
    %12 = arith.truncf %11 : vector<256x192xf32> to vector<256x192xbf16>
    %13 = vector.extract_strided_slice %12 {offsets = [0, 0], sizes = [64, 16], strides = [1, 1]} : vector<256x192xbf16> to vector<64x16xbf16>
    %14 = vector.extract_strided_slice %12 {offsets = [0, 64], sizes = [64, 16], strides = [1, 1]} : vector<256x192xbf16> to vector<64x16xbf16>
    %15 = vector.extract_strided_slice %12 {offsets = [0, 128], sizes = [64, 16], strides = [1, 1]} : vector<256x192xbf16> to vector<64x16xbf16>
    "tpu.trace_start"() <{level = 10 : i32, message = "nd,md->nm"}> : () -> ()
    %cst_13 = arith.constant dense<0.000000e+00> : vector<64x64xf32>
    %16 = tpu.matmul %13, %14, %cst_13 {dimension_numbers = #tpu.dot_dimension_numbers<[1], [1], [0], [0], [0, 0, 1, 0], [], []>} : vector<64x16xbf16>, vector<64x16xbf16>, vector<64x64xf32> -> vector<64x64xf32>
    "tpu.trace_stop"() : () -> ()
    %17 = vector.extract_strided_slice %3 {offsets = [0, 0, 0], sizes = [1, 64, 64], strides = [1, 1, 1]} : vector<4x64x64xf32> to vector<1x64x64xf32>
    %18 = vector.shape_cast %17 : vector<1x64x64xf32> to vector<64x64xf32>
    %19 = arith.addf %16, %18 : vector<64x64xf32>
    %cst_14 = arith.constant dense<0xFF800000> : vector<64xf32>
    %20 = vector.multi_reduction <maximumf>, %19, %cst_14 [1] : vector<64x64xf32> to vector<64xf32>
    %21 = vector.shape_cast %20 : vector<64xf32> to vector<64x1xf32>
    %22 = vector.broadcast %21 : vector<64x1xf32> to vector<64x64xf32>
    %23 = arith.subf %19, %22 : vector<64x64xf32>
    %24 = math.exp %23 : vector<64x64xf32>
    %cst_15 = arith.constant dense<0.000000e+00> : vector<64xf32>
    %25 = vector.multi_reduction <add>, %24, %cst_15 [1] : vector<64x64xf32> to vector<64xf32>
    %26 = vector.shape_cast %25 : vector<64xf32> to vector<64x1xf32>
    %27 = arith.truncf %24 : vector<64x64xf32> to vector<64x64xbf16>
    "tpu.trace_start"() <{level = 10 : i32, message = "nm,md->nd"}> : () -> ()
    %cst_16 = arith.constant dense<0.000000e+00> : vector<64x16xf32>
    %28 = tpu.matmul %27, %15, %cst_16 {dimension_numbers = #tpu.dot_dimension_numbers<[1], [0], [0], [1], [0, 0, 1, 1], [], []>} : vector<64x64xbf16>, vector<64x16xbf16>, vector<64x16xf32> -> vector<64x16xf32>
    "tpu.trace_stop"() : () -> ()
    %29 = tpu.reciprocal %26 {approx = true} : vector<64x1xf32> -> vector<64x1xf32>
    %30 = vector.broadcast %29 : vector<64x1xf32> to vector<64x16xf32>
    %31 = arith.mulf %28, %30 : vector<64x16xf32>
    %32 = vector.extract_strided_slice %12 {offsets = [0, 16], sizes = [64, 16], strides = [1, 1]} : vector<256x192xbf16> to vector<64x16xbf16>
    %33 = vector.extract_strided_slice %12 {offsets = [0, 80], sizes = [64, 16], strides = [1, 1]} : vector<256x192xbf16> to vector<64x16xbf16>
    %34 = vector.extract_strided_slice %12 {offsets = [0, 144], sizes = [64, 16], strides = [1, 1]} : vector<256x192xbf16> to vector<64x16xbf16>
    "tpu.trace_start"() <{level = 10 : i32, message = "nd,md->nm"}> : () -> ()
    %cst_17 = arith.constant dense<0.000000e+00> : vector<64x64xf32>
    %35 = tpu.matmul %32, %33, %cst_17 {dimension_numbers = #tpu.dot_dimension_numbers<[1], [1], [0], [0], [0, 0, 1, 0], [], []>} : vector<64x16xbf16>, vector<64x16xbf16>, vector<64x64xf32> -> vector<64x64xf32>
    "tpu.trace_stop"() : () -> ()
    %36 = vector.extract_strided_slice %3 {offsets = [1, 0, 0], sizes = [1, 64, 64], strides = [1, 1, 1]} : vector<4x64x64xf32> to vector<1x64x64xf32>
    %37 = vector.shape_cast %36 : vector<1x64x64xf32> to vector<64x64xf32>
    %38 = arith.addf %35, %37 : vector<64x64xf32>
    %cst_18 = arith.constant dense<0xFF800000> : vector<64xf32>
    %39 = vector.multi_reduction <maximumf>, %38, %cst_18 [1] : vector<64x64xf32> to vector<64xf32>
    %40 = vector.shape_cast %39 : vector<64xf32> to vector<64x1xf32>
    %41 = vector.broadcast %40 : vector<64x1xf32> to vector<64x64xf32>
    %42 = arith.subf %38, %41 : vector<64x64xf32>
    %43 = math.exp %42 : vector<64x64xf32>
    %cst_19 = arith.constant dense<0.000000e+00> : vector<64xf32>
    %44 = vector.multi_reduction <add>, %43, %cst_19 [1] : vector<64x64xf32> to vector<64xf32>
    %45 = vector.shape_cast %44 : vector<64xf32> to vector<64x1xf32>
    %46 = arith.truncf %43 : vector<64x64xf32> to vector<64x64xbf16>
    "tpu.trace_start"() <{level = 10 : i32, message = "nm,md->nd"}> : () -> ()
    %cst_20 = arith.constant dense<0.000000e+00> : vector<64x16xf32>
    %47 = tpu.matmul %46, %34, %cst_20 {dimension_numbers = #tpu.dot_dimension_numbers<[1], [0], [0], [1], [0, 0, 1, 1], [], []>} : vector<64x64xbf16>, vector<64x16xbf16>, vector<64x16xf32> -> vector<64x16xf32>
    "tpu.trace_stop"() : () -> ()
    %48 = tpu.reciprocal %45 {approx = true} : vector<64x1xf32> -> vector<64x1xf32>
    %49 = vector.broadcast %48 : vector<64x1xf32> to vector<64x16xf32>
    %50 = arith.mulf %47, %49 : vector<64x16xf32>
    %51 = vector.extract_strided_slice %12 {offsets = [0, 32], sizes = [64, 16], strides = [1, 1]} : vector<256x192xbf16> to vector<64x16xbf16>
    %52 = vector.extract_strided_slice %12 {offsets = [0, 96], sizes = [64, 16], strides = [1, 1]} : vector<256x192xbf16> to vector<64x16xbf16>
    %53 = vector.extract_strided_slice %12 {offsets = [0, 160], sizes = [64, 16], strides = [1, 1]} : vector<256x192xbf16> to vector<64x16xbf16>
    "tpu.trace_start"() <{level = 10 : i32, message = "nd,md->nm"}> : () -> ()
    %cst_21 = arith.constant dense<0.000000e+00> : vector<64x64xf32>
    %54 = tpu.matmul %51, %52, %cst_21 {dimension_numbers = #tpu.dot_dimension_numbers<[1], [1], [0], [0], [0, 0, 1, 0], [], []>} : vector<64x16xbf16>, vector<64x16xbf16>, vector<64x64xf32> -> vector<64x64xf32>
    "tpu.trace_stop"() : () -> ()
    %55 = vector.extract_strided_slice %3 {offsets = [2, 0, 0], sizes = [1, 64, 64], strides = [1, 1, 1]} : vector<4x64x64xf32> to vector<1x64x64xf32>
    %56 = vector.shape_cast %55 : vector<1x64x64xf32> to vector<64x64xf32>
    %57 = arith.addf %54, %56 : vector<64x64xf32>
    %cst_22 = arith.constant dense<0xFF800000> : vector<64xf32>
    %58 = vector.multi_reduction <maximumf>, %57, %cst_22 [1] : vector<64x64xf32> to vector<64xf32>
    %59 = vector.shape_cast %58 : vector<64xf32> to vector<64x1xf32>
    %60 = vector.broadcast %59 : vector<64x1xf32> to vector<64x64xf32>
    %61 = arith.subf %57, %60 : vector<64x64xf32>
    %62 = math.exp %61 : vector<64x64xf32>
    %cst_23 = arith.constant dense<0.000000e+00> : vector<64xf32>
    %63 = vector.multi_reduction <add>, %62, %cst_23 [1] : vector<64x64xf32> to vector<64xf32>
    %64 = vector.shape_cast %63 : vector<64xf32> to vector<64x1xf32>
    %65 = arith.truncf %62 : vector<64x64xf32> to vector<64x64xbf16>
    "tpu.trace_start"() <{level = 10 : i32, message = "nm,md->nd"}> : () -> ()
    %cst_24 = arith.constant dense<0.000000e+00> : vector<64x16xf32>
    %66 = tpu.matmul %65, %53, %cst_24 {dimension_numbers = #tpu.dot_dimension_numbers<[1], [0], [0], [1], [0, 0, 1, 1], [], []>} : vector<64x64xbf16>, vector<64x16xbf16>, vector<64x16xf32> -> vector<64x16xf32>
    "tpu.trace_stop"() : () -> ()
    %67 = tpu.reciprocal %64 {approx = true} : vector<64x1xf32> -> vector<64x1xf32>
    %68 = vector.broadcast %67 : vector<64x1xf32> to vector<64x16xf32>
    %69 = arith.mulf %66, %68 : vector<64x16xf32>
    %70 = vector.extract_strided_slice %12 {offsets = [0, 48], sizes = [64, 16], strides = [1, 1]} : vector<256x192xbf16> to vector<64x16xbf16>
    %71 = vector.extract_strided_slice %12 {offsets = [0, 112], sizes = [64, 16], strides = [1, 1]} : vector<256x192xbf16> to vector<64x16xbf16>
    %72 = vector.extract_strided_slice %12 {offsets = [0, 176], sizes = [64, 16], strides = [1, 1]} : vector<256x192xbf16> to vector<64x16xbf16>
    "tpu.trace_start"() <{level = 10 : i32, message = "nd,md->nm"}> : () -> ()
    %cst_25 = arith.constant dense<0.000000e+00> : vector<64x64xf32>
    %73 = tpu.matmul %70, %71, %cst_25 {dimension_numbers = #tpu.dot_dimension_numbers<[1], [1], [0], [0], [0, 0, 1, 0], [], []>} : vector<64x16xbf16>, vector<64x16xbf16>, vector<64x64xf32> -> vector<64x64xf32>
    "tpu.trace_stop"() : () -> ()
    %74 = vector.extract_strided_slice %3 {offsets = [3, 0, 0], sizes = [1, 64, 64], strides = [1, 1, 1]} : vector<4x64x64xf32> to vector<1x64x64xf32>
    %75 = vector.shape_cast %74 : vector<1x64x64xf32> to vector<64x64xf32>
    %76 = arith.addf %73, %75 : vector<64x64xf32>
    %cst_26 = arith.constant dense<0xFF800000> : vector<64xf32>
    %77 = vector.multi_reduction <maximumf>, %76, %cst_26 [1] : vector<64x64xf32> to vector<64xf32>
    %78 = vector.shape_cast %77 : vector<64xf32> to vector<64x1xf32>
    %79 = vector.broadcast %78 : vector<64x1xf32> to vector<64x64xf32>
    %80 = arith.subf %76, %79 : vector<64x64xf32>
    %81 = math.exp %80 : vector<64x64xf32>
    %cst_27 = arith.constant dense<0.000000e+00> : vector<64xf32>
    %82 = vector.multi_reduction <add>, %81, %cst_27 [1] : vector<64x64xf32> to vector<64xf32>
    %83 = vector.shape_cast %82 : vector<64xf32> to vector<64x1xf32>
    %84 = arith.truncf %81 : vector<64x64xf32> to vector<64x64xbf16>
    "tpu.trace_start"() <{level = 10 : i32, message = "nm,md->nd"}> : () -> ()
    %cst_28 = arith.constant dense<0.000000e+00> : vector<64x16xf32>
    %85 = tpu.matmul %84, %72, %cst_28 {dimension_numbers = #tpu.dot_dimension_numbers<[1], [0], [0], [1], [0, 0, 1, 1], [], []>} : vector<64x64xbf16>, vector<64x16xbf16>, vector<64x16xf32> -> vector<64x16xf32>
    "tpu.trace_stop"() : () -> ()
    %86 = tpu.reciprocal %83 {approx = true} : vector<64x1xf32> -> vector<64x1xf32>
    %87 = vector.broadcast %86 : vector<64x1xf32> to vector<64x16xf32>
    %88 = arith.mulf %85, %87 : vector<64x16xf32>
    %89 = tpu.concatenate %31, %50, %69, %88 in 1 : vector<64x16xf32>, vector<64x16xf32>, vector<64x16xf32>, vector<64x16xf32> -> vector<64x64xf32>
    %90 = arith.truncf %89 : vector<64x64xf32> to vector<64x64xbf16>
    %91 = vector.extract_strided_slice %12 {offsets = [64, 0], sizes = [64, 16], strides = [1, 1]} : vector<256x192xbf16> to vector<64x16xbf16>
    %92 = vector.extract_strided_slice %12 {offsets = [64, 64], sizes = [64, 16], strides = [1, 1]} : vector<256x192xbf16> to vector<64x16xbf16>
    %93 = vector.extract_strided_slice %12 {offsets = [64, 128], sizes = [64, 16], strides = [1, 1]} : vector<256x192xbf16> to vector<64x16xbf16>
    "tpu.trace_start"() <{level = 10 : i32, message = "nd,md->nm"}> : () -> ()
    %cst_29 = arith.constant dense<0.000000e+00> : vector<64x64xf32>
    %94 = tpu.matmul %91, %92, %cst_29 {dimension_numbers = #tpu.dot_dimension_numbers<[1], [1], [0], [0], [0, 0, 1, 0], [], []>} : vector<64x16xbf16>, vector<64x16xbf16>, vector<64x64xf32> -> vector<64x64xf32>
    "tpu.trace_stop"() : () -> ()
    %95 = vector.extract_strided_slice %3 {offsets = [0, 0, 0], sizes = [1, 64, 64], strides = [1, 1, 1]} : vector<4x64x64xf32> to vector<1x64x64xf32>
    %96 = vector.shape_cast %95 : vector<1x64x64xf32> to vector<64x64xf32>
    %97 = arith.addf %94, %96 : vector<64x64xf32>
    %cst_30 = arith.constant dense<0xFF800000> : vector<64xf32>
    %98 = vector.multi_reduction <maximumf>, %97, %cst_30 [1] : vector<64x64xf32> to vector<64xf32>
    %99 = vector.shape_cast %98 : vector<64xf32> to vector<64x1xf32>
    %100 = vector.broadcast %99 : vector<64x1xf32> to vector<64x64xf32>
    %101 = arith.subf %97, %100 : vector<64x64xf32>
    %102 = math.exp %101 : vector<64x64xf32>
    %cst_31 = arith.constant dense<0.000000e+00> : vector<64xf32>
    %103 = vector.multi_reduction <add>, %102, %cst_31 [1] : vector<64x64xf32> to vector<64xf32>
    %104 = vector.shape_cast %103 : vector<64xf32> to vector<64x1xf32>
    %105 = arith.truncf %102 : vector<64x64xf32> to vector<64x64xbf16>
    "tpu.trace_start"() <{level = 10 : i32, message = "nm,md->nd"}> : () -> ()
    %cst_32 = arith.constant dense<0.000000e+00> : vector<64x16xf32>
    %106 = tpu.matmul %105, %93, %cst_32 {dimension_numbers = #tpu.dot_dimension_numbers<[1], [0], [0], [1], [0, 0, 1, 1], [], []>} : vector<64x64xbf16>, vector<64x16xbf16>, vector<64x16xf32> -> vector<64x16xf32>
    "tpu.trace_stop"() : () -> ()
    %107 = tpu.reciprocal %104 {approx = true} : vector<64x1xf32> -> vector<64x1xf32>
    %108 = vector.broadcast %107 : vector<64x1xf32> to vector<64x16xf32>
    %109 = arith.mulf %106, %108 : vector<64x16xf32>
    %110 = vector.extract_strided_slice %12 {offsets = [64, 16], sizes = [64, 16], strides = [1, 1]} : vector<256x192xbf16> to vector<64x16xbf16>
    %111 = vector.extract_strided_slice %12 {offsets = [64, 80], sizes = [64, 16], strides = [1, 1]} : vector<256x192xbf16> to vector<64x16xbf16>
    %112 = vector.extract_strided_slice %12 {offsets = [64, 144], sizes = [64, 16], strides = [1, 1]} : vector<256x192xbf16> to vector<64x16xbf16>
    "tpu.trace_start"() <{level = 10 : i32, message = "nd,md->nm"}> : () -> ()
    %cst_33 = arith.constant dense<0.000000e+00> : vector<64x64xf32>
    %113 = tpu.matmul %110, %111, %cst_33 {dimension_numbers = #tpu.dot_dimension_numbers<[1], [1], [0], [0], [0, 0, 1, 0], [], []>} : vector<64x16xbf16>, vector<64x16xbf16>, vector<64x64xf32> -> vector<64x64xf32>
    "tpu.trace_stop"() : () -> ()
    %114 = vector.extract_strided_slice %3 {offsets = [1, 0, 0], sizes = [1, 64, 64], strides = [1, 1, 1]} : vector<4x64x64xf32> to vector<1x64x64xf32>
    %115 = vector.shape_cast %114 : vector<1x64x64xf32> to vector<64x64xf32>
    %116 = arith.addf %113, %115 : vector<64x64xf32>
    %cst_34 = arith.constant dense<0xFF800000> : vector<64xf32>
    %117 = vector.multi_reduction <maximumf>, %116, %cst_34 [1] : vector<64x64xf32> to vector<64xf32>
    %118 = vector.shape_cast %117 : vector<64xf32> to vector<64x1xf32>
    %119 = vector.broadcast %118 : vector<64x1xf32> to vector<64x64xf32>
    %120 = arith.subf %116, %119 : vector<64x64xf32>
    %121 = math.exp %120 : vector<64x64xf32>
    %cst_35 = arith.constant dense<0.000000e+00> : vector<64xf32>
    %122 = vector.multi_reduction <add>, %121, %cst_35 [1] : vector<64x64xf32> to vector<64xf32>
    %123 = vector.shape_cast %122 : vector<64xf32> to vector<64x1xf32>
    %124 = arith.truncf %121 : vector<64x64xf32> to vector<64x64xbf16>
    "tpu.trace_start"() <{level = 10 : i32, message = "nm,md->nd"}> : () -> ()
    %cst_36 = arith.constant dense<0.000000e+00> : vector<64x16xf32>
    %125 = tpu.matmul %124, %112, %cst_36 {dimension_numbers = #tpu.dot_dimension_numbers<[1], [0], [0], [1], [0, 0, 1, 1], [], []>} : vector<64x64xbf16>, vector<64x16xbf16>, vector<64x16xf32> -> vector<64x16xf32>
    "tpu.trace_stop"() : () -> ()
    %126 = tpu.reciprocal %123 {approx = true} : vector<64x1xf32> -> vector<64x1xf32>
    %127 = vector.broadcast %126 : vector<64x1xf32> to vector<64x16xf32>
    %128 = arith.mulf %125, %127 : vector<64x16xf32>
    %129 = vector.extract_strided_slice %12 {offsets = [64, 32], sizes = [64, 16], strides = [1, 1]} : vector<256x192xbf16> to vector<64x16xbf16>
    %130 = vector.extract_strided_slice %12 {offsets = [64, 96], sizes = [64, 16], strides = [1, 1]} : vector<256x192xbf16> to vector<64x16xbf16>
    %131 = vector.extract_strided_slice %12 {offsets = [64, 160], sizes = [64, 16], strides = [1, 1]} : vector<256x192xbf16> to vector<64x16xbf16>
    "tpu.trace_start"() <{level = 10 : i32, message = "nd,md->nm"}> : () -> ()
    %cst_37 = arith.constant dense<0.000000e+00> : vector<64x64xf32>
    %132 = tpu.matmul %129, %130, %cst_37 {dimension_numbers = #tpu.dot_dimension_numbers<[1], [1], [0], [0], [0, 0, 1, 0], [], []>} : vector<64x16xbf16>, vector<64x16xbf16>, vector<64x64xf32> -> vector<64x64xf32>
    "tpu.trace_stop"() : () -> ()
    %133 = vector.extract_strided_slice %3 {offsets = [2, 0, 0], sizes = [1, 64, 64], strides = [1, 1, 1]} : vector<4x64x64xf32> to vector<1x64x64xf32>
    %134 = vector.shape_cast %133 : vector<1x64x64xf32> to vector<64x64xf32>
    %135 = arith.addf %132, %134 : vector<64x64xf32>
    %cst_38 = arith.constant dense<0xFF800000> : vector<64xf32>
    %136 = vector.multi_reduction <maximumf>, %135, %cst_38 [1] : vector<64x64xf32> to vector<64xf32>
    %137 = vector.shape_cast %136 : vector<64xf32> to vector<64x1xf32>
    %138 = vector.broadcast %137 : vector<64x1xf32> to vector<64x64xf32>
    %139 = arith.subf %135, %138 : vector<64x64xf32>
    %140 = math.exp %139 : vector<64x64xf32>
    %cst_39 = arith.constant dense<0.000000e+00> : vector<64xf32>
    %141 = vector.multi_reduction <add>, %140, %cst_39 [1] : vector<64x64xf32> to vector<64xf32>
    %142 = vector.shape_cast %141 : vector<64xf32> to vector<64x1xf32>
    %143 = arith.truncf %140 : vector<64x64xf32> to vector<64x64xbf16>
    "tpu.trace_start"() <{level = 10 : i32, message = "nm,md->nd"}> : () -> ()
    %cst_40 = arith.constant dense<0.000000e+00> : vector<64x16xf32>
    %144 = tpu.matmul %143, %131, %cst_40 {dimension_numbers = #tpu.dot_dimension_numbers<[1], [0], [0], [1], [0, 0, 1, 1], [], []>} : vector<64x64xbf16>, vector<64x16xbf16>, vector<64x16xf32> -> vector<64x16xf32>
    "tpu.trace_stop"() : () -> ()
    %145 = tpu.reciprocal %142 {approx = true} : vector<64x1xf32> -> vector<64x1xf32>
    %146 = vector.broadcast %145 : vector<64x1xf32> to vector<64x16xf32>
    %147 = arith.mulf %144, %146 : vector<64x16xf32>
    %148 = vector.extract_strided_slice %12 {offsets = [64, 48], sizes = [64, 16], strides = [1, 1]} : vector<256x192xbf16> to vector<64x16xbf16>
    %149 = vector.extract_strided_slice %12 {offsets = [64, 112], sizes = [64, 16], strides = [1, 1]} : vector<256x192xbf16> to vector<64x16xbf16>
    %150 = vector.extract_strided_slice %12 {offsets = [64, 176], sizes = [64, 16], strides = [1, 1]} : vector<256x192xbf16> to vector<64x16xbf16>
    "tpu.trace_start"() <{level = 10 : i32, message = "nd,md->nm"}> : () -> ()
    %cst_41 = arith.constant dense<0.000000e+00> : vector<64x64xf32>
    %151 = tpu.matmul %148, %149, %cst_41 {dimension_numbers = #tpu.dot_dimension_numbers<[1], [1], [0], [0], [0, 0, 1, 0], [], []>} : vector<64x16xbf16>, vector<64x16xbf16>, vector<64x64xf32> -> vector<64x64xf32>
    "tpu.trace_stop"() : () -> ()
    %152 = vector.extract_strided_slice %3 {offsets = [3, 0, 0], sizes = [1, 64, 64], strides = [1, 1, 1]} : vector<4x64x64xf32> to vector<1x64x64xf32>
    %153 = vector.shape_cast %152 : vector<1x64x64xf32> to vector<64x64xf32>
    %154 = arith.addf %151, %153 : vector<64x64xf32>
    %cst_42 = arith.constant dense<0xFF800000> : vector<64xf32>
    %155 = vector.multi_reduction <maximumf>, %154, %cst_42 [1] : vector<64x64xf32> to vector<64xf32>
    %156 = vector.shape_cast %155 : vector<64xf32> to vector<64x1xf32>
    %157 = vector.broadcast %156 : vector<64x1xf32> to vector<64x64xf32>
    %158 = arith.subf %154, %157 : vector<64x64xf32>
    %159 = math.exp %158 : vector<64x64xf32>
    %cst_43 = arith.constant dense<0.000000e+00> : vector<64xf32>
    %160 = vector.multi_reduction <add>, %159, %cst_43 [1] : vector<64x64xf32> to vector<64xf32>
    %161 = vector.shape_cast %160 : vector<64xf32> to vector<64x1xf32>
    %162 = arith.truncf %159 : vector<64x64xf32> to vector<64x64xbf16>
    "tpu.trace_start"() <{level = 10 : i32, message = "nm,md->nd"}> : () -> ()
    %cst_44 = arith.constant dense<0.000000e+00> : vector<64x16xf32>
    %163 = tpu.matmul %162, %150, %cst_44 {dimension_numbers = #tpu.dot_dimension_numbers<[1], [0], [0], [1], [0, 0, 1, 1], [], []>} : vector<64x64xbf16>, vector<64x16xbf16>, vector<64x16xf32> -> vector<64x16xf32>
    "tpu.trace_stop"() : () -> ()
    %164 = tpu.reciprocal %161 {approx = true} : vector<64x1xf32> -> vector<64x1xf32>
    %165 = vector.broadcast %164 : vector<64x1xf32> to vector<64x16xf32>
    %166 = arith.mulf %163, %165 : vector<64x16xf32>
    %167 = tpu.concatenate %109, %128, %147, %166 in 1 : vector<64x16xf32>, vector<64x16xf32>, vector<64x16xf32>, vector<64x16xf32> -> vector<64x64xf32>
    %168 = arith.truncf %167 : vector<64x64xf32> to vector<64x64xbf16>
    %169 = vector.extract_strided_slice %12 {offsets = [128, 0], sizes = [64, 16], strides = [1, 1]} : vector<256x192xbf16> to vector<64x16xbf16>
    %170 = vector.extract_strided_slice %12 {offsets = [128, 64], sizes = [64, 16], strides = [1, 1]} : vector<256x192xbf16> to vector<64x16xbf16>
    %171 = vector.extract_strided_slice %12 {offsets = [128, 128], sizes = [64, 16], strides = [1, 1]} : vector<256x192xbf16> to vector<64x16xbf16>
    "tpu.trace_start"() <{level = 10 : i32, message = "nd,md->nm"}> : () -> ()
    %cst_45 = arith.constant dense<0.000000e+00> : vector<64x64xf32>
    %172 = tpu.matmul %169, %170, %cst_45 {dimension_numbers = #tpu.dot_dimension_numbers<[1], [1], [0], [0], [0, 0, 1, 0], [], []>} : vector<64x16xbf16>, vector<64x16xbf16>, vector<64x64xf32> -> vector<64x64xf32>
    "tpu.trace_stop"() : () -> ()
    %173 = vector.extract_strided_slice %3 {offsets = [0, 0, 0], sizes = [1, 64, 64], strides = [1, 1, 1]} : vector<4x64x64xf32> to vector<1x64x64xf32>
    %174 = vector.shape_cast %173 : vector<1x64x64xf32> to vector<64x64xf32>
    %175 = arith.addf %172, %174 : vector<64x64xf32>
    %cst_46 = arith.constant dense<0xFF800000> : vector<64xf32>
    %176 = vector.multi_reduction <maximumf>, %175, %cst_46 [1] : vector<64x64xf32> to vector<64xf32>
    %177 = vector.shape_cast %176 : vector<64xf32> to vector<64x1xf32>
    %178 = vector.broadcast %177 : vector<64x1xf32> to vector<64x64xf32>
    %179 = arith.subf %175, %178 : vector<64x64xf32>
    %180 = math.exp %179 : vector<64x64xf32>
    %cst_47 = arith.constant dense<0.000000e+00> : vector<64xf32>
    %181 = vector.multi_reduction <add>, %180, %cst_47 [1] : vector<64x64xf32> to vector<64xf32>
    %182 = vector.shape_cast %181 : vector<64xf32> to vector<64x1xf32>
    %183 = arith.truncf %180 : vector<64x64xf32> to vector<64x64xbf16>
    "tpu.trace_start"() <{level = 10 : i32, message = "nm,md->nd"}> : () -> ()
    %cst_48 = arith.constant dense<0.000000e+00> : vector<64x16xf32>
    %184 = tpu.matmul %183, %171, %cst_48 {dimension_numbers = #tpu.dot_dimension_numbers<[1], [0], [0], [1], [0, 0, 1, 1], [], []>} : vector<64x64xbf16>, vector<64x16xbf16>, vector<64x16xf32> -> vector<64x16xf32>
    "tpu.trace_stop"() : () -> ()
    %185 = tpu.reciprocal %182 {approx = true} : vector<64x1xf32> -> vector<64x1xf32>
    %186 = vector.broadcast %185 : vector<64x1xf32> to vector<64x16xf32>
    %187 = arith.mulf %184, %186 : vector<64x16xf32>
    %188 = vector.extract_strided_slice %12 {offsets = [128, 16], sizes = [64, 16], strides = [1, 1]} : vector<256x192xbf16> to vector<64x16xbf16>
    %189 = vector.extract_strided_slice %12 {offsets = [128, 80], sizes = [64, 16], strides = [1, 1]} : vector<256x192xbf16> to vector<64x16xbf16>
    %190 = vector.extract_strided_slice %12 {offsets = [128, 144], sizes = [64, 16], strides = [1, 1]} : vector<256x192xbf16> to vector<64x16xbf16>
    "tpu.trace_start"() <{level = 10 : i32, message = "nd,md->nm"}> : () -> ()
    %cst_49 = arith.constant dense<0.000000e+00> : vector<64x64xf32>
    %191 = tpu.matmul %188, %189, %cst_49 {dimension_numbers = #tpu.dot_dimension_numbers<[1], [1], [0], [0], [0, 0, 1, 0], [], []>} : vector<64x16xbf16>, vector<64x16xbf16>, vector<64x64xf32> -> vector<64x64xf32>
    "tpu.trace_stop"() : () -> ()
    %192 = vector.extract_strided_slice %3 {offsets = [1, 0, 0], sizes = [1, 64, 64], strides = [1, 1, 1]} : vector<4x64x64xf32> to vector<1x64x64xf32>
    %193 = vector.shape_cast %192 : vector<1x64x64xf32> to vector<64x64xf32>
    %194 = arith.addf %191, %193 : vector<64x64xf32>
    %cst_50 = arith.constant dense<0xFF800000> : vector<64xf32>
    %195 = vector.multi_reduction <maximumf>, %194, %cst_50 [1] : vector<64x64xf32> to vector<64xf32>
    %196 = vector.shape_cast %195 : vector<64xf32> to vector<64x1xf32>
    %197 = vector.broadcast %196 : vector<64x1xf32> to vector<64x64xf32>
    %198 = arith.subf %194, %197 : vector<64x64xf32>
    %199 = math.exp %198 : vector<64x64xf32>
    %cst_51 = arith.constant dense<0.000000e+00> : vector<64xf32>
    %200 = vector.multi_reduction <add>, %199, %cst_51 [1] : vector<64x64xf32> to vector<64xf32>
    %201 = vector.shape_cast %200 : vector<64xf32> to vector<64x1xf32>
    %202 = arith.truncf %199 : vector<64x64xf32> to vector<64x64xbf16>
    "tpu.trace_start"() <{level = 10 : i32, message = "nm,md->nd"}> : () -> ()
    %cst_52 = arith.constant dense<0.000000e+00> : vector<64x16xf32>
    %203 = tpu.matmul %202, %190, %cst_52 {dimension_numbers = #tpu.dot_dimension_numbers<[1], [0], [0], [1], [0, 0, 1, 1], [], []>} : vector<64x64xbf16>, vector<64x16xbf16>, vector<64x16xf32> -> vector<64x16xf32>
    "tpu.trace_stop"() : () -> ()
    %204 = tpu.reciprocal %201 {approx = true} : vector<64x1xf32> -> vector<64x1xf32>
    %205 = vector.broadcast %204 : vector<64x1xf32> to vector<64x16xf32>
    %206 = arith.mulf %203, %205 : vector<64x16xf32>
    %207 = vector.extract_strided_slice %12 {offsets = [128, 32], sizes = [64, 16], strides = [1, 1]} : vector<256x192xbf16> to vector<64x16xbf16>
    %208 = vector.extract_strided_slice %12 {offsets = [128, 96], sizes = [64, 16], strides = [1, 1]} : vector<256x192xbf16> to vector<64x16xbf16>
    %209 = vector.extract_strided_slice %12 {offsets = [128, 160], sizes = [64, 16], strides = [1, 1]} : vector<256x192xbf16> to vector<64x16xbf16>
    "tpu.trace_start"() <{level = 10 : i32, message = "nd,md->nm"}> : () -> ()
    %cst_53 = arith.constant dense<0.000000e+00> : vector<64x64xf32>
    %210 = tpu.matmul %207, %208, %cst_53 {dimension_numbers = #tpu.dot_dimension_numbers<[1], [1], [0], [0], [0, 0, 1, 0], [], []>} : vector<64x16xbf16>, vector<64x16xbf16>, vector<64x64xf32> -> vector<64x64xf32>
    "tpu.trace_stop"() : () -> ()
    %211 = vector.extract_strided_slice %3 {offsets = [2, 0, 0], sizes = [1, 64, 64], strides = [1, 1, 1]} : vector<4x64x64xf32> to vector<1x64x64xf32>
    %212 = vector.shape_cast %211 : vector<1x64x64xf32> to vector<64x64xf32>
    %213 = arith.addf %210, %212 : vector<64x64xf32>
    %cst_54 = arith.constant dense<0xFF800000> : vector<64xf32>
    %214 = vector.multi_reduction <maximumf>, %213, %cst_54 [1] : vector<64x64xf32> to vector<64xf32>
    %215 = vector.shape_cast %214 : vector<64xf32> to vector<64x1xf32>
    %216 = vector.broadcast %215 : vector<64x1xf32> to vector<64x64xf32>
    %217 = arith.subf %213, %216 : vector<64x64xf32>
    %218 = math.exp %217 : vector<64x64xf32>
    %cst_55 = arith.constant dense<0.000000e+00> : vector<64xf32>
    %219 = vector.multi_reduction <add>, %218, %cst_55 [1] : vector<64x64xf32> to vector<64xf32>
    %220 = vector.shape_cast %219 : vector<64xf32> to vector<64x1xf32>
    %221 = arith.truncf %218 : vector<64x64xf32> to vector<64x64xbf16>
    "tpu.trace_start"() <{level = 10 : i32, message = "nm,md->nd"}> : () -> ()
    %cst_56 = arith.constant dense<0.000000e+00> : vector<64x16xf32>
    %222 = tpu.matmul %221, %209, %cst_56 {dimension_numbers = #tpu.dot_dimension_numbers<[1], [0], [0], [1], [0, 0, 1, 1], [], []>} : vector<64x64xbf16>, vector<64x16xbf16>, vector<64x16xf32> -> vector<64x16xf32>
    "tpu.trace_stop"() : () -> ()
    %223 = tpu.reciprocal %220 {approx = true} : vector<64x1xf32> -> vector<64x1xf32>
    %224 = vector.broadcast %223 : vector<64x1xf32> to vector<64x16xf32>
    %225 = arith.mulf %222, %224 : vector<64x16xf32>
    %226 = vector.extract_strided_slice %12 {offsets = [128, 48], sizes = [64, 16], strides = [1, 1]} : vector<256x192xbf16> to vector<64x16xbf16>
    %227 = vector.extract_strided_slice %12 {offsets = [128, 112], sizes = [64, 16], strides = [1, 1]} : vector<256x192xbf16> to vector<64x16xbf16>
    %228 = vector.extract_strided_slice %12 {offsets = [128, 176], sizes = [64, 16], strides = [1, 1]} : vector<256x192xbf16> to vector<64x16xbf16>
    "tpu.trace_start"() <{level = 10 : i32, message = "nd,md->nm"}> : () -> ()
    %cst_57 = arith.constant dense<0.000000e+00> : vector<64x64xf32>
    %229 = tpu.matmul %226, %227, %cst_57 {dimension_numbers = #tpu.dot_dimension_numbers<[1], [1], [0], [0], [0, 0, 1, 0], [], []>} : vector<64x16xbf16>, vector<64x16xbf16>, vector<64x64xf32> -> vector<64x64xf32>
    "tpu.trace_stop"() : () -> ()
    %230 = vector.extract_strided_slice %3 {offsets = [3, 0, 0], sizes = [1, 64, 64], strides = [1, 1, 1]} : vector<4x64x64xf32> to vector<1x64x64xf32>
    %231 = vector.shape_cast %230 : vector<1x64x64xf32> to vector<64x64xf32>
    %232 = arith.addf %229, %231 : vector<64x64xf32>
    %cst_58 = arith.constant dense<0xFF800000> : vector<64xf32>
    %233 = vector.multi_reduction <maximumf>, %232, %cst_58 [1] : vector<64x64xf32> to vector<64xf32>
    %234 = vector.shape_cast %233 : vector<64xf32> to vector<64x1xf32>
    %235 = vector.broadcast %234 : vector<64x1xf32> to vector<64x64xf32>
    %236 = arith.subf %232, %235 : vector<64x64xf32>
    %237 = math.exp %236 : vector<64x64xf32>
    %cst_59 = arith.constant dense<0.000000e+00> : vector<64xf32>
    %238 = vector.multi_reduction <add>, %237, %cst_59 [1] : vector<64x64xf32> to vector<64xf32>
    %239 = vector.shape_cast %238 : vector<64xf32> to vector<64x1xf32>
    %240 = arith.truncf %237 : vector<64x64xf32> to vector<64x64xbf16>
    "tpu.trace_start"() <{level = 10 : i32, message = "nm,md->nd"}> : () -> ()
    %cst_60 = arith.constant dense<0.000000e+00> : vector<64x16xf32>
    %241 = tpu.matmul %240, %228, %cst_60 {dimension_numbers = #tpu.dot_dimension_numbers<[1], [0], [0], [1], [0, 0, 1, 1], [], []>} : vector<64x64xbf16>, vector<64x16xbf16>, vector<64x16xf32> -> vector<64x16xf32>
    "tpu.trace_stop"() : () -> ()
    %242 = tpu.reciprocal %239 {approx = true} : vector<64x1xf32> -> vector<64x1xf32>
    %243 = vector.broadcast %242 : vector<64x1xf32> to vector<64x16xf32>
    %244 = arith.mulf %241, %243 : vector<64x16xf32>
    %245 = tpu.concatenate %187, %206, %225, %244 in 1 : vector<64x16xf32>, vector<64x16xf32>, vector<64x16xf32>, vector<64x16xf32> -> vector<64x64xf32>
    %246 = arith.truncf %245 : vector<64x64xf32> to vector<64x64xbf16>
    %247 = vector.extract_strided_slice %12 {offsets = [192, 0], sizes = [64, 16], strides = [1, 1]} : vector<256x192xbf16> to vector<64x16xbf16>
    %248 = vector.extract_strided_slice %12 {offsets = [192, 64], sizes = [64, 16], strides = [1, 1]} : vector<256x192xbf16> to vector<64x16xbf16>
    %249 = vector.extract_strided_slice %12 {offsets = [192, 128], sizes = [64, 16], strides = [1, 1]} : vector<256x192xbf16> to vector<64x16xbf16>
    "tpu.trace_start"() <{level = 10 : i32, message = "nd,md->nm"}> : () -> ()
    %cst_61 = arith.constant dense<0.000000e+00> : vector<64x64xf32>
    %250 = tpu.matmul %247, %248, %cst_61 {dimension_numbers = #tpu.dot_dimension_numbers<[1], [1], [0], [0], [0, 0, 1, 0], [], []>} : vector<64x16xbf16>, vector<64x16xbf16>, vector<64x64xf32> -> vector<64x64xf32>
    "tpu.trace_stop"() : () -> ()
    %251 = vector.extract_strided_slice %3 {offsets = [0, 0, 0], sizes = [1, 64, 64], strides = [1, 1, 1]} : vector<4x64x64xf32> to vector<1x64x64xf32>
    %252 = vector.shape_cast %251 : vector<1x64x64xf32> to vector<64x64xf32>
    %253 = arith.addf %250, %252 : vector<64x64xf32>
    %cst_62 = arith.constant dense<0xFF800000> : vector<64xf32>
    %254 = vector.multi_reduction <maximumf>, %253, %cst_62 [1] : vector<64x64xf32> to vector<64xf32>
    %255 = vector.shape_cast %254 : vector<64xf32> to vector<64x1xf32>
    %256 = vector.broadcast %255 : vector<64x1xf32> to vector<64x64xf32>
    %257 = arith.subf %253, %256 : vector<64x64xf32>
    %258 = math.exp %257 : vector<64x64xf32>
    %cst_63 = arith.constant dense<0.000000e+00> : vector<64xf32>
    %259 = vector.multi_reduction <add>, %258, %cst_63 [1] : vector<64x64xf32> to vector<64xf32>
    %260 = vector.shape_cast %259 : vector<64xf32> to vector<64x1xf32>
    %261 = arith.truncf %258 : vector<64x64xf32> to vector<64x64xbf16>
    "tpu.trace_start"() <{level = 10 : i32, message = "nm,md->nd"}> : () -> ()
    %cst_64 = arith.constant dense<0.000000e+00> : vector<64x16xf32>
    %262 = tpu.matmul %261, %249, %cst_64 {dimension_numbers = #tpu.dot_dimension_numbers<[1], [0], [0], [1], [0, 0, 1, 1], [], []>} : vector<64x64xbf16>, vector<64x16xbf16>, vector<64x16xf32> -> vector<64x16xf32>
    "tpu.trace_stop"() : () -> ()
    %263 = tpu.reciprocal %260 {approx = true} : vector<64x1xf32> -> vector<64x1xf32>
    %264 = vector.broadcast %263 : vector<64x1xf32> to vector<64x16xf32>
    %265 = arith.mulf %262, %264 : vector<64x16xf32>
    %266 = vector.extract_strided_slice %12 {offsets = [192, 16], sizes = [64, 16], strides = [1, 1]} : vector<256x192xbf16> to vector<64x16xbf16>
    %267 = vector.extract_strided_slice %12 {offsets = [192, 80], sizes = [64, 16], strides = [1, 1]} : vector<256x192xbf16> to vector<64x16xbf16>
    %268 = vector.extract_strided_slice %12 {offsets = [192, 144], sizes = [64, 16], strides = [1, 1]} : vector<256x192xbf16> to vector<64x16xbf16>
    "tpu.trace_start"() <{level = 10 : i32, message = "nd,md->nm"}> : () -> ()
    %cst_65 = arith.constant dense<0.000000e+00> : vector<64x64xf32>
    %269 = tpu.matmul %266, %267, %cst_65 {dimension_numbers = #tpu.dot_dimension_numbers<[1], [1], [0], [0], [0, 0, 1, 0], [], []>} : vector<64x16xbf16>, vector<64x16xbf16>, vector<64x64xf32> -> vector<64x64xf32>
    "tpu.trace_stop"() : () -> ()
    %270 = vector.extract_strided_slice %3 {offsets = [1, 0, 0], sizes = [1, 64, 64], strides = [1, 1, 1]} : vector<4x64x64xf32> to vector<1x64x64xf32>
    %271 = vector.shape_cast %270 : vector<1x64x64xf32> to vector<64x64xf32>
    %272 = arith.addf %269, %271 : vector<64x64xf32>
    %cst_66 = arith.constant dense<0xFF800000> : vector<64xf32>
    %273 = vector.multi_reduction <maximumf>, %272, %cst_66 [1] : vector<64x64xf32> to vector<64xf32>
    %274 = vector.shape_cast %273 : vector<64xf32> to vector<64x1xf32>
    %275 = vector.broadcast %274 : vector<64x1xf32> to vector<64x64xf32>
    %276 = arith.subf %272, %275 : vector<64x64xf32>
    %277 = math.exp %276 : vector<64x64xf32>
    %cst_67 = arith.constant dense<0.000000e+00> : vector<64xf32>
    %278 = vector.multi_reduction <add>, %277, %cst_67 [1] : vector<64x64xf32> to vector<64xf32>
    %279 = vector.shape_cast %278 : vector<64xf32> to vector<64x1xf32>
    %280 = arith.truncf %277 : vector<64x64xf32> to vector<64x64xbf16>
    "tpu.trace_start"() <{level = 10 : i32, message = "nm,md->nd"}> : () -> ()
    %cst_68 = arith.constant dense<0.000000e+00> : vector<64x16xf32>
    %281 = tpu.matmul %280, %268, %cst_68 {dimension_numbers = #tpu.dot_dimension_numbers<[1], [0], [0], [1], [0, 0, 1, 1], [], []>} : vector<64x64xbf16>, vector<64x16xbf16>, vector<64x16xf32> -> vector<64x16xf32>
    "tpu.trace_stop"() : () -> ()
    %282 = tpu.reciprocal %279 {approx = true} : vector<64x1xf32> -> vector<64x1xf32>
    %283 = vector.broadcast %282 : vector<64x1xf32> to vector<64x16xf32>
    %284 = arith.mulf %281, %283 : vector<64x16xf32>
    %285 = vector.extract_strided_slice %12 {offsets = [192, 32], sizes = [64, 16], strides = [1, 1]} : vector<256x192xbf16> to vector<64x16xbf16>
    %286 = vector.extract_strided_slice %12 {offsets = [192, 96], sizes = [64, 16], strides = [1, 1]} : vector<256x192xbf16> to vector<64x16xbf16>
    %287 = vector.extract_strided_slice %12 {offsets = [192, 160], sizes = [64, 16], strides = [1, 1]} : vector<256x192xbf16> to vector<64x16xbf16>
    "tpu.trace_start"() <{level = 10 : i32, message = "nd,md->nm"}> : () -> ()
    %cst_69 = arith.constant dense<0.000000e+00> : vector<64x64xf32>
    %288 = tpu.matmul %285, %286, %cst_69 {dimension_numbers = #tpu.dot_dimension_numbers<[1], [1], [0], [0], [0, 0, 1, 0], [], []>} : vector<64x16xbf16>, vector<64x16xbf16>, vector<64x64xf32> -> vector<64x64xf32>
    "tpu.trace_stop"() : () -> ()
    %289 = vector.extract_strided_slice %3 {offsets = [2, 0, 0], sizes = [1, 64, 64], strides = [1, 1, 1]} : vector<4x64x64xf32> to vector<1x64x64xf32>
    %290 = vector.shape_cast %289 : vector<1x64x64xf32> to vector<64x64xf32>
    %291 = arith.addf %288, %290 : vector<64x64xf32>
    %cst_70 = arith.constant dense<0xFF800000> : vector<64xf32>
    %292 = vector.multi_reduction <maximumf>, %291, %cst_70 [1] : vector<64x64xf32> to vector<64xf32>
    %293 = vector.shape_cast %292 : vector<64xf32> to vector<64x1xf32>
    %294 = vector.broadcast %293 : vector<64x1xf32> to vector<64x64xf32>
    %295 = arith.subf %291, %294 : vector<64x64xf32>
    %296 = math.exp %295 : vector<64x64xf32>
    %cst_71 = arith.constant dense<0.000000e+00> : vector<64xf32>
    %297 = vector.multi_reduction <add>, %296, %cst_71 [1] : vector<64x64xf32> to vector<64xf32>
    %298 = vector.shape_cast %297 : vector<64xf32> to vector<64x1xf32>
    %299 = arith.truncf %296 : vector<64x64xf32> to vector<64x64xbf16>
    "tpu.trace_start"() <{level = 10 : i32, message = "nm,md->nd"}> : () -> ()
    %cst_72 = arith.constant dense<0.000000e+00> : vector<64x16xf32>
    %300 = tpu.matmul %299, %287, %cst_72 {dimension_numbers = #tpu.dot_dimension_numbers<[1], [0], [0], [1], [0, 0, 1, 1], [], []>} : vector<64x64xbf16>, vector<64x16xbf16>, vector<64x16xf32> -> vector<64x16xf32>
    "tpu.trace_stop"() : () -> ()
    %301 = tpu.reciprocal %298 {approx = true} : vector<64x1xf32> -> vector<64x1xf32>
    %302 = vector.broadcast %301 : vector<64x1xf32> to vector<64x16xf32>
    %303 = arith.mulf %300, %302 : vector<64x16xf32>
    %304 = vector.extract_strided_slice %12 {offsets = [192, 48], sizes = [64, 16], strides = [1, 1]} : vector<256x192xbf16> to vector<64x16xbf16>
    %305 = vector.extract_strided_slice %12 {offsets = [192, 112], sizes = [64, 16], strides = [1, 1]} : vector<256x192xbf16> to vector<64x16xbf16>
    %306 = vector.extract_strided_slice %12 {offsets = [192, 176], sizes = [64, 16], strides = [1, 1]} : vector<256x192xbf16> to vector<64x16xbf16>
    "tpu.trace_start"() <{level = 10 : i32, message = "nd,md->nm"}> : () -> ()
    %cst_73 = arith.constant dense<0.000000e+00> : vector<64x64xf32>
    %307 = tpu.matmul %304, %305, %cst_73 {dimension_numbers = #tpu.dot_dimension_numbers<[1], [1], [0], [0], [0, 0, 1, 0], [], []>} : vector<64x16xbf16>, vector<64x16xbf16>, vector<64x64xf32> -> vector<64x64xf32>
    "tpu.trace_stop"() : () -> ()
    %308 = vector.extract_strided_slice %3 {offsets = [3, 0, 0], sizes = [1, 64, 64], strides = [1, 1, 1]} : vector<4x64x64xf32> to vector<1x64x64xf32>
    %309 = vector.shape_cast %308 : vector<1x64x64xf32> to vector<64x64xf32>
    %310 = arith.addf %307, %309 : vector<64x64xf32>
    %cst_74 = arith.constant dense<0xFF800000> : vector<64xf32>
    %311 = vector.multi_reduction <maximumf>, %310, %cst_74 [1] : vector<64x64xf32> to vector<64xf32>
    %312 = vector.shape_cast %311 : vector<64xf32> to vector<64x1xf32>
    %313 = vector.broadcast %312 : vector<64x1xf32> to vector<64x64xf32>
    %314 = arith.subf %310, %313 : vector<64x64xf32>
    %315 = math.exp %314 : vector<64x64xf32>
    %cst_75 = arith.constant dense<0.000000e+00> : vector<64xf32>
    %316 = vector.multi_reduction <add>, %315, %cst_75 [1] : vector<64x64xf32> to vector<64xf32>
    %317 = vector.shape_cast %316 : vector<64xf32> to vector<64x1xf32>
    %318 = arith.truncf %315 : vector<64x64xf32> to vector<64x64xbf16>
    "tpu.trace_start"() <{level = 10 : i32, message = "nm,md->nd"}> : () -> ()
    %cst_76 = arith.constant dense<0.000000e+00> : vector<64x16xf32>
    %319 = tpu.matmul %318, %306, %cst_76 {dimension_numbers = #tpu.dot_dimension_numbers<[1], [0], [0], [1], [0, 0, 1, 1], [], []>} : vector<64x64xbf16>, vector<64x16xbf16>, vector<64x16xf32> -> vector<64x16xf32>
    "tpu.trace_stop"() : () -> ()
    %320 = tpu.reciprocal %317 {approx = true} : vector<64x1xf32> -> vector<64x1xf32>
    %321 = vector.broadcast %320 : vector<64x1xf32> to vector<64x16xf32>
    %322 = arith.mulf %319, %321 : vector<64x16xf32>
    %323 = tpu.concatenate %265, %284, %303, %322 in 1 : vector<64x16xf32>, vector<64x16xf32>, vector<64x16xf32>, vector<64x16xf32> -> vector<64x64xf32>
    %324 = arith.truncf %323 : vector<64x64xf32> to vector<64x64xbf16>
    %325 = tpu.concatenate %90, %168, %246, %324 in 0 : vector<64x64xbf16>, vector<64x64xbf16>, vector<64x64xbf16>, vector<64x64xbf16> -> vector<256x64xbf16>
    %cst_77 = arith.constant dense<0.000000e+00> : vector<256x64xf32>
    %326 = tpu.matmul %325, %4, %cst_77 {dimension_numbers = #tpu.dot_dimension_numbers<[1], [0], [0], [1], [0, 0, 1, 1], [], []>} : vector<256x64xbf16>, vector<64x64xbf16>, vector<256x64xf32> -> vector<256x64xf32>
    %327 = vector.broadcast %5 : vector<1x64xf32> to vector<256x64xf32>
    %328 = arith.addf %326, %327 : vector<256x64xf32>
    %329 = vector.shape_cast %328 : vector<256x64xf32> to vector<4x64x64xf32>
    %c0_78 = arith.constant 0 : index
    %c0_79 = arith.constant 0 : index
    %c0_80 = arith.constant 0 : index
    %330 = vector.load %arg7[%c0_78, %c0_79, %c0_80] : memref<4x64x64xf32, #tpu.memory_space<vmem>>, vector<4x64x64xf32>
    tpu.vector_store %arg7[%c0_78, %c0_79, %c0_80], %329 {strides = array<i32>} : memref<4x64x64xf32, #tpu.memory_space<vmem>>, vector<4x64x64xf32>,
    return
  }
  func.func @transform_0(%arg0: i32) -> (i32, i32, i32) {
    %c0_i32 = arith.constant 0 : i32
    %c0_i32_0 = arith.constant 0 : i32
    %c0_i32_1 = arith.constant 0 : i32
    return %arg0, %c0_i32, %c0_i32_0 : i32, i32, i32
  }
  func.func @transform_1(%arg0: i32) -> (i32, i32) {
    %c0_i32 = arith.constant 0 : i32
    %c0_i32_0 = arith.constant 0 : i32
    %c0_i32_1 = arith.constant 0 : i32
    return %c0_i32, %c0_i32_0 : i32, i32
  }
  func.func @transform_2(%arg0: i32) -> (i32, i32) {
    %c0_i32 = arith.constant 0 : i32
    %c0_i32_0 = arith.constant 0 : i32
    %c0_i32_1 = arith.constant 0 : i32
    return %c0_i32, %c0_i32_0 : i32, i32
  }
  func.func @transform_3(%arg0: i32) -> (i32, i32, i32) {
    %c0_i32 = arith.constant 0 : i32
    %c0_i32_0 = arith.constant 0 : i32
    %c0_i32_1 = arith.constant 0 : i32
    %c0_i32_2 = arith.constant 0 : i32
    return %c0_i32, %c0_i32_0, %c0_i32_1 : i32, i32, i32
  }
  func.func @transform_4(%arg0: i32) -> (i32, i32) {
    %c0_i32 = arith.constant 0 : i32
    %c0_i32_0 = arith.constant 0 : i32
    %c0_i32_1 = arith.constant 0 : i32
    return %c0_i32, %c0_i32_0 : i32, i32
  }
  func.func @transform_5(%arg0: i32) -> (i32, i32) {
    %c0_i32 = arith.constant 0 : i32
    %c0_i32_0 = arith.constant 0 : i32
    %c0_i32_1 = arith.constant 0 : i32
    return %c0_i32, %c0_i32_0 : i32, i32
  }
  func.func @transform_6(%arg0: i32) -> (i32, i32, i32) {
    %c0_i32 = arith.constant 0 : i32
    %c0_i32_0 = arith.constant 0 : i32
    %c0_i32_1 = arith.constant 0 : i32
    return %arg0, %c0_i32, %c0_i32_0 : i32, i32, i32
  }
}

</mosaic_0001>

<llo_original>
// kernel: tpu_custom_call.1
$region0: #{tpu_custom_call.1}
  #allocation0 [shape = 'u32[]', space=smem, size = 0x4, offset = 0x4, fixed_abs, tag = 'smem constant byte address 0x4 - core index']
  #allocation1 [shape = 'u32[144,128]{1,0:T(1,128)}', space=vmem, size = 0x12000, scoped, tag = 'internal scratch']
  %s0 = inlined_call_operand.hbm [shape: f32[4,64,64], index: 0, kind: input, shape index: {}]
  %s1 = inlined_call_operand.hbm [shape: bf16[64,192], index: 1, kind: input, shape index: {}]
  %s2 = inlined_call_operand.vmem [shape: f32[1,192], index: 2, kind: input, shape index: {}]
  %s3 = inlined_call_operand.hbm [shape: bf16[4,64,64], index: 3, kind: input, shape index: {}]
  %s4 = inlined_call_operand.hbm [shape: bf16[64,64], index: 4, kind: input, shape index: {}]
  %s5 = inlined_call_operand.vmem [shape: f32[1,64], index: 5, kind: input, shape index: {}]
  %s6 = inlined_call_operand.hbm [shape: f32[4,64,64], index: 6, kind: output, shape index: {}]
  %s7 = sld [smem:[#allocation0]]
  $region50: #{tpu_custom_call.1} parent=0
    _
  %s9 = ssub.s32 1, %s7
  %s10 = scalar_select 0, %s9, %s7
  $region1: #{tpu_custom_call.1} parent=0
    #allocation2 [shape = 'u8[131072]{0}', space=vmem, size = 0x20000, scoped, tag = 'input window, operand 0, single buffered']
    #allocation3 [shape = 's32[1]{0}', space=sflag, size = 0x4, scoped, tag = 'scoped memory for tpu_custom_call.1']
    #allocation4 [shape = 's32[1]{0}', space=sflag, size = 0x4, scoped, tag = 'scoped memory for tpu_custom_call.1']
    #allocation5 [shape = 'u8[32768]{0}', space=vmem, size = 0x8000, scoped, tag = 'input window, operand 1, single buffered']
    #allocation6 [shape = 's32[1]{0}', space=sflag, size = 0x4, scoped, tag = 'scoped memory for tpu_custom_call.1']
    #allocation7 [shape = 'u8[65536]{0}', space=vmem, size = 0x10000, scoped, tag = 'input window, operand 3, single buffered']
    #allocation8 [shape = 'u8[16384]{0}', space=vmem, size = 0x4000, scoped, tag = 'input window, operand 4, single buffered']
    #allocation9 [shape = 's32[1]{0}', space=sflag, size = 0x4, scoped, tag = 'scoped memory for tpu_custom_call.1']
    #allocation10 [shape = 'u8[131072]{0}', space=vmem, size = 0x20000, scoped, tag = 'output window, operand 0, single buffered']
    %11 = vsyncpa [#allocation3], 0
    %12 = vsyncpa [#allocation6], 0
    %13 = vsyncpa [#allocation9], 0
    %14 = vsyncpa [#allocation4], 0
    // Predicated region
    $region2: #{tpu_custom_call.1} parent=1 // pred_check
      _
    $region3: #{tpu_custom_call.1} parent=1 // pred_check_branch
      %16 = sbr.rel (0) target = $region5
    $region4: #{tpu_custom_call.1} parent=1 // pred_region
      %s18 = ssub.s32 4096, 4096
      %19 = vsyncadd [#allocation3], %s18
      %s20 = sshll.u32 [#allocation2], 4
      %s21 = int_to_ptr.vmem [resolvable:$true] %s20
      %26 = dma.hbm_to_vmem [thread:$0]  %s0, 4096, %s21, [#allocation3], 128, 128, 8
    $region5: #{tpu_custom_call.1} parent=1 // pred_fallthru
      _
    // Predicated region
    $region6: #{tpu_custom_call.1} parent=1 // pred_check
      _
    $region7: #{tpu_custom_call.1} parent=1 // pred_check_branch
      %28 = sbr.rel (0) target = $region9
    $region8: #{tpu_custom_call.1} parent=1 // pred_region
      %s30 = ssub.s32 1024, 1024
      %31 = vsyncadd [#allocation6], %s30
      %s32 = sshll.u32 [#allocation5], 4
      %s33 = int_to_ptr.vmem [resolvable:$true] %s32
      %38 = dma.hbm_to_vmem [thread:$0]  %s1, 1024, %s33, [#allocation6], 128, 128, 8
    $region9: #{tpu_custom_call.1} parent=1 // pred_fallthru
      _
    // Predicated region
    $region10: #{tpu_custom_call.1} parent=1 // pred_check
      _
    $region11: #{tpu_custom_call.1} parent=1 // pred_check_branch
      %40 = sbr.rel (0) target = $region13
    $region12: #{tpu_custom_call.1} parent=1 // pred_region
      _
    $region13: #{tpu_custom_call.1} parent=1 // pred_fallthru
      _
    // Predicated region
    $region14: #{tpu_custom_call.1} parent=1 // pred_check
      _
    $region15: #{tpu_custom_call.1} parent=1 // pred_check_branch
      %42 = sbr.rel (0) target = $region17
    $region16: #{tpu_custom_call.1} parent=1 // pred_region
      %s44 = ssub.s32 2048, 2048
      %45 = vsyncadd [#allocation6], %s44
      %s46 = sshll.u32 [#allocation7], 4
      %s47 = int_to_ptr.vmem [resolvable:$true] %s46
      %52 = dma.hbm_to_vmem [thread:$0]  %s3, 2048, %s47, [#allocation6], 64, 64, 4
    $region17: #{tpu_custom_call.1} parent=1 // pred_fallthru
      _
    // Predicated region
    $region18: #{tpu_custom_call.1} parent=1 // pred_check
      _
    $region19: #{tpu_custom_call.1} parent=1 // pred_check_branch
      %54 = sbr.rel (0) target = $region21
    $region20: #{tpu_custom_call.1} parent=1 // pred_region
      %s56 = ssub.s32 512, 512
      %57 = vsyncadd [#allocation9], %s56
      %s58 = sshll.u32 [#allocation8], 4
      %s59 = int_to_ptr.vmem [resolvable:$true] %s58
      %64 = dma.hbm_to_vmem [thread:$0]  %s4, 512, %s59, [#allocation9], 64, 64, 4
    $region21: #{tpu_custom_call.1} parent=1 // pred_fallthru
      _
    // Predicated region
    $region22: #{tpu_custom_call.1} parent=1 // pred_check
      _
    $region23: #{tpu_custom_call.1} parent=1 // pred_check_branch
      %66 = sbr.rel (0) target = $region25
    $region24: #{tpu_custom_call.1} parent=1 // pred_region
      _
    $region25: #{tpu_custom_call.1} parent=1 // pred_fallthru
      _
    // Predicated region
    $region26: #{tpu_custom_call.1} parent=1 // pred_check
      _
    $region27: #{tpu_custom_call.1} parent=1 // pred_check_branch
      %68 = sbr.rel (0) target = $region29
    $region28: #{tpu_custom_call.1} parent=1 // pred_region
      %69 = dma.done [#allocation3], 4096
    $region29: #{tpu_custom_call.1} parent=1 // pred_fallthru
      _
    // Predicated region
    $region30: #{tpu_custom_call.1} parent=1 // pred_check
      _
    $region31: #{tpu_custom_call.1} parent=1 // pred_check_branch
      %71 = sbr.rel (0) target = $region33
    $region32: #{tpu_custom_call.1} parent=1 // pred_region
      %72 = dma.done [#allocation6], 1024
    $region33: #{tpu_custom_call.1} parent=1 // pred_fallthru
      _
    // Predicated region
    $region34: #{tpu_custom_call.1} parent=1 // pred_check
      _
    $region35: #{tpu_custom_call.1} parent=1 // pred_check_branch
      %74 = sbr.rel (0) target = $region37
    $region36: #{tpu_custom_call.1} parent=1 // pred_region
      %75 = dma.done [#allocation6], 2048
    $region37: #{tpu_custom_call.1} parent=1 // pred_fallthru
      _
    // Predicated region
    $region38: #{tpu_custom_call.1} parent=1 // pred_check
      _
    $region39: #{tpu_custom_call.1} parent=1 // pred_check_branch
      %77 = sbr.rel (0) target = $region41
    $region40: #{tpu_custom_call.1} parent=1 // pred_region
      %78 = dma.done [#allocation9], 512
    $region41: #{tpu_custom_call.1} parent=1 // pred_fallthru
      _
    %v80 = vld [vmem:[#allocation5] sm:$0xff]
    %v81 = vld [vmem:[#allocation5 + $0x8] sm:$0xff]
    %v82 = vld [vmem:[#allocation5 + $0x10] sm:$0xff]
    %v83 = vld [vmem:[#allocation5 + $0x18] sm:$0xff]
    %v84 = vld [vmem:[#allocation5 + $0x20] sm:$0xff]
    %v85 = vld [vmem:[#allocation5 + $0x28] sm:$0xff]
    %v86 = vld [vmem:[#allocation5 + $0x30] sm:$0xff]
    %v87 = vld [vmem:[#allocation5 + $0x38] sm:$0xff]
    %v88 = vld [vmem:[%s2] sm:$0x3]
    %v89 = vld [vmem:[#allocation7] sm:$0xf]
    %v90 = vld [vmem:[#allocation7 + $0x4] sm:$0xf]
    %v91 = vld [vmem:[#allocation7 + $0x8] sm:$0xf]
    %v92 = vld [vmem:[#allocation7 + $0xc] sm:$0xf]
    %v93 = vld [vmem:[#allocation7 + $0x10] sm:$0xf]
    %v94 = vld [vmem:[#allocation7 + $0x14] sm:$0xf]
    %v95 = vld [vmem:[#allocation7 + $0x18] sm:$0xf]
    %v96 = vld [vmem:[#allocation7 + $0x1c] sm:$0xf]
    %v97 = vld [vmem:[#allocation7 + $0x20] sm:$0xf]
    %v98 = vld [vmem:[#allocation7 + $0x24] sm:$0xf]
    %v99 = vld [vmem:[#allocation7 + $0x28] sm:$0xf]
    %v100 = vld [vmem:[#allocation7 + $0x2c] sm:$0xf]
    %v101 = vld [vmem:[#allocation7 + $0x30] sm:$0xf]
    %v102 = vld [vmem:[#allocation7 + $0x34] sm:$0xf]
    %v103 = vld [vmem:[#allocation7 + $0x38] sm:$0xf]
    %v104 = vld [vmem:[#allocation7 + $0x3c] sm:$0xf]
    %v105 = vld [vmem:[#allocation7 + $0x40] sm:$0xf]
    %v106 = vld [vmem:[#allocation7 + $0x44] sm:$0xf]
    %v107 = vld [vmem:[#allocation7 + $0x48] sm:$0xf]
    %v108 = vld [vmem:[#allocation7 + $0x4c] sm:$0xf]
    %v109 = vld [vmem:[#allocation7 + $0x50] sm:$0xf]
    %v110 = vld [vmem:[#allocation7 + $0x54] sm:$0xf]
    %v111 = vld [vmem:[#allocation7 + $0x58] sm:$0xf]
    %v112 = vld [vmem:[#allocation7 + $0x5c] sm:$0xf]
    %v113 = vld [vmem:[#allocation7 + $0x60] sm:$0xf]
    %v114 = vld [vmem:[#allocation7 + $0x64] sm:$0xf]
    %v115 = vld [vmem:[#allocation7 + $0x68] sm:$0xf]
    %v116 = vld [vmem:[#allocation7 + $0x6c] sm:$0xf]
    %v117 = vld [vmem:[#allocation7 + $0x70] sm:$0xf]
    %v118 = vld [vmem:[#allocation7 + $0x74] sm:$0xf]
    %v119 = vld [vmem:[#allocation7 + $0x78] sm:$0xf]
    %v120 = vld [vmem:[#allocation7 + $0x7c] sm:$0xf]
    %v121 = vunpack.c.l.bf16 %v89
    %v122 = vunpack.c.l.bf16 %v90
    %v123 = vunpack.c.l.bf16 %v91
    %v124 = vunpack.c.l.bf16 %v92
    %v125 = vunpack.c.l.bf16 %v93
    %v126 = vunpack.c.l.bf16 %v94
    %v127 = vunpack.c.l.bf16 %v95
    %v128 = vunpack.c.l.bf16 %v96
    %v129 = vunpack.c.l.bf16 %v97
    %v130 = vunpack.c.l.bf16 %v98
    %v131 = vunpack.c.l.bf16 %v99
    %v132 = vunpack.c.l.bf16 %v100
    %v133 = vunpack.c.l.bf16 %v101
    %v134 = vunpack.c.l.bf16 %v102
    %v135 = vunpack.c.l.bf16 %v103
    %v136 = vunpack.c.l.bf16 %v104
    %v137 = vunpack.c.l.bf16 %v105
    %v138 = vunpack.c.l.bf16 %v106
    %v139 = vunpack.c.l.bf16 %v107
    %v140 = vunpack.c.l.bf16 %v108
    %v141 = vunpack.c.l.bf16 %v109
    %v142 = vunpack.c.l.bf16 %v110
    %v143 = vunpack.c.l.bf16 %v111
    %v144 = vunpack.c.l.bf16 %v112
    %v145 = vunpack.c.l.bf16 %v113
    %v146 = vunpack.c.l.bf16 %v114
    %v147 = vunpack.c.l.bf16 %v115
    %v148 = vunpack.c.l.bf16 %v116
    %v149 = vunpack.c.l.bf16 %v117
    %v150 = vunpack.c.l.bf16 %v118
    %v151 = vunpack.c.l.bf16 %v119
    %v152 = vunpack.c.l.bf16 %v120
    %v153 = vld [vmem:[#allocation8] sm:$0xf]
    %v154 = vld [vmem:[#allocation8 + $0x4] sm:$0xf]
    %v155 = vld [vmem:[#allocation8 + $0x8] sm:$0xf]
    %v156 = vld [vmem:[#allocation8 + $0xc] sm:$0xf]
    %v157 = vld [vmem:[#allocation8 + $0x10] sm:$0xf]
    %v158 = vld [vmem:[#allocation8 + $0x14] sm:$0xf]
    %v159 = vld [vmem:[#allocation8 + $0x18] sm:$0xf]
    %v160 = vld [vmem:[#allocation8 + $0x1c] sm:$0xf]
    %v161 = vld [vmem:[%s5] sm:$0x1]
    %v162 = vld [vmem:[#allocation2] sm:$0xff]
    %v163 = vld [vmem:[#allocation2 + $0x8] sm:$0xff]
    %v164 = vld [vmem:[#allocation2 + $0x10] sm:$0xff]
    %v165 = vld [vmem:[#allocation2 + $0x18] sm:$0xff]
    %v166 = vld [vmem:[#allocation2 + $0x20] sm:$0xff]
    %v167 = vld [vmem:[#allocation2 + $0x28] sm:$0xff]
    %v168 = vld [vmem:[#allocation2 + $0x30] sm:$0xff]
    %v169 = vld [vmem:[#allocation2 + $0x38] sm:$0xff]
    %v170 = vld [vmem:[#allocation2 + $0x40] sm:$0xff]
    %v171 = vld [vmem:[#allocation2 + $0x48] sm:$0xff]
    %v172 = vld [vmem:[#allocation2 + $0x50] sm:$0xff]
    %v173 = vld [vmem:[#allocation2 + $0x58] sm:$0xff]
    %v174 = vld [vmem:[#allocation2 + $0x60] sm:$0xff]
    %v175 = vld [vmem:[#allocation2 + $0x68] sm:$0xff]
    %v176 = vld [vmem:[#allocation2 + $0x70] sm:$0xff]
    %v177 = vld [vmem:[#allocation2 + $0x78] sm:$0xff]
    %v178 = vld [vmem:[#allocation2 + $0x80] sm:$0xff]
    %v179 = vld [vmem:[#allocation2 + $0x88] sm:$0xff]
    %v180 = vld [vmem:[#allocation2 + $0x90] sm:$0xff]
    %v181 = vld [vmem:[#allocation2 + $0x98] sm:$0xff]
    %v182 = vld [vmem:[#allocation2 + $0xa0] sm:$0xff]
    %v183 = vld [vmem:[#allocation2 + $0xa8] sm:$0xff]
    %v184 = vld [vmem:[#allocation2 + $0xb0] sm:$0xff]
    %v185 = vld [vmem:[#allocation2 + $0xb8] sm:$0xff]
    %v186 = vld [vmem:[#allocation2 + $0xc0] sm:$0xff]
    %v187 = vld [vmem:[#allocation2 + $0xc8] sm:$0xff]
    %v188 = vld [vmem:[#allocation2 + $0xd0] sm:$0xff]
    %v189 = vld [vmem:[#allocation2 + $0xd8] sm:$0xff]
    %v190 = vld [vmem:[#allocation2 + $0xe0] sm:$0xff]
    %v191 = vld [vmem:[#allocation2 + $0xe8] sm:$0xff]
    %v192 = vld [vmem:[#allocation2 + $0xf0] sm:$0xff]
    %v193 = vld [vmem:[#allocation2 + $0xf8] sm:$0xff]
    %v194 = vpack.c.bf16 %v163, %v162
    %v195 = vpack.c.bf16 %v165, %v164
    %v196 = vpack.c.bf16 %v167, %v166
    %v197 = vpack.c.bf16 %v169, %v168
    %v198 = vpack.c.bf16 %v171, %v170
    %v199 = vpack.c.bf16 %v173, %v172
    %v200 = vpack.c.bf16 %v175, %v174
    %v201 = vpack.c.bf16 %v177, %v176
    %v202 = vpack.c.bf16 %v179, %v178
    %v203 = vpack.c.bf16 %v181, %v180
    %v204 = vpack.c.bf16 %v183, %v182
    %v205 = vpack.c.bf16 %v185, %v184
    %v206 = vpack.c.bf16 %v187, %v186
    %v207 = vpack.c.bf16 %v189, %v188
    %v208 = vpack.c.bf16 %v191, %v190
    %v209 = vpack.c.bf16 %v193, %v192
    %v211 = vlaneseq
    %v212 = vshrl.u32 %v211, 7
    %v213 = vsub.s32 0, %v212
    %v214 = vrot.slane %v88, %v213
    %v215 = vlaneseq
    %v216 = vshrl.u32 %v215, 7
    %v217 = vsub.s32 1, %v216
    %v218 = vrot.slane %v88, %v217
    %v229 = vunpack.c.l.b16 %v80
    %v230 = vunpack.c.h.b16 %v80
    %v231 = vunpack.c.l.b16 %v81
    %v232 = vunpack.c.h.b16 %v81
    %v233 = vunpack.c.l.b16 %v82
    %v234 = vunpack.c.h.b16 %v82
    %v235 = vunpack.c.l.b16 %v83
    %v236 = vunpack.c.h.b16 %v83
    %v237 = vunpack.c.l.b16 %v84
    %v238 = vunpack.c.h.b16 %v84
    %v239 = vunpack.c.l.b16 %v85
    %v240 = vunpack.c.h.b16 %v85
    %v241 = vunpack.c.l.b16 %v86
    %v242 = vunpack.c.h.b16 %v86
    %v243 = vunpack.c.l.b16 %v87
    %v244 = vunpack.c.h.b16 %v87
    %v245 = vpack.c.b16 %v231, %v229
    %v246 = vpack.c.b16 %v232, %v230
    %v247 = vpack.c.b16 %v235, %v233
    %v248 = vpack.c.b16 %v236, %v234
    %v249 = vpack.c.b16 %v239, %v237
    %v250 = vpack.c.b16 %v240, %v238
    %v251 = vpack.c.b16 %v243, %v241
    %v252 = vpack.c.b16 %v244, %v242
    %vm261 = vcmask 523264
    %v263 = vsel %vm261, %v194, 0
    %v266 = vsel %vm261, %v195, 0
    %v269 = vsel %vm261, %v196, 0
    %v272 = vsel %vm261, %v197, 0
    %v275 = vsel %vm261, %v198, 0
    %v278 = vsel %vm261, %v199, 0
    %v281 = vsel %vm261, %v200, 0
    %v284 = vsel %vm261, %v201, 0
    %v287 = vsel %vm261, %v202, 0
    %v290 = vsel %vm261, %v203, 0
    %v293 = vsel %vm261, %v204, 0
    %v296 = vsel %vm261, %v205, 0
    %v299 = vsel %vm261, %v206, 0
    %v302 = vsel %vm261, %v207, 0
    %v305 = vsel %vm261, %v208, 0
    %v308 = vsel %vm261, %v209, 0
    %310 = vmatprep.subr.bf16.mxu0 %v246
    %311 = vmatpush1.bf16.msra.mxu0 %v245
    %312 = vmatprep.subr.bf16.mxu0 %v248
    %313 = vmatpush1.bf16.msra.mxu0 %v247
    %314 = vmatprep.subr.bf16.mxu0 %v250
    %315 = vmatpush1.bf16.msra.mxu0 %v249
    %316 = vmatprep.subr.bf16.mxu0 %v252
    %317 = vmatpush1.bf16.msra.mxu0 %v251
    %318 = vmatprep.subr.bf16.mxu0 0
    %319 = vmatpush1.bf16.msra.mxu0 0
    %320 = vmatprep.subr.bf16.mxu0 0
    %321 = vmatpush1.bf16.msra.mxu0 0
    %322 = vmatprep.subr.bf16.mxu0 0
    %323 = vmatpush1.bf16.msra.mxu0 0
    %324 = vmatprep.subr.bf16.mxu0 0
    %325 = vmatpush1.bf16.msra.mxu0 0
    %326 = vmatprep.subr.bf16.mxu0 0
    %327 = vmatpush1.bf16.msra.mxu0 0
    %328 = vmatprep.subr.bf16.mxu0 0
    %329 = vmatpush1.bf16.msra.mxu0 0
    %330 = vmatprep.subr.bf16.mxu0 0
    %331 = vmatpush1.bf16.msra.mxu0 0
    %332 = vmatprep.subr.bf16.mxu0 0
    %333 = vmatpush1.bf16.msra.mxu0 0
    %334 = vmatprep.subr.bf16.mxu0 0
    %335 = vmatpush1.bf16.msra.mxu0 0
    %336 = vmatprep.subr.bf16.mxu0 0
    %337 = vmatpush1.bf16.msra.mxu0 0
    %338 = vmatprep.subr.bf16.mxu0 0
    %339 = vmatpush1.bf16.msra.mxu0 0
    %340 = vmatprep.subr.bf16.mxu0 0
    %341 = vmatpush1.bf16.msra.mxu0 0
    %342 = vmatprep.mubr.bf16.mxu0 0
    %343 = vmatmul.mubr.bf16.gmra.mrb[0].mxu0 %v263
    %v344 = vpop.f32.mrb[0].mxu0
    %v345 = vadd.f32 %v214, %v344
    %v346 = vpop.f32.mrb[0].mxu0
    %v347 = vadd.f32 %v218, %v346
    %v348 = vpop.f32.mrb[0].mxu0
    %v349 = vadd.f32 %v214, %v348
    %v350 = vpop.f32.mrb[0].mxu0
    %v351 = vadd.f32 %v218, %v350
    %352 = vmatprep.mubr.bf16.mxu0 0
    %353 = vmatmul.mubr.bf16.gmra.mrb[0].mxu0 %v266
    %v354 = vpop.f32.mrb[0].mxu0
    %v355 = vadd.f32 %v214, %v354
    %v356 = vpop.f32.mrb[0].mxu0
    %v357 = vadd.f32 %v218, %v356
    %v358 = vpop.f32.mrb[0].mxu0
    %v359 = vadd.f32 %v214, %v358
    %v360 = vpop.f32.mrb[0].mxu0
    %v361 = vadd.f32 %v218, %v360
    %362 = vmatprep.mubr.bf16.mxu0 0
    %363 = vmatmul.mubr.bf16.gmra.mrb[0].mxu0 %v269
    %v364 = vpop.f32.mrb[0].mxu0
    %v365 = vadd.f32 %v214, %v364
    %v366 = vpop.f32.mrb[0].mxu0
    %v367 = vadd.f32 %v218, %v366
    %v368 = vpop.f32.mrb[0].mxu0
    %v369 = vadd.f32 %v214, %v368
    %v370 = vpop.f32.mrb[0].mxu0
    %v371 = vadd.f32 %v218, %v370
    %372 = vmatprep.mubr.bf16.mxu0 0
    %373 = vmatmul.mubr.bf16.gmra.mrb[0].mxu0 %v272
    %v374 = vpop.f32.mrb[0].mxu0
    %v375 = vadd.f32 %v214, %v374
    %v376 = vpop.f32.mrb[0].mxu0
    %v377 = vadd.f32 %v218, %v376
    %v378 = vpop.f32.mrb[0].mxu0
    %v379 = vadd.f32 %v214, %v378
    %v380 = vpop.f32.mrb[0].mxu0
    %v381 = vadd.f32 %v218, %v380
    %382 = vmatprep.mubr.bf16.mxu0 0
    %383 = vmatmul.mubr.bf16.gmra.mrb[0].mxu0 %v275
    %v384 = vpop.f32.mrb[0].mxu0
    %v385 = vadd.f32 %v214, %v384
    %v386 = vpop.f32.mrb[0].mxu0
    %v387 = vadd.f32 %v218, %v386
    %v388 = vpop.f32.mrb[0].mxu0
    %v389 = vadd.f32 %v214, %v388
    %v390 = vpop.f32.mrb[0].mxu0
    %v391 = vadd.f32 %v218, %v390
    %392 = vmatprep.mubr.bf16.mxu0 0
    %393 = vmatmul.mubr.bf16.gmra.mrb[0].mxu0 %v278
    %v394 = vpop.f32.mrb[0].mxu0
    %v395 = vadd.f32 %v214, %v394
    %v396 = vpop.f32.mrb[0].mxu0
    %v397 = vadd.f32 %v218, %v396
    %v398 = vpop.f32.mrb[0].mxu0
    %v399 = vadd.f32 %v214, %v398
    %v400 = vpop.f32.mrb[0].mxu0
    %v401 = vadd.f32 %v218, %v400
    %402 = vmatprep.mubr.bf16.mxu0 0
    %403 = vmatmul.mubr.bf16.gmra.mrb[0].mxu0 %v281
    %v404 = vpop.f32.mrb[0].mxu0
    %v405 = vadd.f32 %v214, %v404
    %v406 = vpop.f32.mrb[0].mxu0
    %v407 = vadd.f32 %v218, %v406
    %v408 = vpop.f32.mrb[0].mxu0
    %v409 = vadd.f32 %v214, %v408
    %v410 = vpop.f32.mrb[0].mxu0
    %v411 = vadd.f32 %v218, %v410
    %412 = vmatprep.mubr.bf16.mxu0 0
    %413 = vmatmul.mubr.bf16.gmra.mrb[0].mxu0 %v284
    %v414 = vpop.f32.mrb[0].mxu0
    %v415 = vadd.f32 %v214, %v414
    %v416 = vpop.f32.mrb[0].mxu0
    %v417 = vadd.f32 %v218, %v416
    %v418 = vpop.f32.mrb[0].mxu0
    %v419 = vadd.f32 %v214, %v418
    %v420 = vpop.f32.mrb[0].mxu0
    %v421 = vadd.f32 %v218, %v420
    %422 = vmatprep.mubr.bf16.mxu0 0
    %423 = vmatmul.mubr.bf16.gmra.mrb[0].mxu0 %v287
    %v424 = vpop.f32.mrb[0].mxu0
    %v425 = vadd.f32 %v214, %v424
    %v426 = vpop.f32.mrb[0].mxu0
    %v427 = vadd.f32 %v218, %v426
    %v428 = vpop.f32.mrb[0].mxu0
    %v429 = vadd.f32 %v214, %v428
    %v430 = vpop.f32.mrb[0].mxu0
    %v431 = vadd.f32 %v218, %v430
    %432 = vmatprep.mubr.bf16.mxu0 0
    %433 = vmatmul.mubr.bf16.gmra.mrb[0].mxu0 %v290
    %v434 = vpop.f32.mrb[0].mxu0
    %v435 = vadd.f32 %v214, %v434
    %v436 = vpop.f32.mrb[0].mxu0
    %v437 = vadd.f32 %v218, %v436
    %v438 = vpop.f32.mrb[0].mxu0
    %v439 = vadd.f32 %v214, %v438
    %v440 = vpop.f32.mrb[0].mxu0
    %v441 = vadd.f32 %v218, %v440
    %442 = vmatprep.mubr.bf16.mxu0 0
    %443 = vmatmul.mubr.bf16.gmra.mrb[0].mxu0 %v293
    %v444 = vpop.f32.mrb[0].mxu0
    %v445 = vadd.f32 %v214, %v444
    %v446 = vpop.f32.mrb[0].mxu0
    %v447 = vadd.f32 %v218, %v446
    %v448 = vpop.f32.mrb[0].mxu0
    %v449 = vadd.f32 %v214, %v448
    %v450 = vpop.f32.mrb[0].mxu0
    %v451 = vadd.f32 %v218, %v450
    %452 = vmatprep.mubr.bf16.mxu0 0
    %453 = vmatmul.mubr.bf16.gmra.mrb[0].mxu0 %v296
    %v454 = vpop.f32.mrb[0].mxu0
    %v455 = vadd.f32 %v214, %v454
    %v456 = vpop.f32.mrb[0].mxu0
    %v457 = vadd.f32 %v218, %v456
    %v458 = vpop.f32.mrb[0].mxu0
    %v459 = vadd.f32 %v214, %v458
    %v460 = vpop.f32.mrb[0].mxu0
    %v461 = vadd.f32 %v218, %v460
    %462 = vmatprep.mubr.bf16.mxu0 0
    %463 = vmatmul.mubr.bf16.gmra.mrb[0].mxu0 %v299
    %v464 = vpop.f32.mrb[0].mxu0
    %v465 = vadd.f32 %v214, %v464
    %v466 = vpop.f32.mrb[0].mxu0
    %v467 = vadd.f32 %v218, %v466
    %v468 = vpop.f32.mrb[0].mxu0
    %v469 = vadd.f32 %v214, %v468
    %v470 = vpop.f32.mrb[0].mxu0
    %v471 = vadd.f32 %v218, %v470
    %472 = vmatprep.mubr.bf16.mxu0 0
    %473 = vmatmul.mubr.bf16.gmra.mrb[0].mxu0 %v302
    %v474 = vpop.f32.mrb[0].mxu0
    %v475 = vadd.f32 %v214, %v474
    %v476 = vpop.f32.mrb[0].mxu0
    %v477 = vadd.f32 %v218, %v476
    %v478 = vpop.f32.mrb[0].mxu0
    %v479 = vadd.f32 %v214, %v478
    %v480 = vpop.f32.mrb[0].mxu0
    %v481 = vadd.f32 %v218, %v480
    %482 = vmatprep.mubr.bf16.mxu0 0
    %483 = vmatmul.mubr.bf16.gmra.mrb[0].mxu0 %v305
    %v484 = vpop.f32.mrb[0].mxu0
    %v485 = vadd.f32 %v214, %v484
    %v486 = vpop.f32.mrb[0].mxu0
    %v487 = vadd.f32 %v218, %v486
    %v488 = vpop.f32.mrb[0].mxu0
    %v489 = vadd.f32 %v214, %v488
    %v490 = vpop.f32.mrb[0].mxu0
    %v491 = vadd.f32 %v218, %v490
    %492 = vmatprep.mubr.bf16.mxu0 0
    %493 = vmatmul.mubr.bf16.gmra.mrb[0].mxu0 %v308
    %v494 = vpop.f32.mrb[0].mxu0
    %v495 = vadd.f32 %v214, %v494
    %v496 = vpop.f32.mrb[0].mxu0
    %v497 = vadd.f32 %v218, %v496
    %v498 = vpop.f32.mrb[0].mxu0
    %v499 = vadd.f32 %v214, %v498
    %v500 = vpop.f32.mrb[0].mxu0
    %v501 = vadd.f32 %v218, %v500
    %502 = vdwg.mxu0
    %v503 = vpack.c.bf16 %v349, %v345
    %v504 = vpack.c.bf16 %v351, %v347
    %v505 = vpack.c.bf16 %v359, %v355
    %v506 = vpack.c.bf16 %v361, %v357
    %v507 = vpack.c.bf16 %v369, %v365
    %v508 = vpack.c.bf16 %v371, %v367
    %v509 = vpack.c.bf16 %v379, %v375
    %v510 = vpack.c.bf16 %v381, %v377
    %v511 = vpack.c.bf16 %v389, %v385
    %v512 = vpack.c.bf16 %v391, %v387
    %v513 = vpack.c.bf16 %v399, %v395
    %v514 = vpack.c.bf16 %v401, %v397
    %v515 = vpack.c.bf16 %v409, %v405
    %v516 = vpack.c.bf16 %v411, %v407
    %v517 = vpack.c.bf16 %v419, %v415
    %v518 = vpack.c.bf16 %v421, %v417
    %v519 = vpack.c.bf16 %v429, %v425
    %v520 = vpack.c.bf16 %v431, %v427
    %v521 = vpack.c.bf16 %v439, %v435
    %v522 = vpack.c.bf16 %v441, %v437
    %v523 = vpack.c.bf16 %v449, %v445
    %v524 = vpack.c.bf16 %v451, %v447
    %v525 = vpack.c.bf16 %v459, %v455
    %v526 = vpack.c.bf16 %v461, %v457
    %v527 = vpack.c.bf16 %v469, %v465
    %v528 = vpack.c.bf16 %v471, %v467
    %v529 = vpack.c.bf16 %v479, %v475
    %v530 = vpack.c.bf16 %v481, %v477
    %v531 = vpack.c.bf16 %v489, %v485
    %v532 = vpack.c.bf16 %v491, %v487
    %v533 = vpack.c.bf16 %v499, %v495
    %v534 = vpack.c.bf16 %v501, %v497
    %539 = vrot.lane.b32.xlu0 %v503, 64
    %v540 = vpop.permute.xlu0 %539
    %541 = vrot.lane.b32.xlu0 %v505, 64
    %v542 = vpop.permute.xlu0 %541
    %543 = vrot.lane.b32.xlu0 %v507, 64
    %v544 = vpop.permute.xlu0 %543
    %545 = vrot.lane.b32.xlu0 %v509, 64
    %v546 = vpop.permute.xlu0 %545
    %vm547 = vcmask 130048
    %v549 = vsel %vm547, %v503, 0
    %v552 = vsel %vm547, %v505, 0
    %v555 = vsel %vm547, %v507, 0
    %v558 = vsel %vm547, %v509, 0
    %v561 = vsel %vm547, %v540, 0
    %v564 = vsel %vm547, %v542, 0
    %v567 = vsel %vm547, %v544, 0
    %v570 = vsel %vm547, %v546, 0
    %572 = vmatprep.subr.bf16.mxu0 0
    %573 = vmatpush1.bf16.xpose.msra.mxu0 %v561
    %574 = vmatprep.subr.bf16.mxu0 0
    %575 = vmatpush1.bf16.xpose.msra.mxu0 %v564
    %576 = vmatprep.subr.bf16.mxu0 0
    %577 = vmatpush1.bf16.xpose.msra.mxu0 %v567
    %578 = vmatprep.subr.bf16.mxu0 0
    %579 = vmatpush1.bf16.xpose.msra.mxu0 %v570
    %580 = vmatprep.subr.bf16.mxu0 0
    %581 = vmatpush1.bf16.xpose.msra.mxu0 0
    %582 = vmatprep.subr.bf16.mxu0 0
    %583 = vmatpush1.bf16.xpose.msra.mxu0 0
    %584 = vmatprep.subr.bf16.mxu0 0
    %585 = vmatpush1.bf16.xpose.msra.mxu0 0
    %586 = vmatprep.subr.bf16.mxu0 0
    %587 = vmatpush1.bf16.xpose.msra.mxu0 0
    %588 = vmatprep.subr.bf16.mxu0 0
    %589 = vmatpush1.bf16.xpose.msra.mxu0 0
    %590 = vmatprep.subr.bf16.mxu0 0
    %591 = vmatpush1.bf16.xpose.msra.mxu0 0
    %592 = vmatprep.subr.bf16.mxu0 0
    %593 = vmatpush1.bf16.xpose.msra.mxu0 0
    %594 = vmatprep.subr.bf16.mxu0 0
    %595 = vmatpush1.bf16.xpose.msra.mxu0 0
    %596 = vmatprep.subr.bf16.mxu0 0
    %597 = vmatpush1.bf16.xpose.msra.mxu0 0
    %598 = vmatprep.subr.bf16.mxu0 0
    %599 = vmatpush1.bf16.xpose.msra.mxu0 0
    %600 = vmatprep.subr.bf16.mxu0 0
    %601 = vmatpush1.bf16.xpose.msra.mxu0 0
    %602 = vmatprep.subr.bf16.mxu0 0
    %603 = vmatpush1.bf16.xpose.msra.mxu0 0
    %604 = vmatprep.mubr.bf16.mxu0 0
    %605 = vmatmul.mubr.bf16.gmra.mrb[0].mxu0 %v549
    %v606 = vpop.f32.mrb[0].mxu0
    %v607 = vadd.f32 %v121, %v606
    %v608 = vpop.f32.mrb[0].mxu0
    %v609 = vpop.f32.mrb[0].mxu0
    %v610 = vadd.f32 %v122, %v609
    %v611 = vpop.f32.mrb[0].mxu0
    %612 = vmatprep.mubr.bf16.mxu0 0
    %613 = vmatmul.mubr.bf16.gmra.mrb[0].mxu0 %v552
    %v614 = vpop.f32.mrb[0].mxu0
    %v615 = vadd.f32 %v123, %v614
    %v616 = vpop.f32.mrb[0].mxu0
    %v617 = vpop.f32.mrb[0].mxu0
    %v618 = vadd.f32 %v124, %v617
    %v619 = vpop.f32.mrb[0].mxu0
    %620 = vmatprep.mubr.bf16.mxu0 0
    %621 = vmatmul.mubr.bf16.gmra.mrb[0].mxu0 %v555
    %v622 = vpop.f32.mrb[0].mxu0
    %v623 = vadd.f32 %v125, %v622
    %v624 = vpop.f32.mrb[0].mxu0
    %v625 = vpop.f32.mrb[0].mxu0
    %v626 = vadd.f32 %v126, %v625
    %v627 = vpop.f32.mrb[0].mxu0
    %628 = vmatprep.mubr.bf16.mxu0 0
    %629 = vmatmul.mubr.bf16.gmra.mrb[0].mxu0 %v558
    %v630 = vpop.f32.mrb[0].mxu0
    %v631 = vadd.f32 %v127, %v630
    %v632 = vpop.f32.mrb[0].mxu0
    %v633 = vpop.f32.mrb[0].mxu0
    %v634 = vadd.f32 %v128, %v633
    %v635 = vpop.f32.mrb[0].mxu0
    %636 = vdwg.mxu0
    %v637 = vsel %vm261, %v607, -inf
    %638 = vmax.xlane.f32.xlu0 %v637
    %v639 = vpop.xlane.xlu0 %638
    %v640 = vsel %vm261, %v610, -inf
    %641 = vmax.xlane.f32.xlu0 %v640
    %v642 = vpop.xlane.xlu0 %641
    %v643 = vsel %vm261, %v615, -inf
    %644 = vmax.xlane.f32.xlu0 %v643
    %v645 = vpop.xlane.xlu0 %644
    %v646 = vsel %vm261, %v618, -inf
    %647 = vmax.xlane.f32.xlu0 %v646
    %v648 = vpop.xlane.xlu0 %647
    %v649 = vsel %vm261, %v623, -inf
    %650 = vmax.xlane.f32.xlu0 %v649
    %v651 = vpop.xlane.xlu0 %650
    %v652 = vsel %vm261, %v626, -inf
    %653 = vmax.xlane.f32.xlu0 %v652
    %v654 = vpop.xlane.xlu0 %653
    %v655 = vsel %vm261, %v631, -inf
    %656 = vmax.xlane.f32.xlu0 %v655
    %v657 = vpop.xlane.xlu0 %656
    %v658 = vsel %vm261, %v634, -inf
    %659 = vmax.xlane.f32.xlu0 %v658
    %v660 = vpop.xlane.xlu0 %659
    %v661 = vsub.f32 %v607, %v639
    %v662 = vsub.f32 %v610, %v642
    %v663 = vsub.f32 %v615, %v645
    %v664 = vsub.f32 %v618, %v648
    %v665 = vsub.f32 %v623, %v651
    %v666 = vsub.f32 %v626, %v654
    %v667 = vsub.f32 %v631, %v657
    %v668 = vsub.f32 %v634, %v660
    %v669 = vmul.f32 %v661, 1.442695
    %v670 = vpow.pop %v669
    %v671 = vmul.f32 %v662, 1.442695
    %v672 = vpow.pop %v671
    %v673 = vmul.f32 %v663, 1.442695
    %v674 = vpow.pop %v673
    %v675 = vmul.f32 %v664, 1.442695
    %v676 = vpow.pop %v675
    %v677 = vmul.f32 %v665, 1.442695
    %v678 = vpow.pop %v677
    %v679 = vmul.f32 %v666, 1.442695
    %v680 = vpow.pop %v679
    %v681 = vmul.f32 %v667, 1.442695
    %v682 = vpow.pop %v681
    %v683 = vmul.f32 %v668, 1.442695
    %v684 = vpow.pop %v683
    %v685 = vsel %vm261, %v670, 0.0
    %686 = vadd.xlane.f32.xlu0 %v685
    %v687 = vpop.xlane.xlu0 %686
    %v688 = vsel %vm261, %v672, 0.0
    %689 = vadd.xlane.f32.xlu0 %v688
    %v690 = vpop.xlane.xlu0 %689
    %v691 = vsel %vm261, %v674, 0.0
    %692 = vadd.xlane.f32.xlu0 %v691
    %v693 = vpop.xlane.xlu0 %692
    %v694 = vsel %vm261, %v676, 0.0
    %695 = vadd.xlane.f32.xlu0 %v694
    %v696 = vpop.xlane.xlu0 %695
    %v697 = vsel %vm261, %v678, 0.0
    %698 = vadd.xlane.f32.xlu0 %v697
    %v699 = vpop.xlane.xlu0 %698
    %v700 = vsel %vm261, %v680, 0.0
    %701 = vadd.xlane.f32.xlu0 %v700
    %v702 = vpop.xlane.xlu0 %701
    %v703 = vsel %vm261, %v682, 0.0
    %704 = vadd.xlane.f32.xlu0 %v703
    %v705 = vpop.xlane.xlu0 %704
    %v706 = vsel %vm261, %v684, 0.0
    %707 = vadd.xlane.f32.xlu0 %v706
    %v708 = vpop.xlane.xlu0 %707
    %v709 = vpack.c.bf16 %v672, %v670
    %v710 = vpack.c.bf16 %v676, %v674
    %v711 = vpack.c.bf16 %v680, %v678
    %v712 = vpack.c.bf16 %v684, %v682
    %v714 = vsel %vm261, %v709, 0
    %v717 = vsel %vm261, %v710, 0
    %v720 = vsel %vm261, %v711, 0
    %v723 = vsel %vm261, %v712, 0
    %725 = vmatprep.subr.bf16.mxu0 0
    %726 = vmatpush1.bf16.msra.mxu0 %v504
    %727 = vmatprep.subr.bf16.mxu0 0
    %728 = vmatpush1.bf16.msra.mxu0 %v506
    %729 = vmatprep.subr.bf16.mxu0 0
    %730 = vmatpush1.bf16.msra.mxu0 %v508
    %731 = vmatprep.subr.bf16.mxu0 0
    %732 = vmatpush1.bf16.msra.mxu0 %v510
    %733 = vmatprep.subr.bf16.mxu0 0
    %734 = vmatpush1.bf16.msra.mxu0 0
    %735 = vmatprep.subr.bf16.mxu0 0
    %736 = vmatpush1.bf16.msra.mxu0 0
    %737 = vmatprep.subr.bf16.mxu0 0
    %738 = vmatpush1.bf16.msra.mxu0 0
    %739 = vmatprep.subr.bf16.mxu0 0
    %740 = vmatpush1.bf16.msra.mxu0 0
    %741 = vmatprep.subr.bf16.mxu0 0
    %742 = vmatpush1.bf16.msra.mxu0 0
    %743 = vmatprep.subr.bf16.mxu0 0
    %744 = vmatpush1.bf16.msra.mxu0 0
    %745 = vmatprep.subr.bf16.mxu0 0
    %746 = vmatpush1.bf16.msra.mxu0 0
    %747 = vmatprep.subr.bf16.mxu0 0
    %748 = vmatpush1.bf16.msra.mxu0 0
    %749 = vmatprep.subr.bf16.mxu0 0
    %750 = vmatpush1.bf16.msra.mxu0 0
    %751 = vmatprep.subr.bf16.mxu0 0
    %752 = vmatpush1.bf16.msra.mxu0 0
    %753 = vmatprep.subr.bf16.mxu0 0
    %754 = vmatpush1.bf16.msra.mxu0 0
    %755 = vmatprep.subr.bf16.mxu0 0
    %756 = vmatpush1.bf16.msra.mxu0 0
    %757 = vmatprep.mubr.bf16.mxu0 0
    %758 = vmatmul.mubr.bf16.gmra.mrb[0].mxu0 %v714
    %v759 = vpop.f32.mrb[0].mxu0
    %v760 = vadd.f32 0.0, %v759
    %v761 = vpop.f32.mrb[0].mxu0
    %v762 = vpop.f32.mrb[0].mxu0
    %v763 = vadd.f32 0.0, %v762
    %v764 = vpop.f32.mrb[0].mxu0
    %765 = vmatprep.mubr.bf16.mxu0 0
    %766 = vmatmul.mubr.bf16.gmra.mrb[0].mxu0 %v717
    %v767 = vpop.f32.mrb[0].mxu0
    %v768 = vadd.f32 0.0, %v767
    %v769 = vpop.f32.mrb[0].mxu0
    %v770 = vpop.f32.mrb[0].mxu0
    %v771 = vadd.f32 0.0, %v770
    %v772 = vpop.f32.mrb[0].mxu0
    %773 = vmatprep.mubr.bf16.mxu0 0
    %774 = vmatmul.mubr.bf16.gmra.mrb[0].mxu0 %v720
    %v775 = vpop.f32.mrb[0].mxu0
    %v776 = vadd.f32 0.0, %v775
    %v777 = vpop.f32.mrb[0].mxu0
    %v778 = vpop.f32.mrb[0].mxu0
    %v779 = vadd.f32 0.0, %v778
    %v780 = vpop.f32.mrb[0].mxu0
    %781 = vmatprep.mubr.bf16.mxu0 0
    %782 = vmatmul.mubr.bf16.gmra.mrb[0].mxu0 %v723
    %v783 = vpop.f32.mrb[0].mxu0
    %v784 = vadd.f32 0.0, %v783
    %v785 = vpop.f32.mrb[0].mxu0
    %v786 = vpop.f32.mrb[0].mxu0
    %v787 = vadd.f32 0.0, %v786
    %v788 = vpop.f32.mrb[0].mxu0
    %789 = vdwg.mxu0
    %v790 = vrcp.pop %v687
    %v791 = vrcp.pop %v690
    %v792 = vrcp.pop %v693
    %v793 = vrcp.pop %v696
    %v794 = vrcp.pop %v699
    %v795 = vrcp.pop %v702
    %v796 = vrcp.pop %v705
    %v797 = vrcp.pop %v708
    %v798 = vmul.f32 %v760, %v790
    %v799 = vmul.f32 %v763, %v791
    %v800 = vmul.f32 %v768, %v792
    %v801 = vmul.f32 %v771, %v793
    %v802 = vmul.f32 %v776, %v794
    %v803 = vmul.f32 %v779, %v795
    %v804 = vmul.f32 %v784, %v796
    %v805 = vmul.f32 %v787, %v797
    %806 = vrot.lane.b32.xlu0 %v503, 112
    %v807 = vpop.permute.xlu0 %806
    %808 = vrot.lane.b32.xlu0 %v505, 112
    %v809 = vpop.permute.xlu0 %808
    %810 = vrot.lane.b32.xlu0 %v507, 112
    %v811 = vpop.permute.xlu0 %810
    %812 = vrot.lane.b32.xlu0 %v509, 112
    %v813 = vpop.permute.xlu0 %812
    %814 = vrot.lane.b32.xlu0 %v503, 48
    %v815 = vpop.permute.xlu0 %814
    %816 = vrot.lane.b32.xlu0 %v505, 48
    %v817 = vpop.permute.xlu0 %816
    %818 = vrot.lane.b32.xlu0 %v507, 48
    %v819 = vpop.permute.xlu0 %818
    %820 = vrot.lane.b32.xlu0 %v509, 48
    %v821 = vpop.permute.xlu0 %820
    %v823 = vsel %vm547, %v807, 0
    %v826 = vsel %vm547, %v809, 0
    %v829 = vsel %vm547, %v811, 0
    %v832 = vsel %vm547, %v813, 0
    %v835 = vsel %vm547, %v815, 0
    %v838 = vsel %vm547, %v817, 0
    %v841 = vsel %vm547, %v819, 0
    %v844 = vsel %vm547, %v821, 0
    %846 = vmatprep.subr.bf16.mxu0 0
    %847 = vmatpush1.bf16.xpose.msra.mxu0 %v835
    %848 = vmatprep.subr.bf16.mxu0 0
    %849 = vmatpush1.bf16.xpose.msra.mxu0 %v838
    %850 = vmatprep.subr.bf16.mxu0 0
    %851 = vmatpush1.bf16.xpose.msra.mxu0 %v841
    %852 = vmatprep.subr.bf16.mxu0 0
    %853 = vmatpush1.bf16.xpose.msra.mxu0 %v844
    %854 = vmatprep.subr.bf16.mxu0 0
    %855 = vmatpush1.bf16.xpose.msra.mxu0 0
    %856 = vmatprep.subr.bf16.mxu0 0
    %857 = vmatpush1.bf16.xpose.msra.mxu0 0
    %858 = vmatprep.subr.bf16.mxu0 0
    %859 = vmatpush1.bf16.xpose.msra.mxu0 0
    %860 = vmatprep.subr.bf16.mxu0 0
    %861 = vmatpush1.bf16.xpose.msra.mxu0 0
    %862 = vmatprep.subr.bf16.mxu0 0
    %863 = vmatpush1.bf16.xpose.msra.mxu0 0
    %864 = vmatprep.subr.bf16.mxu0 0
    %865 = vmatpush1.bf16.xpose.msra.mxu0 0
    %866 = vmatprep.subr.bf16.mxu0 0
    %867 = vmatpush1.bf16.xpose.msra.mxu0 0
    %868 = vmatprep.subr.bf16.mxu0 0
    %869 = vmatpush1.bf16.xpose.msra.mxu0 0
    %870 = vmatprep.subr.bf16.mxu0 0
    %871 = vmatpush1.bf16.xpose.msra.mxu0 0
    %872 = vmatprep.subr.bf16.mxu0 0
    %873 = vmatpush1.bf16.xpose.msra.mxu0 0
    %874 = vmatprep.subr.bf16.mxu0 0
    %875 = vmatpush1.bf16.xpose.msra.mxu0 0
    %876 = vmatprep.subr.bf16.mxu0 0
    %877 = vmatpush1.bf16.xpose.msra.mxu0 0
    %878 = vmatprep.mubr.bf16.mxu0 0
    %879 = vmatmul.mubr.bf16.gmra.mrb[0].mxu0 %v823
    %v880 = vpop.f32.mrb[0].mxu0
    %v881 = vadd.f32 %v129, %v880
    %v882 = vpop.f32.mrb[0].mxu0
    %v883 = vpop.f32.mrb[0].mxu0
    %v884 = vadd.f32 %v130, %v883
    %v885 = vpop.f32.mrb[0].mxu0
    %886 = vmatprep.mubr.bf16.mxu0 0
    %887 = vmatmul.mubr.bf16.gmra.mrb[0].mxu0 %v826
    %v888 = vpop.f32.mrb[0].mxu0
    %v889 = vadd.f32 %v131, %v888
    %v890 = vpop.f32.mrb[0].mxu0
    %v891 = vpop.f32.mrb[0].mxu0
    %v892 = vadd.f32 %v132, %v891
    %v893 = vpop.f32.mrb[0].mxu0
    %894 = vmatprep.mubr.bf16.mxu0 0
    %895 = vmatmul.mubr.bf16.gmra.mrb[0].mxu0 %v829
    %v896 = vpop.f32.mrb[0].mxu0
    %v897 = vadd.f32 %v133, %v896
    %v898 = vpop.f32.mrb[0].mxu0
    %v899 = vpop.f32.mrb[0].mxu0
    %v900 = vadd.f32 %v134, %v899
    %v901 = vpop.f32.mrb[0].mxu0
    %902 = vmatprep.mubr.bf16.mxu0 0
    %903 = vmatmul.mubr.bf16.gmra.mrb[0].mxu0 %v832
    %v904 = vpop.f32.mrb[0].mxu0
    %v905 = vadd.f32 %v135, %v904
    %v906 = vpop.f32.mrb[0].mxu0
    %v907 = vpop.f32.mrb[0].mxu0
    %v908 = vadd.f32 %v136, %v907
    %v909 = vpop.f32.mrb[0].mxu0
    %910 = vdwg.mxu0
    %v911 = vsel %vm261, %v881, -inf
    %912 = vmax.xlane.f32.xlu0 %v911
    %v913 = vpop.xlane.xlu0 %912
    %v914 = vsel %vm261, %v884, -inf
    %915 = vmax.xlane.f32.xlu0 %v914
    %v916 = vpop.xlane.xlu0 %915
    %v917 = vsel %vm261, %v889, -inf
    %918 = vmax.xlane.f32.xlu0 %v917
    %v919 = vpop.xlane.xlu0 %918
    %v920 = vsel %vm261, %v892, -inf
    %921 = vmax.xlane.f32.xlu0 %v920
    %v922 = vpop.xlane.xlu0 %921
    %v923 = vsel %vm261, %v897, -inf
    %924 = vmax.xlane.f32.xlu0 %v923
    %v925 = vpop.xlane.xlu0 %924
    %v926 = vsel %vm261, %v900, -inf
    %927 = vmax.xlane.f32.xlu0 %v926
    %v928 = vpop.xlane.xlu0 %927
    %v929 = vsel %vm261, %v905, -inf
    %930 = vmax.xlane.f32.xlu0 %v929
    %v931 = vpop.xlane.xlu0 %930
    %v932 = vsel %vm261, %v908, -inf
    %933 = vmax.xlane.f32.xlu0 %v932
    %v934 = vpop.xlane.xlu0 %933
    %v935 = vsub.f32 %v881, %v913
    %v936 = vsub.f32 %v884, %v916
    %v937 = vsub.f32 %v889, %v919
    %v938 = vsub.f32 %v892, %v922
    %v939 = vsub.f32 %v897, %v925
    %v940 = vsub.f32 %v900, %v928
    %v941 = vsub.f32 %v905, %v931
    %v942 = vsub.f32 %v908, %v934
    %v943 = vmul.f32 %v935, 1.442695
    %v944 = vpow.pop %v943
    %v945 = vmul.f32 %v936, 1.442695
    %v946 = vpow.pop %v945
    %v947 = vmul.f32 %v937, 1.442695
    %v948 = vpow.pop %v947
    %v949 = vmul.f32 %v938, 1.442695
    %v950 = vpow.pop %v949
    %v951 = vmul.f32 %v939, 1.442695
    %v952 = vpow.pop %v951
    %v953 = vmul.f32 %v940, 1.442695
    %v954 = vpow.pop %v953
    %v955 = vmul.f32 %v941, 1.442695
    %v956 = vpow.pop %v955
    %v957 = vmul.f32 %v942, 1.442695
    %v958 = vpow.pop %v957
    %v959 = vsel %vm261, %v944, 0.0
    %960 = vadd.xlane.f32.xlu0 %v959
    %v961 = vpop.xlane.xlu0 %960
    %v962 = vsel %vm261, %v946, 0.0
    %963 = vadd.xlane.f32.xlu0 %v962
    %v964 = vpop.xlane.xlu0 %963
    %v965 = vsel %vm261, %v948, 0.0
    %966 = vadd.xlane.f32.xlu0 %v965
    %v967 = vpop.xlane.xlu0 %966
    %v968 = vsel %vm261, %v950, 0.0
    %969 = vadd.xlane.f32.xlu0 %v968
    %v970 = vpop.xlane.xlu0 %969
    %v971 = vsel %vm261, %v952, 0.0
    %972 = vadd.xlane.f32.xlu0 %v971
    %v973 = vpop.xlane.xlu0 %972
    %v974 = vsel %vm261, %v954, 0.0
    %975 = vadd.xlane.f32.xlu0 %v974
    %v976 = vpop.xlane.xlu0 %975
    %v977 = vsel %vm261, %v956, 0.0
    %978 = vadd.xlane.f32.xlu0 %v977
    %v979 = vpop.xlane.xlu0 %978
    %v980 = vsel %vm261, %v958, 0.0
    %981 = vadd.xlane.f32.xlu0 %v980
    %v982 = vpop.xlane.xlu0 %981
    %v983 = vpack.c.bf16 %v946, %v944
    %v984 = vpack.c.bf16 %v950, %v948
    %v985 = vpack.c.bf16 %v954, %v952
    %v986 = vpack.c.bf16 %v958, %v956
    %991 = vrot.lane.b32.xlu0 %v504, 112
    %v992 = vpop.permute.xlu0 %991
    %993 = vrot.lane.b32.xlu0 %v506, 112
    %v994 = vpop.permute.xlu0 %993
    %995 = vrot.lane.b32.xlu0 %v508, 112
    %v996 = vpop.permute.xlu0 %995
    %997 = vrot.lane.b32.xlu0 %v510, 112
    %v998 = vpop.permute.xlu0 %997
    %v1004 = vsel %vm261, %v983, 0
    %v1007 = vsel %vm261, %v984, 0
    %v1010 = vsel %vm261, %v985, 0
    %v1013 = vsel %vm261, %v986, 0
    %1015 = vmatprep.subr.bf16.mxu0 0
    %1016 = vmatpush1.bf16.msra.mxu0 %v992
    %1017 = vmatprep.subr.bf16.mxu0 0
    %1018 = vmatpush1.bf16.msra.mxu0 %v994
    %1019 = vmatprep.subr.bf16.mxu0 0
    %1020 = vmatpush1.bf16.msra.mxu0 %v996
    %1021 = vmatprep.subr.bf16.mxu0 0
    %1022 = vmatpush1.bf16.msra.mxu0 %v998
    %1023 = vmatprep.subr.bf16.mxu0 0
    %1024 = vmatpush1.bf16.msra.mxu0 0
    %1025 = vmatprep.subr.bf16.mxu0 0
    %1026 = vmatpush1.bf16.msra.mxu0 0
    %1027 = vmatprep.subr.bf16.mxu0 0
    %1028 = vmatpush1.bf16.msra.mxu0 0
    %1029 = vmatprep.subr.bf16.mxu0 0
    %1030 = vmatpush1.bf16.msra.mxu0 0
    %1031 = vmatprep.subr.bf16.mxu0 0
    %1032 = vmatpush1.bf16.msra.mxu0 0
    %1033 = vmatprep.subr.bf16.mxu0 0
    %1034 = vmatpush1.bf16.msra.mxu0 0
    %1035 = vmatprep.subr.bf16.mxu0 0
    %1036 = vmatpush1.bf16.msra.mxu0 0
    %1037 = vmatprep.subr.bf16.mxu0 0
    %1038 = vmatpush1.bf16.msra.mxu0 0
    %1039 = vmatprep.subr.bf16.mxu0 0
    %1040 = vmatpush1.bf16.msra.mxu0 0
    %1041 = vmatprep.subr.bf16.mxu0 0
    %1042 = vmatpush1.bf16.msra.mxu0 0
    %1043 = vmatprep.subr.bf16.mxu0 0
    %1044 = vmatpush1.bf16.msra.mxu0 0
    %1045 = vmatprep.subr.bf16.mxu0 0
    %1046 = vmatpush1.bf16.msra.mxu0 0
    %1047 = vmatprep.mubr.bf16.mxu0 0
    %1048 = vmatmul.mubr.bf16.gmra.mrb[0].mxu0 %v1004
    %v1049 = vpop.f32.mrb[0].mxu0
    %v1050 = vadd.f32 0.0, %v1049
    %v1051 = vpop.f32.mrb[0].mxu0
    %v1052 = vpop.f32.mrb[0].mxu0
    %v1053 = vadd.f32 0.0, %v1052
    %v1054 = vpop.f32.mrb[0].mxu0
    %1055 = vmatprep.mubr.bf16.mxu0 0
    %1056 = vmatmul.mubr.bf16.gmra.mrb[0].mxu0 %v1007
    %v1057 = vpop.f32.mrb[0].mxu0
    %v1058 = vadd.f32 0.0, %v1057
    %v1059 = vpop.f32.mrb[0].mxu0
    %v1060 = vpop.f32.mrb[0].mxu0
    %v1061 = vadd.f32 0.0, %v1060
    %v1062 = vpop.f32.mrb[0].mxu0
    %1063 = vmatprep.mubr.bf16.mxu0 0
    %1064 = vmatmul.mubr.bf16.gmra.mrb[0].mxu0 %v1010
    %v1065 = vpop.f32.mrb[0].mxu0
    %v1066 = vadd.f32 0.0, %v1065
    %v1067 = vpop.f32.mrb[0].mxu0
    %v1068 = vpop.f32.mrb[0].mxu0
    %v1069 = vadd.f32 0.0, %v1068
    %v1070 = vpop.f32.mrb[0].mxu0
    %1071 = vmatprep.mubr.bf16.mxu0 0
    %1072 = vmatmul.mubr.bf16.gmra.mrb[0].mxu0 %v1013
    %v1073 = vpop.f32.mrb[0].mxu0
    %v1074 = vadd.f32 0.0, %v1073
    %v1075 = vpop.f32.mrb[0].mxu0
    %v1076 = vpop.f32.mrb[0].mxu0
    %v1077 = vadd.f32 0.0, %v1076
    %v1078 = vpop.f32.mrb[0].mxu0
    %1079 = vdwg.mxu0
    %v1080 = vrcp.pop %v961
    %v1081 = vrcp.pop %v964
    %v1082 = vrcp.pop %v967
    %v1083 = vrcp.pop %v970
    %v1084 = vrcp.pop %v973
    %v1085 = vrcp.pop %v976
    %v1086 = vrcp.pop %v979
    %v1087 = vrcp.pop %v982
    %v1088 = vmul.f32 %v1050, %v1080
    %v1089 = vmul.f32 %v1053, %v1081
    %v1090 = vmul.f32 %v1058, %v1082
    %v1091 = vmul.f32 %v1061, %v1083
    %v1092 = vmul.f32 %v1066, %v1084
    %v1093 = vmul.f32 %v1069, %v1085
    %v1094 = vmul.f32 %v1074, %v1086
    %v1095 = vmul.f32 %v1077, %v1087
    %1096 = vrot.lane.b32.xlu0 %v503, 96
    %v1097 = vpop.permute.xlu0 %1096
    %1098 = vrot.lane.b32.xlu0 %v505, 96
    %v1099 = vpop.permute.xlu0 %1098
    %1100 = vrot.lane.b32.xlu0 %v507, 96
    %v1101 = vpop.permute.xlu0 %1100
    %1102 = vrot.lane.b32.xlu0 %v509, 96
    %v1103 = vpop.permute.xlu0 %1102
    %1104 = vrot.lane.b32.xlu0 %v503, 32
    %v1105 = vpop.permute.xlu0 %1104
    %1106 = vrot.lane.b32.xlu0 %v505, 32
    %v1107 = vpop.permute.xlu0 %1106
    %1108 = vrot.lane.b32.xlu0 %v507, 32
    %v1109 = vpop.permute.xlu0 %1108
    %1110 = vrot.lane.b32.xlu0 %v509, 32
    %v1111 = vpop.permute.xlu0 %1110
    %v1113 = vsel %vm547, %v1097, 0
    %v1116 = vsel %vm547, %v1099, 0
    %v1119 = vsel %vm547, %v1101, 0
    %v1122 = vsel %vm547, %v1103, 0
    %v1125 = vsel %vm547, %v1105, 0
    %v1128 = vsel %vm547, %v1107, 0
    %v1131 = vsel %vm547, %v1109, 0
    %v1134 = vsel %vm547, %v1111, 0
    %1136 = vmatprep.subr.bf16.mxu0 0
    %1137 = vmatpush1.bf16.xpose.msra.mxu0 %v1125
    %1138 = vmatprep.subr.bf16.mxu0 0
    %1139 = vmatpush1.bf16.xpose.msra.mxu0 %v1128
    %1140 = vmatprep.subr.bf16.mxu0 0
    %1141 = vmatpush1.bf16.xpose.msra.mxu0 %v1131
    %1142 = vmatprep.subr.bf16.mxu0 0
    %1143 = vmatpush1.bf16.xpose.msra.mxu0 %v1134
    %1144 = vmatprep.subr.bf16.mxu0 0
    %1145 = vmatpush1.bf16.xpose.msra.mxu0 0
    %1146 = vmatprep.subr.bf16.mxu0 0
    %1147 = vmatpush1.bf16.xpose.msra.mxu0 0
    %1148 = vmatprep.subr.bf16.mxu0 0
    %1149 = vmatpush1.bf16.xpose.msra.mxu0 0
    %1150 = vmatprep.subr.bf16.mxu0 0
    %1151 = vmatpush1.bf16.xpose.msra.mxu0 0
    %1152 = vmatprep.subr.bf16.mxu0 0
    %1153 = vmatpush1.bf16.xpose.msra.mxu0 0
    %1154 = vmatprep.subr.bf16.mxu0 0
    %1155 = vmatpush1.bf16.xpose.msra.mxu0 0
    %1156 = vmatprep.subr.bf16.mxu0 0
    %1157 = vmatpush1.bf16.xpose.msra.mxu0 0
    %1158 = vmatprep.subr.bf16.mxu0 0
    %1159 = vmatpush1.bf16.xpose.msra.mxu0 0
    %1160 = vmatprep.subr.bf16.mxu0 0
    %1161 = vmatpush1.bf16.xpose.msra.mxu0 0
    %1162 = vmatprep.subr.bf16.mxu0 0
    %1163 = vmatpush1.bf16.xpose.msra.mxu0 0
    %1164 = vmatprep.subr.bf16.mxu0 0
    %1165 = vmatpush1.bf16.xpose.msra.mxu0 0
    %1166 = vmatprep.subr.bf16.mxu0 0
    %1167 = vmatpush1.bf16.xpose.msra.mxu0 0
    %1168 = vmatprep.mubr.bf16.mxu0 0
    %1169 = vmatmul.mubr.bf16.gmra.mrb[0].mxu0 %v1113
    %v1170 = vpop.f32.mrb[0].mxu0
    %v1171 = vadd.f32 %v137, %v1170
    %v1172 = vpop.f32.mrb[0].mxu0
    %v1173 = vpop.f32.mrb[0].mxu0
    %v1174 = vadd.f32 %v138, %v1173
    %v1175 = vpop.f32.mrb[0].mxu0
    %1176 = vmatprep.mubr.bf16.mxu0 0
    %1177 = vmatmul.mubr.bf16.gmra.mrb[0].mxu0 %v1116
    %v1178 = vpop.f32.mrb[0].mxu0
    %v1179 = vadd.f32 %v139, %v1178
    %v1180 = vpop.f32.mrb[0].mxu0
    %v1181 = vpop.f32.mrb[0].mxu0
    %v1182 = vadd.f32 %v140, %v1181
    %v1183 = vpop.f32.mrb[0].mxu0
    %1184 = vmatprep.mubr.bf16.mxu0 0
    %1185 = vmatmul.mubr.bf16.gmra.mrb[0].mxu0 %v1119
    %v1186 = vpop.f32.mrb[0].mxu0
    %v1187 = vadd.f32 %v141, %v1186
    %v1188 = vpop.f32.mrb[0].mxu0
    %v1189 = vpop.f32.mrb[0].mxu0
    %v1190 = vadd.f32 %v142, %v1189
    %v1191 = vpop.f32.mrb[0].mxu0
    %1192 = vmatprep.mubr.bf16.mxu0 0
    %1193 = vmatmul.mubr.bf16.gmra.mrb[0].mxu0 %v1122
    %v1194 = vpop.f32.mrb[0].mxu0
    %v1195 = vadd.f32 %v143, %v1194
    %v1196 = vpop.f32.mrb[0].mxu0
    %v1197 = vpop.f32.mrb[0].mxu0
    %v1198 = vadd.f32 %v144, %v1197
    %v1199 = vpop.f32.mrb[0].mxu0
    %1200 = vdwg.mxu0
    %v1201 = vsel %vm261, %v1171, -inf
    %1202 = vmax.xlane.f32.xlu0 %v1201
    %v1203 = vpop.xlane.xlu0 %1202
    %v1204 = vsel %vm261, %v1174, -inf
    %1205 = vmax.xlane.f32.xlu0 %v1204
    %v1206 = vpop.xlane.xlu0 %1205
    %v1207 = vsel %vm261, %v1179, -inf
    %1208 = vmax.xlane.f32.xlu0 %v1207
    %v1209 = vpop.xlane.xlu0 %1208
    %v1210 = vsel %vm261, %v1182, -inf
    %1211 = vmax.xlane.f32.xlu0 %v1210
    %v1212 = vpop.xlane.xlu0 %1211
    %v1213 = vsel %vm261, %v1187, -inf
    %1214 = vmax.xlane.f32.xlu0 %v1213
    %v1215 = vpop.xlane.xlu0 %1214
    %v1216 = vsel %vm261, %v1190, -inf
    %1217 = vmax.xlane.f32.xlu0 %v1216
    %v1218 = vpop.xlane.xlu0 %1217
    %v1219 = vsel %vm261, %v1195, -inf
    %1220 = vmax.xlane.f32.xlu0 %v1219
    %v1221 = vpop.xlane.xlu0 %1220
    %v1222 = vsel %vm261, %v1198, -inf
    %1223 = vmax.xlane.f32.xlu0 %v1222
    %v1224 = vpop.xlane.xlu0 %1223
    %v1225 = vsub.f32 %v1171, %v1203
    %v1226 = vsub.f32 %v1174, %v1206
    %v1227 = vsub.f32 %v1179, %v1209
    %v1228 = vsub.f32 %v1182, %v1212
    %v1229 = vsub.f32 %v1187, %v1215
    %v1230 = vsub.f32 %v1190, %v1218
    %v1231 = vsub.f32 %v1195, %v1221
    %v1232 = vsub.f32 %v1198, %v1224
    %v1233 = vmul.f32 %v1225, 1.442695
    %v1234 = vpow.pop %v1233
    %v1235 = vmul.f32 %v1226, 1.442695
    %v1236 = vpow.pop %v1235
    %v1237 = vmul.f32 %v1227, 1.442695
    %v1238 = vpow.pop %v1237
    %v1239 = vmul.f32 %v1228, 1.442695
    %v1240 = vpow.pop %v1239
    %v1241 = vmul.f32 %v1229, 1.442695
    %v1242 = vpow.pop %v1241
    %v1243 = vmul.f32 %v1230, 1.442695
    %v1244 = vpow.pop %v1243
    %v1245 = vmul.f32 %v1231, 1.442695
    %v1246 = vpow.pop %v1245
    %v1247 = vmul.f32 %v1232, 1.442695
    %v1248 = vpow.pop %v1247
    %v1249 = vsel %vm261, %v1234, 0.0
    %1250 = vadd.xlane.f32.xlu0 %v1249
    %v1251 = vpop.xlane.xlu0 %1250
    %v1252 = vsel %vm261, %v1236, 0.0
    %1253 = vadd.xlane.f32.xlu0 %v1252
    %v1254 = vpop.xlane.xlu0 %1253
    %v1255 = vsel %vm261, %v1238, 0.0
    %1256 = vadd.xlane.f32.xlu0 %v1255
    %v1257 = vpop.xlane.xlu0 %1256
    %v1258 = vsel %vm261, %v1240, 0.0
    %1259 = vadd.xlane.f32.xlu0 %v1258
    %v1260 = vpop.xlane.xlu0 %1259
    %v1261 = vsel %vm261, %v1242, 0.0
    %1262 = vadd.xlane.f32.xlu0 %v1261
    %v1263 = vpop.xlane.xlu0 %1262
    %v1264 = vsel %vm261, %v1244, 0.0
    %1265 = vadd.xlane.f32.xlu0 %v1264
    %v1266 = vpop.xlane.xlu0 %1265
    %v1267 = vsel %vm261, %v1246, 0.0
    %1268 = vadd.xlane.f32.xlu0 %v1267
    %v1269 = vpop.xlane.xlu0 %1268
    %v1270 = vsel %vm261, %v1248, 0.0
    %1271 = vadd.xlane.f32.xlu0 %v1270
    %v1272 = vpop.xlane.xlu0 %1271
    %v1273 = vpack.c.bf16 %v1236, %v1234
    %v1274 = vpack.c.bf16 %v1240, %v1238
    %v1275 = vpack.c.bf16 %v1244, %v1242
    %v1276 = vpack.c.bf16 %v1248, %v1246
    %1277 = vrot.lane.b32.xlu0 %v504, 96
    %v1278 = vpop.permute.xlu0 %1277
    %1279 = vrot.lane.b32.xlu0 %v506, 96
    %v1280 = vpop.permute.xlu0 %1279
    %1281 = vrot.lane.b32.xlu0 %v508, 96
    %v1282 = vpop.permute.xlu0 %1281
    %1283 = vrot.lane.b32.xlu0 %v510, 96
    %v1284 = vpop.permute.xlu0 %1283
    %v1290 = vsel %vm261, %v1273, 0
    %v1293 = vsel %vm261, %v1274, 0
    %v1296 = vsel %vm261, %v1275, 0
    %v1299 = vsel %vm261, %v1276, 0
    %1301 = vmatprep.subr.bf16.mxu0 0
    %1302 = vmatpush1.bf16.msra.mxu0 %v1278
    %1303 = vmatprep.subr.bf16.mxu0 0
    %1304 = vmatpush1.bf16.msra.mxu0 %v1280
    %1305 = vmatprep.subr.bf16.mxu0 0
    %1306 = vmatpush1.bf16.msra.mxu0 %v1282
    %1307 = vmatprep.subr.bf16.mxu0 0
    %1308 = vmatpush1.bf16.msra.mxu0 %v1284
    %1309 = vmatprep.subr.bf16.mxu0 0
    %1310 = vmatpush1.bf16.msra.mxu0 0
    %1311 = vmatprep.subr.bf16.mxu0 0
    %1312 = vmatpush1.bf16.msra.mxu0 0
    %1313 = vmatprep.subr.bf16.mxu0 0
    %1314 = vmatpush1.bf16.msra.mxu0 0
    %1315 = vmatprep.subr.bf16.mxu0 0
    %1316 = vmatpush1.bf16.msra.mxu0 0
    %1317 = vmatprep.subr.bf16.mxu0 0
    %1318 = vmatpush1.bf16.msra.mxu0 0
    %1319 = vmatprep.subr.bf16.mxu0 0
    %1320 = vmatpush1.bf16.msra.mxu0 0
    %1321 = vmatprep.subr.bf16.mxu0 0
    %1322 = vmatpush1.bf16.msra.mxu0 0
    %1323 = vmatprep.subr.bf16.mxu0 0
    %1324 = vmatpush1.bf16.msra.mxu0 0
    %1325 = vmatprep.subr.bf16.mxu0 0
    %1326 = vmatpush1.bf16.msra.mxu0 0
    %1327 = vmatprep.subr.bf16.mxu0 0
    %1328 = vmatpush1.bf16.msra.mxu0 0
    %1329 = vmatprep.subr.bf16.mxu0 0
    %1330 = vmatpush1.bf16.msra.mxu0 0
    %1331 = vmatprep.subr.bf16.mxu0 0
    %1332 = vmatpush1.bf16.msra.mxu0 0
    %1333 = vmatprep.mubr.bf16.mxu0 0
    %1334 = vmatmul.mubr.bf16.gmra.mrb[0].mxu0 %v1290
    %v1335 = vpop.f32.mrb[0].mxu0
    %v1336 = vadd.f32 0.0, %v1335
    %v1337 = vpop.f32.mrb[0].mxu0
    %v1338 = vpop.f32.mrb[0].mxu0
    %v1339 = vadd.f32 0.0, %v1338
    %v1340 = vpop.f32.mrb[0].mxu0
    %1341 = vmatprep.mubr.bf16.mxu0 0
    %1342 = vmatmul.mubr.bf16.gmra.mrb[0].mxu0 %v1293
    %v1343 = vpop.f32.mrb[0].mxu0
    %v1344 = vadd.f32 0.0, %v1343
    %v1345 = vpop.f32.mrb[0].mxu0
    %v1346 = vpop.f32.mrb[0].mxu0
    %v1347 = vadd.f32 0.0, %v1346
    %v1348 = vpop.f32.mrb[0].mxu0
    %1349 = vmatprep.mubr.bf16.mxu0 0
    %1350 = vmatmul.mubr.bf16.gmra.mrb[0].mxu0 %v1296
    %v1351 = vpop.f32.mrb[0].mxu0
    %v1352 = vadd.f32 0.0, %v1351
    %v1353 = vpop.f32.mrb[0].mxu0
    %v1354 = vpop.f32.mrb[0].mxu0
    %v1355 = vadd.f32 0.0, %v1354
    %v1356 = vpop.f32.mrb[0].mxu0
    %1357 = vmatprep.mubr.bf16.mxu0 0
    %1358 = vmatmul.mubr.bf16.gmra.mrb[0].mxu0 %v1299
    %v1359 = vpop.f32.mrb[0].mxu0
    %v1360 = vadd.f32 0.0, %v1359
    %v1361 = vpop.f32.mrb[0].mxu0
    %v1362 = vpop.f32.mrb[0].mxu0
    %v1363 = vadd.f32 0.0, %v1362
    %v1364 = vpop.f32.mrb[0].mxu0
    %1365 = vdwg.mxu0
    %v1366 = vrcp.pop %v1251
    %v1367 = vrcp.pop %v1254
    %v1368 = vrcp.pop %v1257
    %v1369 = vrcp.pop %v1260
    %v1370 = vrcp.pop %v1263
    %v1371 = vrcp.pop %v1266
    %v1372 = vrcp.pop %v1269
    %v1373 = vrcp.pop %v1272
    %v1374 = vmul.f32 %v1336, %v1366
    %v1375 = vmul.f32 %v1339, %v1367
    %v1376 = vmul.f32 %v1344, %v1368
    %v1377 = vmul.f32 %v1347, %v1369
    %v1378 = vmul.f32 %v1352, %v1370
    %v1379 = vmul.f32 %v1355, %v1371
    %v1380 = vmul.f32 %v1360, %v1372
    %v1381 = vmul.f32 %v1363, %v1373
    %1382 = vrot.lane.b32.xlu0 %v503, 80
    %v1383 = vpop.permute.xlu0 %1382
    %1384 = vrot.lane.b32.xlu0 %v505, 80
    %v1385 = vpop.permute.xlu0 %1384
    %1386 = vrot.lane.b32.xlu0 %v507, 80
    %v1387 = vpop.permute.xlu0 %1386
    %1388 = vrot.lane.b32.xlu0 %v509, 80
    %v1389 = vpop.permute.xlu0 %1388
    %1390 = vrot.lane.b32.xlu0 %v503, 16
    %v1391 = vpop.permute.xlu0 %1390
    %1392 = vrot.lane.b32.xlu0 %v505, 16
    %v1393 = vpop.permute.xlu0 %1392
    %1394 = vrot.lane.b32.xlu0 %v507, 16
    %v1395 = vpop.permute.xlu0 %1394
    %1396 = vrot.lane.b32.xlu0 %v509, 16
    %v1397 = vpop.permute.xlu0 %1396
    %v1399 = vsel %vm547, %v1383, 0
    %v1402 = vsel %vm547, %v1385, 0
    %v1405 = vsel %vm547, %v1387, 0
    %v1408 = vsel %vm547, %v1389, 0
    %v1411 = vsel %vm547, %v1391, 0
    %v1414 = vsel %vm547, %v1393, 0
    %v1417 = vsel %vm547, %v1395, 0
    %v1420 = vsel %vm547, %v1397, 0
    %1422 = vmatprep.subr.bf16.mxu0 0
    %1423 = vmatpush1.bf16.xpose.msra.mxu0 %v1411
    %1424 = vmatprep.subr.bf16.mxu0 0
    %1425 = vmatpush1.bf16.xpose.msra.mxu0 %v1414
    %1426 = vmatprep.subr.bf16.mxu0 0
    %1427 = vmatpush1.bf16.xpose.msra.mxu0 %v1417
    %1428 = vmatprep.subr.bf16.mxu0 0
    %1429 = vmatpush1.bf16.xpose.msra.mxu0 %v1420
    %1430 = vmatprep.subr.bf16.mxu0 0
    %1431 = vmatpush1.bf16.xpose.msra.mxu0 0
    %1432 = vmatprep.subr.bf16.mxu0 0
    %1433 = vmatpush1.bf16.xpose.msra.mxu0 0
    %1434 = vmatprep.subr.bf16.mxu0 0
    %1435 = vmatpush1.bf16.xpose.msra.mxu0 0
    %1436 = vmatprep.subr.bf16.mxu0 0
    %1437 = vmatpush1.bf16.xpose.msra.mxu0 0
    %1438 = vmatprep.subr.bf16.mxu0 0
    %1439 = vmatpush1.bf16.xpose.msra.mxu0 0
    %1440 = vmatprep.subr.bf16.mxu0 0
    %1441 = vmatpush1.bf16.xpose.msra.mxu0 0
    %1442 = vmatprep.subr.bf16.mxu0 0
    %1443 = vmatpush1.bf16.xpose.msra.mxu0 0
    %1444 = vmatprep.subr.bf16.mxu0 0
    %1445 = vmatpush1.bf16.xpose.msra.mxu0 0
    %1446 = vmatprep.subr.bf16.mxu0 0
    %1447 = vmatpush1.bf16.xpose.msra.mxu0 0
    %1448 = vmatprep.subr.bf16.mxu0 0
    %1449 = vmatpush1.bf16.xpose.msra.mxu0 0
    %1450 = vmatprep.subr.bf16.mxu0 0
    %1451 = vmatpush1.bf16.xpose.msra.mxu0 0
    %1452 = vmatprep.subr.bf16.mxu0 0
    %1453 = vmatpush1.bf16.xpose.msra.mxu0 0
    %1454 = vmatprep.mubr.bf16.mxu0 0
    %1455 = vmatmul.mubr.bf16.gmra.mrb[0].mxu0 %v1399
    %v1456 = vpop.f32.mrb[0].mxu0
    %v1457 = vadd.f32 %v145, %v1456
    %v1458 = vpop.f32.mrb[0].mxu0
    %v1459 = vpop.f32.mrb[0].mxu0
    %v1460 = vadd.f32 %v146, %v1459
    %v1461 = vpop.f32.mrb[0].mxu0
    %1462 = vmatprep.mubr.bf16.mxu0 0
    %1463 = vmatmul.mubr.bf16.gmra.mrb[0].mxu0 %v1402
    %v1464 = vpop.f32.mrb[0].mxu0
    %v1465 = vadd.f32 %v147, %v1464
    %v1466 = vpop.f32.mrb[0].mxu0
    %v1467 = vpop.f32.mrb[0].mxu0
    %v1468 = vadd.f32 %v148, %v1467
    %v1469 = vpop.f32.mrb[0].mxu0
    %1470 = vmatprep.mubr.bf16.mxu0 0
    %1471 = vmatmul.mubr.bf16.gmra.mrb[0].mxu0 %v1405
    %v1472 = vpop.f32.mrb[0].mxu0
    %v1473 = vadd.f32 %v149, %v1472
    %v1474 = vpop.f32.mrb[0].mxu0
    %v1475 = vpop.f32.mrb[0].mxu0
    %v1476 = vadd.f32 %v150, %v1475
    %v1477 = vpop.f32.mrb[0].mxu0
    %1478 = vmatprep.mubr.bf16.mxu0 0
    %1479 = vmatmul.mubr.bf16.gmra.mrb[0].mxu0 %v1408
    %v1480 = vpop.f32.mrb[0].mxu0
    %v1481 = vadd.f32 %v151, %v1480
    %v1482 = vpop.f32.mrb[0].mxu0
    %v1483 = vpop.f32.mrb[0].mxu0
    %v1484 = vadd.f32 %v152, %v1483
    %v1485 = vpop.f32.mrb[0].mxu0
    %1486 = vdwg.mxu0
    %v1487 = vsel %vm261, %v1457, -inf
    %1488 = vmax.xlane.f32.xlu0 %v1487
    %v1489 = vpop.xlane.xlu0 %1488
    %v1490 = vsel %vm261, %v1460, -inf
    %1491 = vmax.xlane.f32.xlu0 %v1490
    %v1492 = vpop.xlane.xlu0 %1491
    %v1493 = vsel %vm261, %v1465, -inf
    %1494 = vmax.xlane.f32.xlu0 %v1493
    %v1495 = vpop.xlane.xlu0 %1494
    %v1496 = vsel %vm261, %v1468, -inf
    %1497 = vmax.xlane.f32.xlu0 %v1496
    %v1498 = vpop.xlane.xlu0 %1497
    %v1499 = vsel %vm261, %v1473, -inf
    %1500 = vmax.xlane.f32.xlu0 %v1499
    %v1501 = vpop.xlane.xlu0 %1500
    %v1502 = vsel %vm261, %v1476, -inf
    %1503 = vmax.xlane.f32.xlu0 %v1502
    %v1504 = vpop.xlane.xlu0 %1503
    %v1505 = vsel %vm261, %v1481, -inf
    %1506 = vmax.xlane.f32.xlu0 %v1505
    %v1507 = vpop.xlane.xlu0 %1506
    %v1508 = vsel %vm261, %v1484, -inf
    %1509 = vmax.xlane.f32.xlu0 %v1508
    %v1510 = vpop.xlane.xlu0 %1509
    %v1511 = vsub.f32 %v1457, %v1489
    %v1512 = vsub.f32 %v1460, %v1492
    %v1513 = vsub.f32 %v1465, %v1495
    %v1514 = vsub.f32 %v1468, %v1498
    %v1515 = vsub.f32 %v1473, %v1501
    %v1516 = vsub.f32 %v1476, %v1504
    %v1517 = vsub.f32 %v1481, %v1507
    %v1518 = vsub.f32 %v1484, %v1510
    %v1519 = vmul.f32 %v1511, 1.442695
    %v1520 = vpow.pop %v1519
    %v1521 = vmul.f32 %v1512, 1.442695
    %v1522 = vpow.pop %v1521
    %v1523 = vmul.f32 %v1513, 1.442695
    %v1524 = vpow.pop %v1523
    %v1525 = vmul.f32 %v1514, 1.442695
    %v1526 = vpow.pop %v1525
    %v1527 = vmul.f32 %v1515, 1.442695
    %v1528 = vpow.pop %v1527
    %v1529 = vmul.f32 %v1516, 1.442695
    %v1530 = vpow.pop %v1529
    %v1531 = vmul.f32 %v1517, 1.442695
    %v1532 = vpow.pop %v1531
    %v1533 = vmul.f32 %v1518, 1.442695
    %v1534 = vpow.pop %v1533
    %v1535 = vsel %vm261, %v1520, 0.0
    %1536 = vadd.xlane.f32.xlu0 %v1535
    %v1537 = vpop.xlane.xlu0 %1536
    %v1538 = vsel %vm261, %v1522, 0.0
    %1539 = vadd.xlane.f32.xlu0 %v1538
    %v1540 = vpop.xlane.xlu0 %1539
    %v1541 = vsel %vm261, %v1524, 0.0
    %1542 = vadd.xlane.f32.xlu0 %v1541
    %v1543 = vpop.xlane.xlu0 %1542
    %v1544 = vsel %vm261, %v1526, 0.0
    %1545 = vadd.xlane.f32.xlu0 %v1544
    %v1546 = vpop.xlane.xlu0 %1545
    %v1547 = vsel %vm261, %v1528, 0.0
    %1548 = vadd.xlane.f32.xlu0 %v1547
    %v1549 = vpop.xlane.xlu0 %1548
    %v1550 = vsel %vm261, %v1530, 0.0
    %1551 = vadd.xlane.f32.xlu0 %v1550
    %v1552 = vpop.xlane.xlu0 %1551
    %v1553 = vsel %vm261, %v1532, 0.0
    %1554 = vadd.xlane.f32.xlu0 %v1553
    %v1555 = vpop.xlane.xlu0 %1554
    %v1556 = vsel %vm261, %v1534, 0.0
    %1557 = vadd.xlane.f32.xlu0 %v1556
    %v1558 = vpop.xlane.xlu0 %1557
    %v1559 = vpack.c.bf16 %v1522, %v1520
    %v1560 = vpack.c.bf16 %v1526, %v1524
    %v1561 = vpack.c.bf16 %v1530, %v1528
    %v1562 = vpack.c.bf16 %v1534, %v1532
    %1563 = vrot.lane.b32.xlu0 %v504, 80
    %v1564 = vpop.permute.xlu0 %1563
    %1565 = vrot.lane.b32.xlu0 %v506, 80
    %v1566 = vpop.permute.xlu0 %1565
    %1567 = vrot.lane.b32.xlu0 %v508, 80
    %v1568 = vpop.permute.xlu0 %1567
    %1569 = vrot.lane.b32.xlu0 %v510, 80
    %v1570 = vpop.permute.xlu0 %1569
    %v1576 = vsel %vm261, %v1559, 0
    %v1579 = vsel %vm261, %v1560, 0
    %v1582 = vsel %vm261, %v1561, 0
    %v1585 = vsel %vm261, %v1562, 0
    %1587 = vmatprep.subr.bf16.mxu0 0
    %1588 = vmatpush1.bf16.msra.mxu0 %v1564
    %1589 = vmatprep.subr.bf16.mxu0 0
    %1590 = vmatpush1.bf16.msra.mxu0 %v1566
    %1591 = vmatprep.subr.bf16.mxu0 0
    %1592 = vmatpush1.bf16.msra.mxu0 %v1568
    %1593 = vmatprep.subr.bf16.mxu0 0
    %1594 = vmatpush1.bf16.msra.mxu0 %v1570
    %1595 = vmatprep.subr.bf16.mxu0 0
    %1596 = vmatpush1.bf16.msra.mxu0 0
    %1597 = vmatprep.subr.bf16.mxu0 0
    %1598 = vmatpush1.bf16.msra.mxu0 0
    %1599 = vmatprep.subr.bf16.mxu0 0
    %1600 = vmatpush1.bf16.msra.mxu0 0
    %1601 = vmatprep.subr.bf16.mxu0 0
    %1602 = vmatpush1.bf16.msra.mxu0 0
    %1603 = vmatprep.subr.bf16.mxu0 0
    %1604 = vmatpush1.bf16.msra.mxu0 0
    %1605 = vmatprep.subr.bf16.mxu0 0
    %1606 = vmatpush1.bf16.msra.mxu0 0
    %1607 = vmatprep.subr.bf16.mxu0 0
    %1608 = vmatpush1.bf16.msra.mxu0 0
    %1609 = vmatprep.subr.bf16.mxu0 0
    %1610 = vmatpush1.bf16.msra.mxu0 0
    %1611 = vmatprep.subr.bf16.mxu0 0
    %1612 = vmatpush1.bf16.msra.mxu0 0
    %1613 = vmatprep.subr.bf16.mxu0 0
    %1614 = vmatpush1.bf16.msra.mxu0 0
    %1615 = vmatprep.subr.bf16.mxu0 0
    %1616 = vmatpush1.bf16.msra.mxu0 0
    %1617 = vmatprep.subr.bf16.mxu0 0
    %1618 = vmatpush1.bf16.msra.mxu0 0
    %1619 = vmatprep.mubr.bf16.mxu0 0
    %1620 = vmatmul.mubr.bf16.gmra.mrb[0].mxu0 %v1576
    %v1621 = vpop.f32.mrb[0].mxu0
    %v1622 = vadd.f32 0.0, %v1621
    %v1623 = vpop.f32.mrb[0].mxu0
    %v1624 = vpop.f32.mrb[0].mxu0
    %v1625 = vadd.f32 0.0, %v1624
    %v1626 = vpop.f32.mrb[0].mxu0
    %1627 = vmatprep.mubr.bf16.mxu0 0
    %1628 = vmatmul.mubr.bf16.gmra.mrb[0].mxu0 %v1579
    %v1629 = vpop.f32.mrb[0].mxu0
    %v1630 = vadd.f32 0.0, %v1629
    %v1631 = vpop.f32.mrb[0].mxu0
    %v1632 = vpop.f32.mrb[0].mxu0
    %v1633 = vadd.f32 0.0, %v1632
    %v1634 = vpop.f32.mrb[0].mxu0
    %1635 = vmatprep.mubr.bf16.mxu0 0
    %1636 = vmatmul.mubr.bf16.gmra.mrb[0].mxu0 %v1582
    %v1637 = vpop.f32.mrb[0].mxu0
    %v1638 = vadd.f32 0.0, %v1637
    %v1639 = vpop.f32.mrb[0].mxu0
    %v1640 = vpop.f32.mrb[0].mxu0
    %v1641 = vadd.f32 0.0, %v1640
    %v1642 = vpop.f32.mrb[0].mxu0
    %1643 = vmatprep.mubr.bf16.mxu0 0
    %1644 = vmatmul.mubr.bf16.gmra.mrb[0].mxu0 %v1585
    %v1645 = vpop.f32.mrb[0].mxu0
    %v1646 = vadd.f32 0.0, %v1645
    %v1647 = vpop.f32.mrb[0].mxu0
    %v1648 = vpop.f32.mrb[0].mxu0
    %v1649 = vadd.f32 0.0, %v1648
    %v1650 = vpop.f32.mrb[0].mxu0
    %1651 = vdwg.mxu0
    %v1652 = vrcp.pop %v1537
    %v1653 = vrcp.pop %v1540
    %v1654 = vrcp.pop %v1543
    %v1655 = vrcp.pop %v1546
    %v1656 = vrcp.pop %v1549
    %v1657 = vrcp.pop %v1552
    %v1658 = vrcp.pop %v1555
    %v1659 = vrcp.pop %v1558
    %v1660 = vmul.f32 %v1622, %v1652
    %v1661 = vmul.f32 %v1625, %v1653
    %v1662 = vmul.f32 %v1630, %v1654
    %v1663 = vmul.f32 %v1633, %v1655
    %v1664 = vmul.f32 %v1638, %v1656
    %v1665 = vmul.f32 %v1641, %v1657
    %v1666 = vmul.f32 %v1646, %v1658
    %v1667 = vmul.f32 %v1649, %v1659
    %1676 = vrot.lane.b32.xlu0 %v1088, 16
    %v1677 = vpop.permute.xlu0 %1676
    %1678 = vrot.lane.b32.xlu0 %v1089, 16
    %v1679 = vpop.permute.xlu0 %1678
    %1680 = vrot.lane.b32.xlu0 %v1090, 16
    %v1681 = vpop.permute.xlu0 %1680
    %1682 = vrot.lane.b32.xlu0 %v1091, 16
    %v1683 = vpop.permute.xlu0 %1682
    %1684 = vrot.lane.b32.xlu0 %v1092, 16
    %v1685 = vpop.permute.xlu0 %1684
    %1686 = vrot.lane.b32.xlu0 %v1093, 16
    %v1687 = vpop.permute.xlu0 %1686
    %1688 = vrot.lane.b32.xlu0 %v1094, 16
    %v1689 = vpop.permute.xlu0 %1688
    %1690 = vrot.lane.b32.xlu0 %v1095, 16
    %v1691 = vpop.permute.xlu0 %1690
    %1708 = vrot.lane.b32.xlu0 %v1374, 32
    %v1709 = vpop.permute.xlu0 %1708
    %1710 = vrot.lane.b32.xlu0 %v1375, 32
    %v1711 = vpop.permute.xlu0 %1710
    %1712 = vrot.lane.b32.xlu0 %v1376, 32
    %v1713 = vpop.permute.xlu0 %1712
    %1714 = vrot.lane.b32.xlu0 %v1377, 32
    %v1715 = vpop.permute.xlu0 %1714
    %1716 = vrot.lane.b32.xlu0 %v1378, 32
    %v1717 = vpop.permute.xlu0 %1716
    %1718 = vrot.lane.b32.xlu0 %v1379, 32
    %v1719 = vpop.permute.xlu0 %1718
    %1720 = vrot.lane.b32.xlu0 %v1380, 32
    %v1721 = vpop.permute.xlu0 %1720
    %1722 = vrot.lane.b32.xlu0 %v1381, 32
    %v1723 = vpop.permute.xlu0 %1722
    %1740 = vrot.lane.b32.xlu0 %v1660, 48
    %v1741 = vpop.permute.xlu0 %1740
    %1742 = vrot.lane.b32.xlu0 %v1661, 48
    %v1743 = vpop.permute.xlu0 %1742
    %1744 = vrot.lane.b32.xlu0 %v1662, 48
    %v1745 = vpop.permute.xlu0 %1744
    %1746 = vrot.lane.b32.xlu0 %v1663, 48
    %v1747 = vpop.permute.xlu0 %1746
    %1748 = vrot.lane.b32.xlu0 %v1664, 48
    %v1749 = vpop.permute.xlu0 %1748
    %1750 = vrot.lane.b32.xlu0 %v1665, 48
    %v1751 = vpop.permute.xlu0 %1750
    %1752 = vrot.lane.b32.xlu0 %v1666, 48
    %v1753 = vpop.permute.xlu0 %1752
    %1754 = vrot.lane.b32.xlu0 %v1667, 48
    %v1755 = vpop.permute.xlu0 %1754
    %v1764 = vsel %vm547, %v798, %v1677
    %v1765 = vsel %vm547, %v799, %v1679
    %v1766 = vsel %vm547, %v800, %v1681
    %v1767 = vsel %vm547, %v801, %v1683
    %v1768 = vsel %vm547, %v802, %v1685
    %v1769 = vsel %vm547, %v803, %v1687
    %v1770 = vsel %vm547, %v804, %v1689
    %v1771 = vsel %vm547, %v805, %v1691
    %vm1772 = vcmask 261120
    %v1773 = vsel %vm1772, %v1764, %v1709
    %v1774 = vsel %vm1772, %v1765, %v1711
    %v1775 = vsel %vm1772, %v1766, %v1713
    %v1776 = vsel %vm1772, %v1767, %v1715
    %v1777 = vsel %vm1772, %v1768, %v1717
    %v1778 = vsel %vm1772, %v1769, %v1719
    %v1779 = vsel %vm1772, %v1770, %v1721
    %v1780 = vsel %vm1772, %v1771, %v1723
    %vm1781 = vcmask 392192
    %v1782 = vsel %vm1781, %v1773, %v1741
    %v1783 = vsel %vm1781, %v1774, %v1743
    %v1784 = vsel %vm1781, %v1775, %v1745
    %v1785 = vsel %vm1781, %v1776, %v1747
    %v1786 = vsel %vm1781, %v1777, %v1749
    %v1787 = vsel %vm1781, %v1778, %v1751
    %v1788 = vsel %vm1781, %v1779, %v1753
    %v1789 = vsel %vm1781, %v1780, %v1755
    %v1790 = vpack.c.bf16 %v1783, %v1782
    %v1791 = vpack.c.bf16 %v1785, %v1784
    %v1792 = vpack.c.bf16 %v1787, %v1786
    %v1793 = vpack.c.bf16 %v1789, %v1788
    %1798 = vrot.lane.b32.xlu0 %v511, 64
    %v1799 = vpop.permute.xlu0 %1798
    %1800 = vrot.lane.b32.xlu0 %v513, 64
    %v1801 = vpop.permute.xlu0 %1800
    %1802 = vrot.lane.b32.xlu0 %v515, 64
    %v1803 = vpop.permute.xlu0 %1802
    %1804 = vrot.lane.b32.xlu0 %v517, 64
    %v1805 = vpop.permute.xlu0 %1804
    %v1807 = vsel %vm547, %v511, 0
    %v1810 = vsel %vm547, %v513, 0
    %v1813 = vsel %vm547, %v515, 0
    %v1816 = vsel %vm547, %v517, 0
    %v1819 = vsel %vm547, %v1799, 0
    %v1822 = vsel %vm547, %v1801, 0
    %v1825 = vsel %vm547, %v1803, 0
    %v1828 = vsel %vm547, %v1805, 0
    %1830 = vmatprep.subr.bf16.mxu0 0
    %1831 = vmatpush1.bf16.xpose.msra.mxu0 %v1819
    %1832 = vmatprep.subr.bf16.mxu0 0
    %1833 = vmatpush1.bf16.xpose.msra.mxu0 %v1822
    %1834 = vmatprep.subr.bf16.mxu0 0
    %1835 = vmatpush1.bf16.xpose.msra.mxu0 %v1825
    %1836 = vmatprep.subr.bf16.mxu0 0
    %1837 = vmatpush1.bf16.xpose.msra.mxu0 %v1828
    %1838 = vmatprep.subr.bf16.mxu0 0
    %1839 = vmatpush1.bf16.xpose.msra.mxu0 0
    %1840 = vmatprep.subr.bf16.mxu0 0
    %1841 = vmatpush1.bf16.xpose.msra.mxu0 0
    %1842 = vmatprep.subr.bf16.mxu0 0
    %1843 = vmatpush1.bf16.xpose.msra.mxu0 0
    %1844 = vmatprep.subr.bf16.mxu0 0
    %1845 = vmatpush1.bf16.xpose.msra.mxu0 0
    %1846 = vmatprep.subr.bf16.mxu0 0
    %1847 = vmatpush1.bf16.xpose.msra.mxu0 0
    %1848 = vmatprep.subr.bf16.mxu0 0
    %1849 = vmatpush1.bf16.xpose.msra.mxu0 0
    %1850 = vmatprep.subr.bf16.mxu0 0
    %1851 = vmatpush1.bf16.xpose.msra.mxu0 0
    %1852 = vmatprep.subr.bf16.mxu0 0
    %1853 = vmatpush1.bf16.xpose.msra.mxu0 0
    %1854 = vmatprep.subr.bf16.mxu0 0
    %1855 = vmatpush1.bf16.xpose.msra.mxu0 0
    %1856 = vmatprep.subr.bf16.mxu0 0
    %1857 = vmatpush1.bf16.xpose.msra.mxu0 0
    %1858 = vmatprep.subr.bf16.mxu0 0
    %1859 = vmatpush1.bf16.xpose.msra.mxu0 0
    %1860 = vmatprep.subr.bf16.mxu0 0
    %1861 = vmatpush1.bf16.xpose.msra.mxu0 0
    %1862 = vmatprep.mubr.bf16.mxu0 0
    %1863 = vmatmul.mubr.bf16.gmra.mrb[0].mxu0 %v1807
    %v1864 = vpop.f32.mrb[0].mxu0
    %v1865 = vadd.f32 %v121, %v1864
    %v1866 = vpop.f32.mrb[0].mxu0
    %v1867 = vpop.f32.mrb[0].mxu0
    %v1868 = vadd.f32 %v122, %v1867
    %v1869 = vpop.f32.mrb[0].mxu0
    %1870 = vmatprep.mubr.bf16.mxu0 0
    %1871 = vmatmul.mubr.bf16.gmra.mrb[0].mxu0 %v1810
    %v1872 = vpop.f32.mrb[0].mxu0
    %v1873 = vadd.f32 %v123, %v1872
    %v1874 = vpop.f32.mrb[0].mxu0
    %v1875 = vpop.f32.mrb[0].mxu0
    %v1876 = vadd.f32 %v124, %v1875
    %v1877 = vpop.f32.mrb[0].mxu0
    %1878 = vmatprep.mubr.bf16.mxu0 0
    %1879 = vmatmul.mubr.bf16.gmra.mrb[0].mxu0 %v1813
    %v1880 = vpop.f32.mrb[0].mxu0
    %v1881 = vadd.f32 %v125, %v1880
    %v1882 = vpop.f32.mrb[0].mxu0
    %v1883 = vpop.f32.mrb[0].mxu0
    %v1884 = vadd.f32 %v126, %v1883
    %v1885 = vpop.f32.mrb[0].mxu0
    %1886 = vmatprep.mubr.bf16.mxu0 0
    %1887 = vmatmul.mubr.bf16.gmra.mrb[0].mxu0 %v1816
    %v1888 = vpop.f32.mrb[0].mxu0
    %v1889 = vadd.f32 %v127, %v1888
    %v1890 = vpop.f32.mrb[0].mxu0
    %v1891 = vpop.f32.mrb[0].mxu0
    %v1892 = vadd.f32 %v128, %v1891
    %v1893 = vpop.f32.mrb[0].mxu0
    %1894 = vdwg.mxu0
    %v1895 = vsel %vm261, %v1865, -inf
    %1896 = vmax.xlane.f32.xlu0 %v1895
    %v1897 = vpop.xlane.xlu0 %1896
    %v1898 = vsel %vm261, %v1868, -inf
    %1899 = vmax.xlane.f32.xlu0 %v1898
    %v1900 = vpop.xlane.xlu0 %1899
    %v1901 = vsel %vm261, %v1873, -inf
    %1902 = vmax.xlane.f32.xlu0 %v1901
    %v1903 = vpop.xlane.xlu0 %1902
    %v1904 = vsel %vm261, %v1876, -inf
    %1905 = vmax.xlane.f32.xlu0 %v1904
    %v1906 = vpop.xlane.xlu0 %1905
    %v1907 = vsel %vm261, %v1881, -inf
    %1908 = vmax.xlane.f32.xlu0 %v1907
    %v1909 = vpop.xlane.xlu0 %1908
    %v1910 = vsel %vm261, %v1884, -inf
    %1911 = vmax.xlane.f32.xlu0 %v1910
    %v1912 = vpop.xlane.xlu0 %1911
    %v1913 = vsel %vm261, %v1889, -inf
    %1914 = vmax.xlane.f32.xlu0 %v1913
    %v1915 = vpop.xlane.xlu0 %1914
    %v1916 = vsel %vm261, %v1892, -inf
    %1917 = vmax.xlane.f32.xlu0 %v1916
    %v1918 = vpop.xlane.xlu0 %1917
    %v1919 = vsub.f32 %v1865, %v1897
    %v1920 = vsub.f32 %v1868, %v1900
    %v1921 = vsub.f32 %v1873, %v1903
    %v1922 = vsub.f32 %v1876, %v1906
    %v1923 = vsub.f32 %v1881, %v1909
    %v1924 = vsub.f32 %v1884, %v1912
    %v1925 = vsub.f32 %v1889, %v1915
    %v1926 = vsub.f32 %v1892, %v1918
    %v1927 = vmul.f32 %v1919, 1.442695
    %v1928 = vpow.pop %v1927
    %v1929 = vmul.f32 %v1920, 1.442695
    %v1930 = vpow.pop %v1929
    %v1931 = vmul.f32 %v1921, 1.442695
    %v1932 = vpow.pop %v1931
    %v1933 = vmul.f32 %v1922, 1.442695
    %v1934 = vpow.pop %v1933
    %v1935 = vmul.f32 %v1923, 1.442695
    %v1936 = vpow.pop %v1935
    %v1937 = vmul.f32 %v1924, 1.442695
    %v1938 = vpow.pop %v1937
    %v1939 = vmul.f32 %v1925, 1.442695
    %v1940 = vpow.pop %v1939
    %v1941 = vmul.f32 %v1926, 1.442695
    %v1942 = vpow.pop %v1941
    %v1943 = vsel %vm261, %v1928, 0.0
    %1944 = vadd.xlane.f32.xlu0 %v1943
    %v1945 = vpop.xlane.xlu0 %1944
    %v1946 = vsel %vm261, %v1930, 0.0
    %1947 = vadd.xlane.f32.xlu0 %v1946
    %v1948 = vpop.xlane.xlu0 %1947
    %v1949 = vsel %vm261, %v1932, 0.0
    %1950 = vadd.xlane.f32.xlu0 %v1949
    %v1951 = vpop.xlane.xlu0 %1950
    %v1952 = vsel %vm261, %v1934, 0.0
    %1953 = vadd.xlane.f32.xlu0 %v1952
    %v1954 = vpop.xlane.xlu0 %1953
    %v1955 = vsel %vm261, %v1936, 0.0
    %1956 = vadd.xlane.f32.xlu0 %v1955
    %v1957 = vpop.xlane.xlu0 %1956
    %v1958 = vsel %vm261, %v1938, 0.0
    %1959 = vadd.xlane.f32.xlu0 %v1958
    %v1960 = vpop.xlane.xlu0 %1959
    %v1961 = vsel %vm261, %v1940, 0.0
    %1962 = vadd.xlane.f32.xlu0 %v1961
    %v1963 = vpop.xlane.xlu0 %1962
    %v1964 = vsel %vm261, %v1942, 0.0
    %1965 = vadd.xlane.f32.xlu0 %v1964
    %v1966 = vpop.xlane.xlu0 %1965
    %v1967 = vpack.c.bf16 %v1930, %v1928
    %v1968 = vpack.c.bf16 %v1934, %v1932
    %v1969 = vpack.c.bf16 %v1938, %v1936
    %v1970 = vpack.c.bf16 %v1942, %v1940
    %v1972 = vsel %vm261, %v1967, 0
    %v1975 = vsel %vm261, %v1968, 0
    %v1978 = vsel %vm261, %v1969, 0
    %v1981 = vsel %vm261, %v1970, 0
    %1983 = vmatprep.subr.bf16.mxu0 0
    %1984 = vmatpush1.bf16.msra.mxu0 %v512
    %1985 = vmatprep.subr.bf16.mxu0 0
    %1986 = vmatpush1.bf16.msra.mxu0 %v514
    %1987 = vmatprep.subr.bf16.mxu0 0
    %1988 = vmatpush1.bf16.msra.mxu0 %v516
    %1989 = vmatprep.subr.bf16.mxu0 0
    %1990 = vmatpush1.bf16.msra.mxu0 %v518
    %1991 = vmatprep.subr.bf16.mxu0 0
    %1992 = vmatpush1.bf16.msra.mxu0 0
    %1993 = vmatprep.subr.bf16.mxu0 0
    %1994 = vmatpush1.bf16.msra.mxu0 0
    %1995 = vmatprep.subr.bf16.mxu0 0
    %1996 = vmatpush1.bf16.msra.mxu0 0
    %1997 = vmatprep.subr.bf16.mxu0 0
    %1998 = vmatpush1.bf16.msra.mxu0 0
    %1999 = vmatprep.subr.bf16.mxu0 0
    %2000 = vmatpush1.bf16.msra.mxu0 0
    %2001 = vmatprep.subr.bf16.mxu0 0
    %2002 = vmatpush1.bf16.msra.mxu0 0
    %2003 = vmatprep.subr.bf16.mxu0 0
    %2004 = vmatpush1.bf16.msra.mxu0 0
    %2005 = vmatprep.subr.bf16.mxu0 0
    %2006 = vmatpush1.bf16.msra.mxu0 0
    %2007 = vmatprep.subr.bf16.mxu0 0
    %2008 = vmatpush1.bf16.msra.mxu0 0
    %2009 = vmatprep.subr.bf16.mxu0 0
    %2010 = vmatpush1.bf16.msra.mxu0 0
    %2011 = vmatprep.subr.bf16.mxu0 0
    %2012 = vmatpush1.bf16.msra.mxu0 0
    %2013 = vmatprep.subr.bf16.mxu0 0
    %2014 = vmatpush1.bf16.msra.mxu0 0
    %2015 = vmatprep.mubr.bf16.mxu0 0
    %2016 = vmatmul.mubr.bf16.gmra.mrb[0].mxu0 %v1972
    %v2017 = vpop.f32.mrb[0].mxu0
    %v2018 = vadd.f32 0.0, %v2017
    %v2019 = vpop.f32.mrb[0].mxu0
    %v2020 = vpop.f32.mrb[0].mxu0
    %v2021 = vadd.f32 0.0, %v2020
    %v2022 = vpop.f32.mrb[0].mxu0
    %2023 = vmatprep.mubr.bf16.mxu0 0
    %2024 = vmatmul.mubr.bf16.gmra.mrb[0].mxu0 %v1975
    %v2025 = vpop.f32.mrb[0].mxu0
    %v2026 = vadd.f32 0.0, %v2025
    %v2027 = vpop.f32.mrb[0].mxu0
    %v2028 = vpop.f32.mrb[0].mxu0
    %v2029 = vadd.f32 0.0, %v2028
    %v2030 = vpop.f32.mrb[0].mxu0
    %2031 = vmatprep.mubr.bf16.mxu0 0
    %2032 = vmatmul.mubr.bf16.gmra.mrb[0].mxu0 %v1978
    %v2033 = vpop.f32.mrb[0].mxu0
    %v2034 = vadd.f32 0.0, %v2033
    %v2035 = vpop.f32.mrb[0].mxu0
    %v2036 = vpop.f32.mrb[0].mxu0
    %v2037 = vadd.f32 0.0, %v2036
    %v2038 = vpop.f32.mrb[0].mxu0
    %2039 = vmatprep.mubr.bf16.mxu0 0
    %2040 = vmatmul.mubr.bf16.gmra.mrb[0].mxu0 %v1981
    %v2041 = vpop.f32.mrb[0].mxu0
    %v2042 = vadd.f32 0.0, %v2041
    %v2043 = vpop.f32.mrb[0].mxu0
    %v2044 = vpop.f32.mrb[0].mxu0
    %v2045 = vadd.f32 0.0, %v2044
    %v2046 = vpop.f32.mrb[0].mxu0
    %2047 = vdwg.mxu0
    %v2048 = vrcp.pop %v1945
    %v2049 = vrcp.pop %v1948
    %v2050 = vrcp.pop %v1951
    %v2051 = vrcp.pop %v1954
    %v2052 = vrcp.pop %v1957
    %v2053 = vrcp.pop %v1960
    %v2054 = vrcp.pop %v1963
    %v2055 = vrcp.pop %v1966
    %v2056 = vmul.f32 %v2018, %v2048
    %v2057 = vmul.f32 %v2021, %v2049
    %v2058 = vmul.f32 %v2026, %v2050
    %v2059 = vmul.f32 %v2029, %v2051
    %v2060 = vmul.f32 %v2034, %v2052
    %v2061 = vmul.f32 %v2037, %v2053
    %v2062 = vmul.f32 %v2042, %v2054
    %v2063 = vmul.f32 %v2045, %v2055
    %2064 = vrot.lane.b32.xlu0 %v511, 112
    %v2065 = vpop.permute.xlu0 %2064
    %2066 = vrot.lane.b32.xlu0 %v513, 112
    %v2067 = vpop.permute.xlu0 %2066
    %2068 = vrot.lane.b32.xlu0 %v515, 112
    %v2069 = vpop.permute.xlu0 %2068
    %2070 = vrot.lane.b32.xlu0 %v517, 112
    %v2071 = vpop.permute.xlu0 %2070
    %2072 = vrot.lane.b32.xlu0 %v511, 48
    %v2073 = vpop.permute.xlu0 %2072
    %2074 = vrot.lane.b32.xlu0 %v513, 48
    %v2075 = vpop.permute.xlu0 %2074
    %2076 = vrot.lane.b32.xlu0 %v515, 48
    %v2077 = vpop.permute.xlu0 %2076
    %2078 = vrot.lane.b32.xlu0 %v517, 48
    %v2079 = vpop.permute.xlu0 %2078
    %v2081 = vsel %vm547, %v2065, 0
    %v2084 = vsel %vm547, %v2067, 0
    %v2087 = vsel %vm547, %v2069, 0
    %v2090 = vsel %vm547, %v2071, 0
    %v2093 = vsel %vm547, %v2073, 0
    %v2096 = vsel %vm547, %v2075, 0
    %v2099 = vsel %vm547, %v2077, 0
    %v2102 = vsel %vm547, %v2079, 0
    %2104 = vmatprep.subr.bf16.mxu0 0
    %2105 = vmatpush1.bf16.xpose.msra.mxu0 %v2093
    %2106 = vmatprep.subr.bf16.mxu0 0
    %2107 = vmatpush1.bf16.xpose.msra.mxu0 %v2096
    %2108 = vmatprep.subr.bf16.mxu0 0
    %2109 = vmatpush1.bf16.xpose.msra.mxu0 %v2099
    %2110 = vmatprep.subr.bf16.mxu0 0
    %2111 = vmatpush1.bf16.xpose.msra.mxu0 %v2102
    %2112 = vmatprep.subr.bf16.mxu0 0
    %2113 = vmatpush1.bf16.xpose.msra.mxu0 0
    %2114 = vmatprep.subr.bf16.mxu0 0
    %2115 = vmatpush1.bf16.xpose.msra.mxu0 0
    %2116 = vmatprep.subr.bf16.mxu0 0
    %2117 = vmatpush1.bf16.xpose.msra.mxu0 0
    %2118 = vmatprep.subr.bf16.mxu0 0
    %2119 = vmatpush1.bf16.xpose.msra.mxu0 0
    %2120 = vmatprep.subr.bf16.mxu0 0
    %2121 = vmatpush1.bf16.xpose.msra.mxu0 0
    %2122 = vmatprep.subr.bf16.mxu0 0
    %2123 = vmatpush1.bf16.xpose.msra.mxu0 0
    %2124 = vmatprep.subr.bf16.mxu0 0
    %2125 = vmatpush1.bf16.xpose.msra.mxu0 0
    %2126 = vmatprep.subr.bf16.mxu0 0
    %2127 = vmatpush1.bf16.xpose.msra.mxu0 0
    %2128 = vmatprep.subr.bf16.mxu0 0
    %2129 = vmatpush1.bf16.xpose.msra.mxu0 0
    %2130 = vmatprep.subr.bf16.mxu0 0
    %2131 = vmatpush1.bf16.xpose.msra.mxu0 0
    %2132 = vmatprep.subr.bf16.mxu0 0
    %2133 = vmatpush1.bf16.xpose.msra.mxu0 0
    %2134 = vmatprep.subr.bf16.mxu0 0
    %2135 = vmatpush1.bf16.xpose.msra.mxu0 0
    %2136 = vmatprep.mubr.bf16.mxu0 0
    %2137 = vmatmul.mubr.bf16.gmra.mrb[0].mxu0 %v2081
    %v2138 = vpop.f32.mrb[0].mxu0
    %v2139 = vadd.f32 %v129, %v2138
    %v2140 = vpop.f32.mrb[0].mxu0
    %v2141 = vpop.f32.mrb[0].mxu0
    %v2142 = vadd.f32 %v130, %v2141
    %v2143 = vpop.f32.mrb[0].mxu0
    %2144 = vmatprep.mubr.bf16.mxu0 0
    %2145 = vmatmul.mubr.bf16.gmra.mrb[0].mxu0 %v2084
    %v2146 = vpop.f32.mrb[0].mxu0
    %v2147 = vadd.f32 %v131, %v2146
    %v2148 = vpop.f32.mrb[0].mxu0
    %v2149 = vpop.f32.mrb[0].mxu0
    %v2150 = vadd.f32 %v132, %v2149
    %v2151 = vpop.f32.mrb[0].mxu0
    %2152 = vmatprep.mubr.bf16.mxu0 0
    %2153 = vmatmul.mubr.bf16.gmra.mrb[0].mxu0 %v2087
    %v2154 = vpop.f32.mrb[0].mxu0
    %v2155 = vadd.f32 %v133, %v2154
    %v2156 = vpop.f32.mrb[0].mxu0
    %v2157 = vpop.f32.mrb[0].mxu0
    %v2158 = vadd.f32 %v134, %v2157
    %v2159 = vpop.f32.mrb[0].mxu0
    %2160 = vmatprep.mubr.bf16.mxu0 0
    %2161 = vmatmul.mubr.bf16.gmra.mrb[0].mxu0 %v2090
    %v2162 = vpop.f32.mrb[0].mxu0
    %v2163 = vadd.f32 %v135, %v2162
    %v2164 = vpop.f32.mrb[0].mxu0
    %v2165 = vpop.f32.mrb[0].mxu0
    %v2166 = vadd.f32 %v136, %v2165
    %v2167 = vpop.f32.mrb[0].mxu0
    %2168 = vdwg.mxu0
    %v2169 = vsel %vm261, %v2139, -inf
    %2170 = vmax.xlane.f32.xlu0 %v2169
    %v2171 = vpop.xlane.xlu0 %2170
    %v2172 = vsel %vm261, %v2142, -inf
    %2173 = vmax.xlane.f32.xlu0 %v2172
    %v2174 = vpop.xlane.xlu0 %2173
    %v2175 = vsel %vm261, %v2147, -inf
    %2176 = vmax.xlane.f32.xlu0 %v2175
    %v2177 = vpop.xlane.xlu0 %2176
    %v2178 = vsel %vm261, %v2150, -inf
    %2179 = vmax.xlane.f32.xlu0 %v2178
    %v2180 = vpop.xlane.xlu0 %2179
    %v2181 = vsel %vm261, %v2155, -inf
    %2182 = vmax.xlane.f32.xlu0 %v2181
    %v2183 = vpop.xlane.xlu0 %2182
    %v2184 = vsel %vm261, %v2158, -inf
    %2185 = vmax.xlane.f32.xlu0 %v2184
    %v2186 = vpop.xlane.xlu0 %2185
    %v2187 = vsel %vm261, %v2163, -inf
    %2188 = vmax.xlane.f32.xlu0 %v2187
    %v2189 = vpop.xlane.xlu0 %2188
    %v2190 = vsel %vm261, %v2166, -inf
    %2191 = vmax.xlane.f32.xlu0 %v2190
    %v2192 = vpop.xlane.xlu0 %2191
    %v2193 = vsub.f32 %v2139, %v2171
    %v2194 = vsub.f32 %v2142, %v2174
    %v2195 = vsub.f32 %v2147, %v2177
    %v2196 = vsub.f32 %v2150, %v2180
    %v2197 = vsub.f32 %v2155, %v2183
    %v2198 = vsub.f32 %v2158, %v2186
    %v2199 = vsub.f32 %v2163, %v2189
    %v2200 = vsub.f32 %v2166, %v2192
    %v2201 = vmul.f32 %v2193, 1.442695
    %v2202 = vpow.pop %v2201
    %v2203 = vmul.f32 %v2194, 1.442695
    %v2204 = vpow.pop %v2203
    %v2205 = vmul.f32 %v2195, 1.442695
    %v2206 = vpow.pop %v2205
    %v2207 = vmul.f32 %v2196, 1.442695
    %v2208 = vpow.pop %v2207
    %v2209 = vmul.f32 %v2197, 1.442695
    %v2210 = vpow.pop %v2209
    %v2211 = vmul.f32 %v2198, 1.442695
    %v2212 = vpow.pop %v2211
    %v2213 = vmul.f32 %v2199, 1.442695
    %v2214 = vpow.pop %v2213
    %v2215 = vmul.f32 %v2200, 1.442695
    %v2216 = vpow.pop %v2215
    %v2217 = vsel %vm261, %v2202, 0.0
    %2218 = vadd.xlane.f32.xlu0 %v2217
    %v2219 = vpop.xlane.xlu0 %2218
    %v2220 = vsel %vm261, %v2204, 0.0
    %2221 = vadd.xlane.f32.xlu0 %v2220
    %v2222 = vpop.xlane.xlu0 %2221
    %v2223 = vsel %vm261, %v2206, 0.0
    %2224 = vadd.xlane.f32.xlu0 %v2223
    %v2225 = vpop.xlane.xlu0 %2224
    %v2226 = vsel %vm261, %v2208, 0.0
    %2227 = vadd.xlane.f32.xlu0 %v2226
    %v2228 = vpop.xlane.xlu0 %2227
    %v2229 = vsel %vm261, %v2210, 0.0
    %2230 = vadd.xlane.f32.xlu0 %v2229
    %v2231 = vpop.xlane.xlu0 %2230
    %v2232 = vsel %vm261, %v2212, 0.0
    %2233 = vadd.xlane.f32.xlu0 %v2232
    %v2234 = vpop.xlane.xlu0 %2233
    %v2235 = vsel %vm261, %v2214, 0.0
    %2236 = vadd.xlane.f32.xlu0 %v2235
    %v2237 = vpop.xlane.xlu0 %2236
    %v2238 = vsel %vm261, %v2216, 0.0
    %2239 = vadd.xlane.f32.xlu0 %v2238
    %v2240 = vpop.xlane.xlu0 %2239
    %v2241 = vpack.c.bf16 %v2204, %v2202
    %v2242 = vpack.c.bf16 %v2208, %v2206
    %v2243 = vpack.c.bf16 %v2212, %v2210
    %v2244 = vpack.c.bf16 %v2216, %v2214
    %2249 = vrot.lane.b32.xlu0 %v512, 112
    %v2250 = vpop.permute.xlu0 %2249
    %2251 = vrot.lane.b32.xlu0 %v514, 112
    %v2252 = vpop.permute.xlu0 %2251
    %2253 = vrot.lane.b32.xlu0 %v516, 112
    %v2254 = vpop.permute.xlu0 %2253
    %2255 = vrot.lane.b32.xlu0 %v518, 112
    %v2256 = vpop.permute.xlu0 %2255
    %v2262 = vsel %vm261, %v2241, 0
    %v2265 = vsel %vm261, %v2242, 0
    %v2268 = vsel %vm261, %v2243, 0
    %v2271 = vsel %vm261, %v2244, 0
    %2273 = vmatprep.subr.bf16.mxu0 0
    %2274 = vmatpush1.bf16.msra.mxu0 %v2250
    %2275 = vmatprep.subr.bf16.mxu0 0
    %2276 = vmatpush1.bf16.msra.mxu0 %v2252
    %2277 = vmatprep.subr.bf16.mxu0 0
    %2278 = vmatpush1.bf16.msra.mxu0 %v2254
    %2279 = vmatprep.subr.bf16.mxu0 0
    %2280 = vmatpush1.bf16.msra.mxu0 %v2256
    %2281 = vmatprep.subr.bf16.mxu0 0
    %2282 = vmatpush1.bf16.msra.mxu0 0
    %2283 = vmatprep.subr.bf16.mxu0 0
    %2284 = vmatpush1.bf16.msra.mxu0 0
    %2285 = vmatprep.subr.bf16.mxu0 0
    %2286 = vmatpush1.bf16.msra.mxu0 0
    %2287 = vmatprep.subr.bf16.mxu0 0
    %2288 = vmatpush1.bf16.msra.mxu0 0
    %2289 = vmatprep.subr.bf16.mxu0 0
    %2290 = vmatpush1.bf16.msra.mxu0 0
    %2291 = vmatprep.subr.bf16.mxu0 0
    %2292 = vmatpush1.bf16.msra.mxu0 0
    %2293 = vmatprep.subr.bf16.mxu0 0
    %2294 = vmatpush1.bf16.msra.mxu0 0
    %2295 = vmatprep.subr.bf16.mxu0 0
    %2296 = vmatpush1.bf16.msra.mxu0 0
    %2297 = vmatprep.subr.bf16.mxu0 0
    %2298 = vmatpush1.bf16.msra.mxu0 0
    %2299 = vmatprep.subr.bf16.mxu0 0
    %2300 = vmatpush1.bf16.msra.mxu0 0
    %2301 = vmatprep.subr.bf16.mxu0 0
    %2302 = vmatpush1.bf16.msra.mxu0 0
    %2303 = vmatprep.subr.bf16.mxu0 0
    %2304 = vmatpush1.bf16.msra.mxu0 0
    %2305 = vmatprep.mubr.bf16.mxu0 0
    %2306 = vmatmul.mubr.bf16.gmra.mrb[0].mxu0 %v2262
    %v2307 = vpop.f32.mrb[0].mxu0
    %v2308 = vadd.f32 0.0, %v2307
    %v2309 = vpop.f32.mrb[0].mxu0
    %v2310 = vpop.f32.mrb[0].mxu0
    %v2311 = vadd.f32 0.0, %v2310
    %v2312 = vpop.f32.mrb[0].mxu0
    %2313 = vmatprep.mubr.bf16.mxu0 0
    %2314 = vmatmul.mubr.bf16.gmra.mrb[0].mxu0 %v2265
    %v2315 = vpop.f32.mrb[0].mxu0
    %v2316 = vadd.f32 0.0, %v2315
    %v2317 = vpop.f32.mrb[0].mxu0
    %v2318 = vpop.f32.mrb[0].mxu0
    %v2319 = vadd.f32 0.0, %v2318
    %v2320 = vpop.f32.mrb[0].mxu0
    %2321 = vmatprep.mubr.bf16.mxu0 0
    %2322 = vmatmul.mubr.bf16.gmra.mrb[0].mxu0 %v2268
    %v2323 = vpop.f32.mrb[0].mxu0
    %v2324 = vadd.f32 0.0, %v2323
    %v2325 = vpop.f32.mrb[0].mxu0
    %v2326 = vpop.f32.mrb[0].mxu0
    %v2327 = vadd.f32 0.0, %v2326
    %v2328 = vpop.f32.mrb[0].mxu0
    %2329 = vmatprep.mubr.bf16.mxu0 0
    %2330 = vmatmul.mubr.bf16.gmra.mrb[0].mxu0 %v2271
    %v2331 = vpop.f32.mrb[0].mxu0
    %v2332 = vadd.f32 0.0, %v2331
    %v2333 = vpop.f32.mrb[0].mxu0
    %v2334 = vpop.f32.mrb[0].mxu0
    %v2335 = vadd.f32 0.0, %v2334
    %v2336 = vpop.f32.mrb[0].mxu0
    %2337 = vdwg.mxu0
    %v2338 = vrcp.pop %v2219
    %v2339 = vrcp.pop %v2222
    %v2340 = vrcp.pop %v2225
    %v2341 = vrcp.pop %v2228
    %v2342 = vrcp.pop %v2231
    %v2343 = vrcp.pop %v2234
    %v2344 = vrcp.pop %v2237
    %v2345 = vrcp.pop %v2240
    %v2346 = vmul.f32 %v2308, %v2338
    %v2347 = vmul.f32 %v2311, %v2339
    %v2348 = vmul.f32 %v2316, %v2340
    %v2349 = vmul.f32 %v2319, %v2341
    %v2350 = vmul.f32 %v2324, %v2342
    %v2351 = vmul.f32 %v2327, %v2343
    %v2352 = vmul.f32 %v2332, %v2344
    %v2353 = vmul.f32 %v2335, %v2345
    %2354 = vrot.lane.b32.xlu0 %v511, 96
    %v2355 = vpop.permute.xlu0 %2354
    %2356 = vrot.lane.b32.xlu0 %v513, 96
    %v2357 = vpop.permute.xlu0 %2356
    %2358 = vrot.lane.b32.xlu0 %v515, 96
    %v2359 = vpop.permute.xlu0 %2358
    %2360 = vrot.lane.b32.xlu0 %v517, 96
    %v2361 = vpop.permute.xlu0 %2360
    %2362 = vrot.lane.b32.xlu0 %v511, 32
    %v2363 = vpop.permute.xlu0 %2362
    %2364 = vrot.lane.b32.xlu0 %v513, 32
    %v2365 = vpop.permute.xlu0 %2364
    %2366 = vrot.lane.b32.xlu0 %v515, 32
    %v2367 = vpop.permute.xlu0 %2366
    %2368 = vrot.lane.b32.xlu0 %v517, 32
    %v2369 = vpop.permute.xlu0 %2368
    %v2371 = vsel %vm547, %v2355, 0
    %v2374 = vsel %vm547, %v2357, 0
    %v2377 = vsel %vm547, %v2359, 0
    %v2380 = vsel %vm547, %v2361, 0
    %v2383 = vsel %vm547, %v2363, 0
    %v2386 = vsel %vm547, %v2365, 0
    %v2389 = vsel %vm547, %v2367, 0
    %v2392 = vsel %vm547, %v2369, 0
    %2394 = vmatprep.subr.bf16.mxu0 0
    %2395 = vmatpush1.bf16.xpose.msra.mxu0 %v2383
    %2396 = vmatprep.subr.bf16.mxu0 0
    %2397 = vmatpush1.bf16.xpose.msra.mxu0 %v2386
    %2398 = vmatprep.subr.bf16.mxu0 0
    %2399 = vmatpush1.bf16.xpose.msra.mxu0 %v2389
    %2400 = vmatprep.subr.bf16.mxu0 0
    %2401 = vmatpush1.bf16.xpose.msra.mxu0 %v2392
    %2402 = vmatprep.subr.bf16.mxu0 0
    %2403 = vmatpush1.bf16.xpose.msra.mxu0 0
    %2404 = vmatprep.subr.bf16.mxu0 0
    %2405 = vmatpush1.bf16.xpose.msra.mxu0 0
    %2406 = vmatprep.subr.bf16.mxu0 0
    %2407 = vmatpush1.bf16.xpose.msra.mxu0 0
    %2408 = vmatprep.subr.bf16.mxu0 0
    %2409 = vmatpush1.bf16.xpose.msra.mxu0 0
    %2410 = vmatprep.subr.bf16.mxu0 0
    %2411 = vmatpush1.bf16.xpose.msra.mxu0 0
    %2412 = vmatprep.subr.bf16.mxu0 0
    %2413 = vmatpush1.bf16.xpose.msra.mxu0 0
    %2414 = vmatprep.subr.bf16.mxu0 0
    %2415 = vmatpush1.bf16.xpose.msra.mxu0 0
    %2416 = vmatprep.subr.bf16.mxu0 0
    %2417 = vmatpush1.bf16.xpose.msra.mxu0 0
    %2418 = vmatprep.subr.bf16.mxu0 0
    %2419 = vmatpush1.bf16.xpose.msra.mxu0 0
    %2420 = vmatprep.subr.bf16.mxu0 0
    %2421 = vmatpush1.bf16.xpose.msra.mxu0 0
    %2422 = vmatprep.subr.bf16.mxu0 0
    %2423 = vmatpush1.bf16.xpose.msra.mxu0 0
    %2424 = vmatprep.subr.bf16.mxu0 0
    %2425 = vmatpush1.bf16.xpose.msra.mxu0 0
    %2426 = vmatprep.mubr.bf16.mxu0 0
    %2427 = vmatmul.mubr.bf16.gmra.mrb[0].mxu0 %v2371
    %v2428 = vpop.f32.mrb[0].mxu0
    %v2429 = vadd.f32 %v137, %v2428
    %v2430 = vpop.f32.mrb[0].mxu0
    %v2431 = vpop.f32.mrb[0].mxu0
    %v2432 = vadd.f32 %v138, %v2431
    %v2433 = vpop.f32.mrb[0].mxu0
    %2434 = vmatprep.mubr.bf16.mxu0 0
    %2435 = vmatmul.mubr.bf16.gmra.mrb[0].mxu0 %v2374
    %v2436 = vpop.f32.mrb[0].mxu0
    %v2437 = vadd.f32 %v139, %v2436
    %v2438 = vpop.f32.mrb[0].mxu0
    %v2439 = vpop.f32.mrb[0].mxu0
    %v2440 = vadd.f32 %v140, %v2439
    %v2441 = vpop.f32.mrb[0].mxu0
    %2442 = vmatprep.mubr.bf16.mxu0 0
    %2443 = vmatmul.mubr.bf16.gmra.mrb[0].mxu0 %v2377
    %v2444 = vpop.f32.mrb[0].mxu0
    %v2445 = vadd.f32 %v141, %v2444
    %v2446 = vpop.f32.mrb[0].mxu0
    %v2447 = vpop.f32.mrb[0].mxu0
    %v2448 = vadd.f32 %v142, %v2447
    %v2449 = vpop.f32.mrb[0].mxu0
    %2450 = vmatprep.mubr.bf16.mxu0 0
    %2451 = vmatmul.mubr.bf16.gmra.mrb[0].mxu0 %v2380
    %v2452 = vpop.f32.mrb[0].mxu0
    %v2453 = vadd.f32 %v143, %v2452
    %v2454 = vpop.f32.mrb[0].mxu0
    %v2455 = vpop.f32.mrb[0].mxu0
    %v2456 = vadd.f32 %v144, %v2455
    %v2457 = vpop.f32.mrb[0].mxu0
    %2458 = vdwg.mxu0
    %v2459 = vsel %vm261, %v2429, -inf
    %2460 = vmax.xlane.f32.xlu0 %v2459
    %v2461 = vpop.xlane.xlu0 %2460
    %v2462 = vsel %vm261, %v2432, -inf
    %2463 = vmax.xlane.f32.xlu0 %v2462
    %v2464 = vpop.xlane.xlu0 %2463
    %v2465 = vsel %vm261, %v2437, -inf
    %2466 = vmax.xlane.f32.xlu0 %v2465
    %v2467 = vpop.xlane.xlu0 %2466
    %v2468 = vsel %vm261, %v2440, -inf
    %2469 = vmax.xlane.f32.xlu0 %v2468
    %v2470 = vpop.xlane.xlu0 %2469
    %v2471 = vsel %vm261, %v2445, -inf
    %2472 = vmax.xlane.f32.xlu0 %v2471
    %v2473 = vpop.xlane.xlu0 %2472
    %v2474 = vsel %vm261, %v2448, -inf
    %2475 = vmax.xlane.f32.xlu0 %v2474
    %v2476 = vpop.xlane.xlu0 %2475
    %v2477 = vsel %vm261, %v2453, -inf
    %2478 = vmax.xlane.f32.xlu0 %v2477
    %v2479 = vpop.xlane.xlu0 %2478
    %v2480 = vsel %vm261, %v2456, -inf
    %2481 = vmax.xlane.f32.xlu0 %v2480
    %v2482 = vpop.xlane.xlu0 %2481
    %v2483 = vsub.f32 %v2429, %v2461
    %v2484 = vsub.f32 %v2432, %v2464
    %v2485 = vsub.f32 %v2437, %v2467
    %v2486 = vsub.f32 %v2440, %v2470
    %v2487 = vsub.f32 %v2445, %v2473
    %v2488 = vsub.f32 %v2448, %v2476
    %v2489 = vsub.f32 %v2453, %v2479
    %v2490 = vsub.f32 %v2456, %v2482
    %v2491 = vmul.f32 %v2483, 1.442695
    %v2492 = vpow.pop %v2491
    %v2493 = vmul.f32 %v2484, 1.442695
    %v2494 = vpow.pop %v2493
    %v2495 = vmul.f32 %v2485, 1.442695
    %v2496 = vpow.pop %v2495
    %v2497 = vmul.f32 %v2486, 1.442695
    %v2498 = vpow.pop %v2497
    %v2499 = vmul.f32 %v2487, 1.442695
    %v2500 = vpow.pop %v2499
    %v2501 = vmul.f32 %v2488, 1.442695
    %v2502 = vpow.pop %v2501
    %v2503 = vmul.f32 %v2489, 1.442695
    %v2504 = vpow.pop %v2503
    %v2505 = vmul.f32 %v2490, 1.442695
    %v2506 = vpow.pop %v2505
    %v2507 = vsel %vm261, %v2492, 0.0
    %2508 = vadd.xlane.f32.xlu0 %v2507
    %v2509 = vpop.xlane.xlu0 %2508
    %v2510 = vsel %vm261, %v2494, 0.0
    %2511 = vadd.xlane.f32.xlu0 %v2510
    %v2512 = vpop.xlane.xlu0 %2511
    %v2513 = vsel %vm261, %v2496, 0.0
    %2514 = vadd.xlane.f32.xlu0 %v2513
    %v2515 = vpop.xlane.xlu0 %2514
    %v2516 = vsel %vm261, %v2498, 0.0
    %2517 = vadd.xlane.f32.xlu0 %v2516
    %v2518 = vpop.xlane.xlu0 %2517
    %v2519 = vsel %vm261, %v2500, 0.0
    %2520 = vadd.xlane.f32.xlu0 %v2519
    %v2521 = vpop.xlane.xlu0 %2520
    %v2522 = vsel %vm261, %v2502, 0.0
    %2523 = vadd.xlane.f32.xlu0 %v2522
    %v2524 = vpop.xlane.xlu0 %2523
    %v2525 = vsel %vm261, %v2504, 0.0
    %2526 = vadd.xlane.f32.xlu0 %v2525
    %v2527 = vpop.xlane.xlu0 %2526
    %v2528 = vsel %vm261, %v2506, 0.0
    %2529 = vadd.xlane.f32.xlu0 %v2528
    %v2530 = vpop.xlane.xlu0 %2529
    %v2531 = vpack.c.bf16 %v2494, %v2492
    %v2532 = vpack.c.bf16 %v2498, %v2496
    %v2533 = vpack.c.bf16 %v2502, %v2500
    %v2534 = vpack.c.bf16 %v2506, %v2504
    %2535 = vrot.lane.b32.xlu0 %v512, 96
    %v2536 = vpop.permute.xlu0 %2535
    %2537 = vrot.lane.b32.xlu0 %v514, 96
    %v2538 = vpop.permute.xlu0 %2537
    %2539 = vrot.lane.b32.xlu0 %v516, 96
    %v2540 = vpop.permute.xlu0 %2539
    %2541 = vrot.lane.b32.xlu0 %v518, 96
    %v2542 = vpop.permute.xlu0 %2541
    %v2548 = vsel %vm261, %v2531, 0
    %v2551 = vsel %vm261, %v2532, 0
    %v2554 = vsel %vm261, %v2533, 0
    %v2557 = vsel %vm261, %v2534, 0
    %2559 = vmatprep.subr.bf16.mxu0 0
    %2560 = vmatpush1.bf16.msra.mxu0 %v2536
    %2561 = vmatprep.subr.bf16.mxu0 0
    %2562 = vmatpush1.bf16.msra.mxu0 %v2538
    %2563 = vmatprep.subr.bf16.mxu0 0
    %2564 = vmatpush1.bf16.msra.mxu0 %v2540
    %2565 = vmatprep.subr.bf16.mxu0 0
    %2566 = vmatpush1.bf16.msra.mxu0 %v2542
    %2567 = vmatprep.subr.bf16.mxu0 0
    %2568 = vmatpush1.bf16.msra.mxu0 0
    %2569 = vmatprep.subr.bf16.mxu0 0
    %2570 = vmatpush1.bf16.msra.mxu0 0
    %2571 = vmatprep.subr.bf16.mxu0 0
    %2572 = vmatpush1.bf16.msra.mxu0 0
    %2573 = vmatprep.subr.bf16.mxu0 0
    %2574 = vmatpush1.bf16.msra.mxu0 0
    %2575 = vmatprep.subr.bf16.mxu0 0
    %2576 = vmatpush1.bf16.msra.mxu0 0
    %2577 = vmatprep.subr.bf16.mxu0 0
    %2578 = vmatpush1.bf16.msra.mxu0 0
    %2579 = vmatprep.subr.bf16.mxu0 0
    %2580 = vmatpush1.bf16.msra.mxu0 0
    %2581 = vmatprep.subr.bf16.mxu0 0
    %2582 = vmatpush1.bf16.msra.mxu0 0
    %2583 = vmatprep.subr.bf16.mxu0 0
    %2584 = vmatpush1.bf16.msra.mxu0 0
    %2585 = vmatprep.subr.bf16.mxu0 0
    %2586 = vmatpush1.bf16.msra.mxu0 0
    %2587 = vmatprep.subr.bf16.mxu0 0
    %2588 = vmatpush1.bf16.msra.mxu0 0
    %2589 = vmatprep.subr.bf16.mxu0 0
    %2590 = vmatpush1.bf16.msra.mxu0 0
    %2591 = vmatprep.mubr.bf16.mxu0 0
    %2592 = vmatmul.mubr.bf16.gmra.mrb[0].mxu0 %v2548
    %v2593 = vpop.f32.mrb[0].mxu0
    %v2594 = vadd.f32 0.0, %v2593
    %v2595 = vpop.f32.mrb[0].mxu0
    %v2596 = vpop.f32.mrb[0].mxu0
    %v2597 = vadd.f32 0.0, %v2596
    %v2598 = vpop.f32.mrb[0].mxu0
    %2599 = vmatprep.mubr.bf16.mxu0 0
    %2600 = vmatmul.mubr.bf16.gmra.mrb[0].mxu0 %v2551
    %v2601 = vpop.f32.mrb[0].mxu0
    %v2602 = vadd.f32 0.0, %v2601
    %v2603 = vpop.f32.mrb[0].mxu0
    %v2604 = vpop.f32.mrb[0].mxu0
    %v2605 = vadd.f32 0.0, %v2604
    %v2606 = vpop.f32.mrb[0].mxu0
    %2607 = vmatprep.mubr.bf16.mxu0 0
    %2608 = vmatmul.mubr.bf16.gmra.mrb[0].mxu0 %v2554
    %v2609 = vpop.f32.mrb[0].mxu0
    %v2610 = vadd.f32 0.0, %v2609
    %v2611 = vpop.f32.mrb[0].mxu0
    %v2612 = vpop.f32.mrb[0].mxu0
    %v2613 = vadd.f32 0.0, %v2612
    %v2614 = vpop.f32.mrb[0].mxu0
    %2615 = vmatprep.mubr.bf16.mxu0 0
    %2616 = vmatmul.mubr.bf16.gmra.mrb[0].mxu0 %v2557
    %v2617 = vpop.f32.mrb[0].mxu0
    %v2618 = vadd.f32 0.0, %v2617
    %v2619 = vpop.f32.mrb[0].mxu0
    %v2620 = vpop.f32.mrb[0].mxu0
    %v2621 = vadd.f32 0.0, %v2620
    %v2622 = vpop.f32.mrb[0].mxu0
    %2623 = vdwg.mxu0
    %v2624 = vrcp.pop %v2509
    %v2625 = vrcp.pop %v2512
    %v2626 = vrcp.pop %v2515
    %v2627 = vrcp.pop %v2518
    %v2628 = vrcp.pop %v2521
    %v2629 = vrcp.pop %v2524
    %v2630 = vrcp.pop %v2527
    %v2631 = vrcp.pop %v2530
    %v2632 = vmul.f32 %v2594, %v2624
    %v2633 = vmul.f32 %v2597, %v2625
    %v2634 = vmul.f32 %v2602, %v2626
    %v2635 = vmul.f32 %v2605, %v2627
    %v2636 = vmul.f32 %v2610, %v2628
    %v2637 = vmul.f32 %v2613, %v2629
    %v2638 = vmul.f32 %v2618, %v2630
    %v2639 = vmul.f32 %v2621, %v2631
    %2640 = vrot.lane.b32.xlu0 %v511, 80
    %v2641 = vpop.permute.xlu0 %2640
    %2642 = vrot.lane.b32.xlu0 %v513, 80
    %v2643 = vpop.permute.xlu0 %2642
    %2644 = vrot.lane.b32.xlu0 %v515, 80
    %v2645 = vpop.permute.xlu0 %2644
    %2646 = vrot.lane.b32.xlu0 %v517, 80
    %v2647 = vpop.permute.xlu0 %2646
    %2648 = vrot.lane.b32.xlu0 %v511, 16
    %v2649 = vpop.permute.xlu0 %2648
    %2650 = vrot.lane.b32.xlu0 %v513, 16
    %v2651 = vpop.permute.xlu0 %2650
    %2652 = vrot.lane.b32.xlu0 %v515, 16
    %v2653 = vpop.permute.xlu0 %2652
    %2654 = vrot.lane.b32.xlu0 %v517, 16
    %v2655 = vpop.permute.xlu0 %2654
    %v2657 = vsel %vm547, %v2641, 0
    %v2660 = vsel %vm547, %v2643, 0
    %v2663 = vsel %vm547, %v2645, 0
    %v2666 = vsel %vm547, %v2647, 0
    %v2669 = vsel %vm547, %v2649, 0
    %v2672 = vsel %vm547, %v2651, 0
    %v2675 = vsel %vm547, %v2653, 0
    %v2678 = vsel %vm547, %v2655, 0
    %2680 = vmatprep.subr.bf16.mxu0 0
    %2681 = vmatpush1.bf16.xpose.msra.mxu0 %v2669
    %2682 = vmatprep.subr.bf16.mxu0 0
    %2683 = vmatpush1.bf16.xpose.msra.mxu0 %v2672
    %2684 = vmatprep.subr.bf16.mxu0 0
    %2685 = vmatpush1.bf16.xpose.msra.mxu0 %v2675
    %2686 = vmatprep.subr.bf16.mxu0 0
    %2687 = vmatpush1.bf16.xpose.msra.mxu0 %v2678
    %2688 = vmatprep.subr.bf16.mxu0 0
    %2689 = vmatpush1.bf16.xpose.msra.mxu0 0
    %2690 = vmatprep.subr.bf16.mxu0 0
    %2691 = vmatpush1.bf16.xpose.msra.mxu0 0
    %2692 = vmatprep.subr.bf16.mxu0 0
    %2693 = vmatpush1.bf16.xpose.msra.mxu0 0
    %2694 = vmatprep.subr.bf16.mxu0 0
    %2695 = vmatpush1.bf16.xpose.msra.mxu0 0
    %2696 = vmatprep.subr.bf16.mxu0 0
    %2697 = vmatpush1.bf16.xpose.msra.mxu0 0
    %2698 = vmatprep.subr.bf16.mxu0 0
    %2699 = vmatpush1.bf16.xpose.msra.mxu0 0
    %2700 = vmatprep.subr.bf16.mxu0 0
    %2701 = vmatpush1.bf16.xpose.msra.mxu0 0
    %2702 = vmatprep.subr.bf16.mxu0 0
    %2703 = vmatpush1.bf16.xpose.msra.mxu0 0
    %2704 = vmatprep.subr.bf16.mxu0 0
    %2705 = vmatpush1.bf16.xpose.msra.mxu0 0
    %2706 = vmatprep.subr.bf16.mxu0 0
    %2707 = vmatpush1.bf16.xpose.msra.mxu0 0
    %2708 = vmatprep.subr.bf16.mxu0 0
    %2709 = vmatpush1.bf16.xpose.msra.mxu0 0
    %2710 = vmatprep.subr.bf16.mxu0 0
    %2711 = vmatpush1.bf16.xpose.msra.mxu0 0
    %2712 = vmatprep.mubr.bf16.mxu0 0
    %2713 = vmatmul.mubr.bf16.gmra.mrb[0].mxu0 %v2657
    %v2714 = vpop.f32.mrb[0].mxu0
    %v2715 = vadd.f32 %v145, %v2714
    %v2716 = vpop.f32.mrb[0].mxu0
    %v2717 = vpop.f32.mrb[0].mxu0
    %v2718 = vadd.f32 %v146, %v2717
    %v2719 = vpop.f32.mrb[0].mxu0
    %2720 = vmatprep.mubr.bf16.mxu0 0
    %2721 = vmatmul.mubr.bf16.gmra.mrb[0].mxu0 %v2660
    %v2722 = vpop.f32.mrb[0].mxu0
    %v2723 = vadd.f32 %v147, %v2722
    %v2724 = vpop.f32.mrb[0].mxu0
    %v2725 = vpop.f32.mrb[0].mxu0
    %v2726 = vadd.f32 %v148, %v2725
    %v2727 = vpop.f32.mrb[0].mxu0
    %2728 = vmatprep.mubr.bf16.mxu0 0
    %2729 = vmatmul.mubr.bf16.gmra.mrb[0].mxu0 %v2663
    %v2730 = vpop.f32.mrb[0].mxu0
    %v2731 = vadd.f32 %v149, %v2730
    %v2732 = vpop.f32.mrb[0].mxu0
    %v2733 = vpop.f32.mrb[0].mxu0
    %v2734 = vadd.f32 %v150, %v2733
    %v2735 = vpop.f32.mrb[0].mxu0
    %2736 = vmatprep.mubr.bf16.mxu0 0
    %2737 = vmatmul.mubr.bf16.gmra.mrb[0].mxu0 %v2666
    %v2738 = vpop.f32.mrb[0].mxu0
    %v2739 = vadd.f32 %v151, %v2738
    %v2740 = vpop.f32.mrb[0].mxu0
    %v2741 = vpop.f32.mrb[0].mxu0
    %v2742 = vadd.f32 %v152, %v2741
    %v2743 = vpop.f32.mrb[0].mxu0
    %2744 = vdwg.mxu0
    %v2745 = vsel %vm261, %v2715, -inf
    %2746 = vmax.xlane.f32.xlu0 %v2745
    %v2747 = vpop.xlane.xlu0 %2746
    %v2748 = vsel %vm261, %v2718, -inf
    %2749 = vmax.xlane.f32.xlu0 %v2748
    %v2750 = vpop.xlane.xlu0 %2749
    %v2751 = vsel %vm261, %v2723, -inf
    %2752 = vmax.xlane.f32.xlu0 %v2751
    %v2753 = vpop.xlane.xlu0 %2752
    %v2754 = vsel %vm261, %v2726, -inf
    %2755 = vmax.xlane.f32.xlu0 %v2754
    %v2756 = vpop.xlane.xlu0 %2755
    %v2757 = vsel %vm261, %v2731, -inf
    %2758 = vmax.xlane.f32.xlu0 %v2757
    %v2759 = vpop.xlane.xlu0 %2758
    %v2760 = vsel %vm261, %v2734, -inf
    %2761 = vmax.xlane.f32.xlu0 %v2760
    %v2762 = vpop.xlane.xlu0 %2761
    %v2763 = vsel %vm261, %v2739, -inf
    %2764 = vmax.xlane.f32.xlu0 %v2763
    %v2765 = vpop.xlane.xlu0 %2764
    %v2766 = vsel %vm261, %v2742, -inf
    %2767 = vmax.xlane.f32.xlu0 %v2766
    %v2768 = vpop.xlane.xlu0 %2767
    %v2769 = vsub.f32 %v2715, %v2747
    %v2770 = vsub.f32 %v2718, %v2750
    %v2771 = vsub.f32 %v2723, %v2753
    %v2772 = vsub.f32 %v2726, %v2756
    %v2773 = vsub.f32 %v2731, %v2759
    %v2774 = vsub.f32 %v2734, %v2762
    %v2775 = vsub.f32 %v2739, %v2765
    %v2776 = vsub.f32 %v2742, %v2768
    %v2777 = vmul.f32 %v2769, 1.442695
    %v2778 = vpow.pop %v2777
    %v2779 = vmul.f32 %v2770, 1.442695
    %v2780 = vpow.pop %v2779
    %v2781 = vmul.f32 %v2771, 1.442695
    %v2782 = vpow.pop %v2781
    %v2783 = vmul.f32 %v2772, 1.442695
    %v2784 = vpow.pop %v2783
    %v2785 = vmul.f32 %v2773, 1.442695
    %v2786 = vpow.pop %v2785
    %v2787 = vmul.f32 %v2774, 1.442695
    %v2788 = vpow.pop %v2787
    %v2789 = vmul.f32 %v2775, 1.442695
    %v2790 = vpow.pop %v2789
    %v2791 = vmul.f32 %v2776, 1.442695
    %v2792 = vpow.pop %v2791
    %v2793 = vsel %vm261, %v2778, 0.0
    %2794 = vadd.xlane.f32.xlu0 %v2793
    %v2795 = vpop.xlane.xlu0 %2794
    %v2796 = vsel %vm261, %v2780, 0.0
    %2797 = vadd.xlane.f32.xlu0 %v2796
    %v2798 = vpop.xlane.xlu0 %2797
    %v2799 = vsel %vm261, %v2782, 0.0
    %2800 = vadd.xlane.f32.xlu0 %v2799
    %v2801 = vpop.xlane.xlu0 %2800
    %v2802 = vsel %vm261, %v2784, 0.0
    %2803 = vadd.xlane.f32.xlu0 %v2802
    %v2804 = vpop.xlane.xlu0 %2803
    %v2805 = vsel %vm261, %v2786, 0.0
    %2806 = vadd.xlane.f32.xlu0 %v2805
    %v2807 = vpop.xlane.xlu0 %2806
    %v2808 = vsel %vm261, %v2788, 0.0
    %2809 = vadd.xlane.f32.xlu0 %v2808
    %v2810 = vpop.xlane.xlu0 %2809
    %v2811 = vsel %vm261, %v2790, 0.0
    %2812 = vadd.xlane.f32.xlu0 %v2811
    %v2813 = vpop.xlane.xlu0 %2812
    %v2814 = vsel %vm261, %v2792, 0.0
    %2815 = vadd.xlane.f32.xlu0 %v2814
    %v2816 = vpop.xlane.xlu0 %2815
    %v2817 = vpack.c.bf16 %v2780, %v2778
    %v2818 = vpack.c.bf16 %v2784, %v2782
    %v2819 = vpack.c.bf16 %v2788, %v2786
    %v2820 = vpack.c.bf16 %v2792, %v2790
    %2821 = vrot.lane.b32.xlu0 %v512, 80
    %v2822 = vpop.permute.xlu0 %2821
    %2823 = vrot.lane.b32.xlu0 %v514, 80
    %v2824 = vpop.permute.xlu0 %2823
    %2825 = vrot.lane.b32.xlu0 %v516, 80
    %v2826 = vpop.permute.xlu0 %2825
    %2827 = vrot.lane.b32.xlu0 %v518, 80
    %v2828 = vpop.permute.xlu0 %2827
    %v2834 = vsel %vm261, %v2817, 0
    %v2837 = vsel %vm261, %v2818, 0
    %v2840 = vsel %vm261, %v2819, 0
    %v2843 = vsel %vm261, %v2820, 0
    %2845 = vmatprep.subr.bf16.mxu0 0
    %2846 = vmatpush1.bf16.msra.mxu0 %v2822
    %2847 = vmatprep.subr.bf16.mxu0 0
    %2848 = vmatpush1.bf16.msra.mxu0 %v2824
    %2849 = vmatprep.subr.bf16.mxu0 0
    %2850 = vmatpush1.bf16.msra.mxu0 %v2826
    %2851 = vmatprep.subr.bf16.mxu0 0
    %2852 = vmatpush1.bf16.msra.mxu0 %v2828
    %2853 = vmatprep.subr.bf16.mxu0 0
    %2854 = vmatpush1.bf16.msra.mxu0 0
    %2855 = vmatprep.subr.bf16.mxu0 0
    %2856 = vmatpush1.bf16.msra.mxu0 0
    %2857 = vmatprep.subr.bf16.mxu0 0
    %2858 = vmatpush1.bf16.msra.mxu0 0
    %2859 = vmatprep.subr.bf16.mxu0 0
    %2860 = vmatpush1.bf16.msra.mxu0 0
    %2861 = vmatprep.subr.bf16.mxu0 0
    %2862 = vmatpush1.bf16.msra.mxu0 0
    %2863 = vmatprep.subr.bf16.mxu0 0
    %2864 = vmatpush1.bf16.msra.mxu0 0
    %2865 = vmatprep.subr.bf16.mxu0 0
    %2866 = vmatpush1.bf16.msra.mxu0 0
    %2867 = vmatprep.subr.bf16.mxu0 0
    %2868 = vmatpush1.bf16.msra.mxu0 0
    %2869 = vmatprep.subr.bf16.mxu0 0
    %2870 = vmatpush1.bf16.msra.mxu0 0
    %2871 = vmatprep.subr.bf16.mxu0 0
    %2872 = vmatpush1.bf16.msra.mxu0 0
    %2873 = vmatprep.subr.bf16.mxu0 0
    %2874 = vmatpush1.bf16.msra.mxu0 0
    %2875 = vmatprep.subr.bf16.mxu0 0
    %2876 = vmatpush1.bf16.msra.mxu0 0
    %2877 = vmatprep.mubr.bf16.mxu0 0
    %2878 = vmatmul.mubr.bf16.gmra.mrb[0].mxu0 %v2834
    %v2879 = vpop.f32.mrb[0].mxu0
    %v2880 = vadd.f32 0.0, %v2879
    %v2881 = vpop.f32.mrb[0].mxu0
    %v2882 = vpop.f32.mrb[0].mxu0
    %v2883 = vadd.f32 0.0, %v2882
    %v2884 = vpop.f32.mrb[0].mxu0
    %2885 = vmatprep.mubr.bf16.mxu0 0
    %2886 = vmatmul.mubr.bf16.gmra.mrb[0].mxu0 %v2837
    %v2887 = vpop.f32.mrb[0].mxu0
    %v2888 = vadd.f32 0.0, %v2887
    %v2889 = vpop.f32.mrb[0].mxu0
    %v2890 = vpop.f32.mrb[0].mxu0
    %v2891 = vadd.f32 0.0, %v2890
    %v2892 = vpop.f32.mrb[0].mxu0
    %2893 = vmatprep.mubr.bf16.mxu0 0
    %2894 = vmatmul.mubr.bf16.gmra.mrb[0].mxu0 %v2840
    %v2895 = vpop.f32.mrb[0].mxu0
    %v2896 = vadd.f32 0.0, %v2895
    %v2897 = vpop.f32.mrb[0].mxu0
    %v2898 = vpop.f32.mrb[0].mxu0
    %v2899 = vadd.f32 0.0, %v2898
    %v2900 = vpop.f32.mrb[0].mxu0
    %2901 = vmatprep.mubr.bf16.mxu0 0
    %2902 = vmatmul.mubr.bf16.gmra.mrb[0].mxu0 %v2843
    %v2903 = vpop.f32.mrb[0].mxu0
    %v2904 = vadd.f32 0.0, %v2903
    %v2905 = vpop.f32.mrb[0].mxu0
    %v2906 = vpop.f32.mrb[0].mxu0
    %v2907 = vadd.f32 0.0, %v2906
    %v2908 = vpop.f32.mrb[0].mxu0
    %2909 = vdwg.mxu0
    %v2910 = vrcp.pop %v2795
    %v2911 = vrcp.pop %v2798
    %v2912 = vrcp.pop %v2801
    %v2913 = vrcp.pop %v2804
    %v2914 = vrcp.pop %v2807
    %v2915 = vrcp.pop %v2810
    %v2916 = vrcp.pop %v2813
    %v2917 = vrcp.pop %v2816
    %v2918 = vmul.f32 %v2880, %v2910
    %v2919 = vmul.f32 %v2883, %v2911
    %v2920 = vmul.f32 %v2888, %v2912
    %v2921 = vmul.f32 %v2891, %v2913
    %v2922 = vmul.f32 %v2896, %v2914
    %v2923 = vmul.f32 %v2899, %v2915
    %v2924 = vmul.f32 %v2904, %v2916
    %v2925 = vmul.f32 %v2907, %v2917
    %2934 = vrot.lane.b32.xlu0 %v2346, 16
    %v2935 = vpop.permute.xlu0 %2934
    %2936 = vrot.lane.b32.xlu0 %v2347, 16
    %v2937 = vpop.permute.xlu0 %2936
    %2938 = vrot.lane.b32.xlu0 %v2348, 16
    %v2939 = vpop.permute.xlu0 %2938
    %2940 = vrot.lane.b32.xlu0 %v2349, 16
    %v2941 = vpop.permute.xlu0 %2940
    %2942 = vrot.lane.b32.xlu0 %v2350, 16
    %v2943 = vpop.permute.xlu0 %2942
    %2944 = vrot.lane.b32.xlu0 %v2351, 16
    %v2945 = vpop.permute.xlu0 %2944
    %2946 = vrot.lane.b32.xlu0 %v2352, 16
    %v2947 = vpop.permute.xlu0 %2946
    %2948 = vrot.lane.b32.xlu0 %v2353, 16
    %v2949 = vpop.permute.xlu0 %2948
    %2966 = vrot.lane.b32.xlu0 %v2632, 32
    %v2967 = vpop.permute.xlu0 %2966
    %2968 = vrot.lane.b32.xlu0 %v2633, 32
    %v2969 = vpop.permute.xlu0 %2968
    %2970 = vrot.lane.b32.xlu0 %v2634, 32
    %v2971 = vpop.permute.xlu0 %2970
    %2972 = vrot.lane.b32.xlu0 %v2635, 32
    %v2973 = vpop.permute.xlu0 %2972
    %2974 = vrot.lane.b32.xlu0 %v2636, 32
    %v2975 = vpop.permute.xlu0 %2974
    %2976 = vrot.lane.b32.xlu0 %v2637, 32
    %v2977 = vpop.permute.xlu0 %2976
    %2978 = vrot.lane.b32.xlu0 %v2638, 32
    %v2979 = vpop.permute.xlu0 %2978
    %2980 = vrot.lane.b32.xlu0 %v2639, 32
    %v2981 = vpop.permute.xlu0 %2980
    %2998 = vrot.lane.b32.xlu0 %v2918, 48
    %v2999 = vpop.permute.xlu0 %2998
    %3000 = vrot.lane.b32.xlu0 %v2919, 48
    %v3001 = vpop.permute.xlu0 %3000
    %3002 = vrot.lane.b32.xlu0 %v2920, 48
    %v3003 = vpop.permute.xlu0 %3002
    %3004 = vrot.lane.b32.xlu0 %v2921, 48
    %v3005 = vpop.permute.xlu0 %3004
    %3006 = vrot.lane.b32.xlu0 %v2922, 48
    %v3007 = vpop.permute.xlu0 %3006
    %3008 = vrot.lane.b32.xlu0 %v2923, 48
    %v3009 = vpop.permute.xlu0 %3008
    %3010 = vrot.lane.b32.xlu0 %v2924, 48
    %v3011 = vpop.permute.xlu0 %3010
    %3012 = vrot.lane.b32.xlu0 %v2925, 48
    %v3013 = vpop.permute.xlu0 %3012
    %v3022 = vsel %vm547, %v2056, %v2935
    %v3023 = vsel %vm547, %v2057, %v2937
    %v3024 = vsel %vm547, %v2058, %v2939
    %v3025 = vsel %vm547, %v2059, %v2941
    %v3026 = vsel %vm547, %v2060, %v2943
    %v3027 = vsel %vm547, %v2061, %v2945
    %v3028 = vsel %vm547, %v2062, %v2947
    %v3029 = vsel %vm547, %v2063, %v2949
    %v3030 = vsel %vm1772, %v3022, %v2967
    %v3031 = vsel %vm1772, %v3023, %v2969
    %v3032 = vsel %vm1772, %v3024, %v2971
    %v3033 = vsel %vm1772, %v3025, %v2973
    %v3034 = vsel %vm1772, %v3026, %v2975
    %v3035 = vsel %vm1772, %v3027, %v2977
    %v3036 = vsel %vm1772, %v3028, %v2979
    %v3037 = vsel %vm1772, %v3029, %v2981
    %v3038 = vsel %vm1781, %v3030, %v2999
    %v3039 = vsel %vm1781, %v3031, %v3001
    %v3040 = vsel %vm1781, %v3032, %v3003
    %v3041 = vsel %vm1781, %v3033, %v3005
    %v3042 = vsel %vm1781, %v3034, %v3007
    %v3043 = vsel %vm1781, %v3035, %v3009
    %v3044 = vsel %vm1781, %v3036, %v3011
    %v3045 = vsel %vm1781, %v3037, %v3013
    %v3046 = vpack.c.bf16 %v3039, %v3038
    %v3047 = vpack.c.bf16 %v3041, %v3040
    %v3048 = vpack.c.bf16 %v3043, %v3042
    %v3049 = vpack.c.bf16 %v3045, %v3044
    %3054 = vrot.lane.b32.xlu0 %v519, 64
    %v3055 = vpop.permute.xlu0 %3054
    %3056 = vrot.lane.b32.xlu0 %v521, 64
    %v3057 = vpop.permute.xlu0 %3056
    %3058 = vrot.lane.b32.xlu0 %v523, 64
    %v3059 = vpop.permute.xlu0 %3058
    %3060 = vrot.lane.b32.xlu0 %v525, 64
    %v3061 = vpop.permute.xlu0 %3060
    %v3063 = vsel %vm547, %v519, 0
    %v3066 = vsel %vm547, %v521, 0
    %v3069 = vsel %vm547, %v523, 0
    %v3072 = vsel %vm547, %v525, 0
    %v3075 = vsel %vm547, %v3055, 0
    %v3078 = vsel %vm547, %v3057, 0
    %v3081 = vsel %vm547, %v3059, 0
    %v3084 = vsel %vm547, %v3061, 0
    %3086 = vmatprep.subr.bf16.mxu0 0
    %3087 = vmatpush1.bf16.xpose.msra.mxu0 %v3075
    %3088 = vmatprep.subr.bf16.mxu0 0
    %3089 = vmatpush1.bf16.xpose.msra.mxu0 %v3078
    %3090 = vmatprep.subr.bf16.mxu0 0
    %3091 = vmatpush1.bf16.xpose.msra.mxu0 %v3081
    %3092 = vmatprep.subr.bf16.mxu0 0
    %3093 = vmatpush1.bf16.xpose.msra.mxu0 %v3084
    %3094 = vmatprep.subr.bf16.mxu0 0
    %3095 = vmatpush1.bf16.xpose.msra.mxu0 0
    %3096 = vmatprep.subr.bf16.mxu0 0
    %3097 = vmatpush1.bf16.xpose.msra.mxu0 0
    %3098 = vmatprep.subr.bf16.mxu0 0
    %3099 = vmatpush1.bf16.xpose.msra.mxu0 0
    %3100 = vmatprep.subr.bf16.mxu0 0
    %3101 = vmatpush1.bf16.xpose.msra.mxu0 0
    %3102 = vmatprep.subr.bf16.mxu0 0
    %3103 = vmatpush1.bf16.xpose.msra.mxu0 0
    %3104 = vmatprep.subr.bf16.mxu0 0
    %3105 = vmatpush1.bf16.xpose.msra.mxu0 0
    %3106 = vmatprep.subr.bf16.mxu0 0
    %3107 = vmatpush1.bf16.xpose.msra.mxu0 0
    %3108 = vmatprep.subr.bf16.mxu0 0
    %3109 = vmatpush1.bf16.xpose.msra.mxu0 0
    %3110 = vmatprep.subr.bf16.mxu0 0
    %3111 = vmatpush1.bf16.xpose.msra.mxu0 0
    %3112 = vmatprep.subr.bf16.mxu0 0
    %3113 = vmatpush1.bf16.xpose.msra.mxu0 0
    %3114 = vmatprep.subr.bf16.mxu0 0
    %3115 = vmatpush1.bf16.xpose.msra.mxu0 0
    %3116 = vmatprep.subr.bf16.mxu0 0
    %3117 = vmatpush1.bf16.xpose.msra.mxu0 0
    %3118 = vmatprep.mubr.bf16.mxu0 0
    %3119 = vmatmul.mubr.bf16.gmra.mrb[0].mxu0 %v3063
    %v3120 = vpop.f32.mrb[0].mxu0
    %v3121 = vadd.f32 %v121, %v3120
    %v3122 = vpop.f32.mrb[0].mxu0
    %v3123 = vpop.f32.mrb[0].mxu0
    %v3124 = vadd.f32 %v122, %v3123
    %v3125 = vpop.f32.mrb[0].mxu0
    %3126 = vmatprep.mubr.bf16.mxu0 0
    %3127 = vmatmul.mubr.bf16.gmra.mrb[0].mxu0 %v3066
    %v3128 = vpop.f32.mrb[0].mxu0
    %v3129 = vadd.f32 %v123, %v3128
    %v3130 = vpop.f32.mrb[0].mxu0
    %v3131 = vpop.f32.mrb[0].mxu0
    %v3132 = vadd.f32 %v124, %v3131
    %v3133 = vpop.f32.mrb[0].mxu0
    %3134 = vmatprep.mubr.bf16.mxu0 0
    %3135 = vmatmul.mubr.bf16.gmra.mrb[0].mxu0 %v3069
    %v3136 = vpop.f32.mrb[0].mxu0
    %v3137 = vadd.f32 %v125, %v3136
    %v3138 = vpop.f32.mrb[0].mxu0
    %v3139 = vpop.f32.mrb[0].mxu0
    %v3140 = vadd.f32 %v126, %v3139
    %v3141 = vpop.f32.mrb[0].mxu0
    %3142 = vmatprep.mubr.bf16.mxu0 0
    %3143 = vmatmul.mubr.bf16.gmra.mrb[0].mxu0 %v3072
    %v3144 = vpop.f32.mrb[0].mxu0
    %v3145 = vadd.f32 %v127, %v3144
    %v3146 = vpop.f32.mrb[0].mxu0
    %v3147 = vpop.f32.mrb[0].mxu0
    %v3148 = vadd.f32 %v128, %v3147
    %v3149 = vpop.f32.mrb[0].mxu0
    %3150 = vdwg.mxu0
    %v3151 = vsel %vm261, %v3121, -inf
    %3152 = vmax.xlane.f32.xlu0 %v3151
    %v3153 = vpop.xlane.xlu0 %3152
    %v3154 = vsel %vm261, %v3124, -inf
    %3155 = vmax.xlane.f32.xlu0 %v3154
    %v3156 = vpop.xlane.xlu0 %3155
    %v3157 = vsel %vm261, %v3129, -inf
    %3158 = vmax.xlane.f32.xlu0 %v3157
    %v3159 = vpop.xlane.xlu0 %3158
    %v3160 = vsel %vm261, %v3132, -inf
    %3161 = vmax.xlane.f32.xlu0 %v3160
    %v3162 = vpop.xlane.xlu0 %3161
    %v3163 = vsel %vm261, %v3137, -inf
    %3164 = vmax.xlane.f32.xlu0 %v3163
    %v3165 = vpop.xlane.xlu0 %3164
    %v3166 = vsel %vm261, %v3140, -inf
    %3167 = vmax.xlane.f32.xlu0 %v3166
    %v3168 = vpop.xlane.xlu0 %3167
    %v3169 = vsel %vm261, %v3145, -inf
    %3170 = vmax.xlane.f32.xlu0 %v3169
    %v3171 = vpop.xlane.xlu0 %3170
    %v3172 = vsel %vm261, %v3148, -inf
    %3173 = vmax.xlane.f32.xlu0 %v3172
    %v3174 = vpop.xlane.xlu0 %3173
    %v3175 = vsub.f32 %v3121, %v3153
    %v3176 = vsub.f32 %v3124, %v3156
    %v3177 = vsub.f32 %v3129, %v3159
    %v3178 = vsub.f32 %v3132, %v3162
    %v3179 = vsub.f32 %v3137, %v3165
    %v3180 = vsub.f32 %v3140, %v3168
    %v3181 = vsub.f32 %v3145, %v3171
    %v3182 = vsub.f32 %v3148, %v3174
    %v3183 = vmul.f32 %v3175, 1.442695
    %v3184 = vpow.pop %v3183
    %v3185 = vmul.f32 %v3176, 1.442695
    %v3186 = vpow.pop %v3185
    %v3187 = vmul.f32 %v3177, 1.442695
    %v3188 = vpow.pop %v3187
    %v3189 = vmul.f32 %v3178, 1.442695
    %v3190 = vpow.pop %v3189
    %v3191 = vmul.f32 %v3179, 1.442695
    %v3192 = vpow.pop %v3191
    %v3193 = vmul.f32 %v3180, 1.442695
    %v3194 = vpow.pop %v3193
    %v3195 = vmul.f32 %v3181, 1.442695
    %v3196 = vpow.pop %v3195
    %v3197 = vmul.f32 %v3182, 1.442695
    %v3198 = vpow.pop %v3197
    %v3199 = vsel %vm261, %v3184, 0.0
    %3200 = vadd.xlane.f32.xlu0 %v3199
    %v3201 = vpop.xlane.xlu0 %3200
    %v3202 = vsel %vm261, %v3186, 0.0
    %3203 = vadd.xlane.f32.xlu0 %v3202
    %v3204 = vpop.xlane.xlu0 %3203
    %v3205 = vsel %vm261, %v3188, 0.0
    %3206 = vadd.xlane.f32.xlu0 %v3205
    %v3207 = vpop.xlane.xlu0 %3206
    %v3208 = vsel %vm261, %v3190, 0.0
    %3209 = vadd.xlane.f32.xlu0 %v3208
    %v3210 = vpop.xlane.xlu0 %3209
    %v3211 = vsel %vm261, %v3192, 0.0
    %3212 = vadd.xlane.f32.xlu0 %v3211
    %v3213 = vpop.xlane.xlu0 %3212
    %v3214 = vsel %vm261, %v3194, 0.0
    %3215 = vadd.xlane.f32.xlu0 %v3214
    %v3216 = vpop.xlane.xlu0 %3215
    %v3217 = vsel %vm261, %v3196, 0.0
    %3218 = vadd.xlane.f32.xlu0 %v3217
    %v3219 = vpop.xlane.xlu0 %3218
    %v3220 = vsel %vm261, %v3198, 0.0
    %3221 = vadd.xlane.f32.xlu0 %v3220
    %v3222 = vpop.xlane.xlu0 %3221
    %v3223 = vpack.c.bf16 %v3186, %v3184
    %v3224 = vpack.c.bf16 %v3190, %v3188
    %v3225 = vpack.c.bf16 %v3194, %v3192
    %v3226 = vpack.c.bf16 %v3198, %v3196
    %v3228 = vsel %vm261, %v3223, 0
    %v3231 = vsel %vm261, %v3224, 0
    %v3234 = vsel %vm261, %v3225, 0
    %v3237 = vsel %vm261, %v3226, 0
    %3239 = vmatprep.subr.bf16.mxu0 0
    %3240 = vmatpush1.bf16.msra.mxu0 %v520
    %3241 = vmatprep.subr.bf16.mxu0 0
    %3242 = vmatpush1.bf16.msra.mxu0 %v522
    %3243 = vmatprep.subr.bf16.mxu0 0
    %3244 = vmatpush1.bf16.msra.mxu0 %v524
    %3245 = vmatprep.subr.bf16.mxu0 0
    %3246 = vmatpush1.bf16.msra.mxu0 %v526
    %3247 = vmatprep.subr.bf16.mxu0 0
    %3248 = vmatpush1.bf16.msra.mxu0 0
    %3249 = vmatprep.subr.bf16.mxu0 0
    %3250 = vmatpush1.bf16.msra.mxu0 0
    %3251 = vmatprep.subr.bf16.mxu0 0
    %3252 = vmatpush1.bf16.msra.mxu0 0
    %3253 = vmatprep.subr.bf16.mxu0 0
    %3254 = vmatpush1.bf16.msra.mxu0 0
    %3255 = vmatprep.subr.bf16.mxu0 0
    %3256 = vmatpush1.bf16.msra.mxu0 0
    %3257 = vmatprep.subr.bf16.mxu0 0
    %3258 = vmatpush1.bf16.msra.mxu0 0
    %3259 = vmatprep.subr.bf16.mxu0 0
    %3260 = vmatpush1.bf16.msra.mxu0 0
    %3261 = vmatprep.subr.bf16.mxu0 0
    %3262 = vmatpush1.bf16.msra.mxu0 0
    %3263 = vmatprep.subr.bf16.mxu0 0
    %3264 = vmatpush1.bf16.msra.mxu0 0
    %3265 = vmatprep.subr.bf16.mxu0 0
    %3266 = vmatpush1.bf16.msra.mxu0 0
    %3267 = vmatprep.subr.bf16.mxu0 0
    %3268 = vmatpush1.bf16.msra.mxu0 0
    %3269 = vmatprep.subr.bf16.mxu0 0
    %3270 = vmatpush1.bf16.msra.mxu0 0
    %3271 = vmatprep.mubr.bf16.mxu0 0
    %3272 = vmatmul.mubr.bf16.gmra.mrb[0].mxu0 %v3228
    %v3273 = vpop.f32.mrb[0].mxu0
    %v3274 = vadd.f32 0.0, %v3273
    %v3275 = vpop.f32.mrb[0].mxu0
    %v3276 = vpop.f32.mrb[0].mxu0
    %v3277 = vadd.f32 0.0, %v3276
    %v3278 = vpop.f32.mrb[0].mxu0
    %3279 = vmatprep.mubr.bf16.mxu0 0
    %3280 = vmatmul.mubr.bf16.gmra.mrb[0].mxu0 %v3231
    %v3281 = vpop.f32.mrb[0].mxu0
    %v3282 = vadd.f32 0.0, %v3281
    %v3283 = vpop.f32.mrb[0].mxu0
    %v3284 = vpop.f32.mrb[0].mxu0
    %v3285 = vadd.f32 0.0, %v3284
    %v3286 = vpop.f32.mrb[0].mxu0
    %3287 = vmatprep.mubr.bf16.mxu0 0
    %3288 = vmatmul.mubr.bf16.gmra.mrb[0].mxu0 %v3234
    %v3289 = vpop.f32.mrb[0].mxu0
    %v3290 = vadd.f32 0.0, %v3289
    %v3291 = vpop.f32.mrb[0].mxu0
    %v3292 = vpop.f32.mrb[0].mxu0
    %v3293 = vadd.f32 0.0, %v3292
    %v3294 = vpop.f32.mrb[0].mxu0
    %3295 = vmatprep.mubr.bf16.mxu0 0
    %3296 = vmatmul.mubr.bf16.gmra.mrb[0].mxu0 %v3237
    %v3297 = vpop.f32.mrb[0].mxu0
    %v3298 = vadd.f32 0.0, %v3297
    %v3299 = vpop.f32.mrb[0].mxu0
    %v3300 = vpop.f32.mrb[0].mxu0
    %v3301 = vadd.f32 0.0, %v3300
    %v3302 = vpop.f32.mrb[0].mxu0
    %3303 = vdwg.mxu0
    %v3304 = vrcp.pop %v3201
    %v3305 = vrcp.pop %v3204
    %v3306 = vrcp.pop %v3207
    %v3307 = vrcp.pop %v3210
    %v3308 = vrcp.pop %v3213
    %v3309 = vrcp.pop %v3216
    %v3310 = vrcp.pop %v3219
    %v3311 = vrcp.pop %v3222
    %v3312 = vmul.f32 %v3274, %v3304
    %v3313 = vmul.f32 %v3277, %v3305
    %v3314 = vmul.f32 %v3282, %v3306
    %v3315 = vmul.f32 %v3285, %v3307
    %v3316 = vmul.f32 %v3290, %v3308
    %v3317 = vmul.f32 %v3293, %v3309
    %v3318 = vmul.f32 %v3298, %v3310
    %v3319 = vmul.f32 %v3301, %v3311
    %3320 = vrot.lane.b32.xlu0 %v519, 112
    %v3321 = vpop.permute.xlu0 %3320
    %3322 = vrot.lane.b32.xlu0 %v521, 112
    %v3323 = vpop.permute.xlu0 %3322
    %3324 = vrot.lane.b32.xlu0 %v523, 112
    %v3325 = vpop.permute.xlu0 %3324
    %3326 = vrot.lane.b32.xlu0 %v525, 112
    %v3327 = vpop.permute.xlu0 %3326
    %3328 = vrot.lane.b32.xlu0 %v519, 48
    %v3329 = vpop.permute.xlu0 %3328
    %3330 = vrot.lane.b32.xlu0 %v521, 48
    %v3331 = vpop.permute.xlu0 %3330
    %3332 = vrot.lane.b32.xlu0 %v523, 48
    %v3333 = vpop.permute.xlu0 %3332
    %3334 = vrot.lane.b32.xlu0 %v525, 48
    %v3335 = vpop.permute.xlu0 %3334
    %v3337 = vsel %vm547, %v3321, 0
    %v3340 = vsel %vm547, %v3323, 0
    %v3343 = vsel %vm547, %v3325, 0
    %v3346 = vsel %vm547, %v3327, 0
    %v3349 = vsel %vm547, %v3329, 0
    %v3352 = vsel %vm547, %v3331, 0
    %v3355 = vsel %vm547, %v3333, 0
    %v3358 = vsel %vm547, %v3335, 0
    %3360 = vmatprep.subr.bf16.mxu0 0
    %3361 = vmatpush1.bf16.xpose.msra.mxu0 %v3349
    %3362 = vmatprep.subr.bf16.mxu0 0
    %3363 = vmatpush1.bf16.xpose.msra.mxu0 %v3352
    %3364 = vmatprep.subr.bf16.mxu0 0
    %3365 = vmatpush1.bf16.xpose.msra.mxu0 %v3355
    %3366 = vmatprep.subr.bf16.mxu0 0
    %3367 = vmatpush1.bf16.xpose.msra.mxu0 %v3358
    %3368 = vmatprep.subr.bf16.mxu0 0
    %3369 = vmatpush1.bf16.xpose.msra.mxu0 0
    %3370 = vmatprep.subr.bf16.mxu0 0
    %3371 = vmatpush1.bf16.xpose.msra.mxu0 0
    %3372 = vmatprep.subr.bf16.mxu0 0
    %3373 = vmatpush1.bf16.xpose.msra.mxu0 0
    %3374 = vmatprep.subr.bf16.mxu0 0
    %3375 = vmatpush1.bf16.xpose.msra.mxu0 0
    %3376 = vmatprep.subr.bf16.mxu0 0
    %3377 = vmatpush1.bf16.xpose.msra.mxu0 0
    %3378 = vmatprep.subr.bf16.mxu0 0
    %3379 = vmatpush1.bf16.xpose.msra.mxu0 0
    %3380 = vmatprep.subr.bf16.mxu0 0
    %3381 = vmatpush1.bf16.xpose.msra.mxu0 0
    %3382 = vmatprep.subr.bf16.mxu0 0
    %3383 = vmatpush1.bf16.xpose.msra.mxu0 0
    %3384 = vmatprep.subr.bf16.mxu0 0
    %3385 = vmatpush1.bf16.xpose.msra.mxu0 0
    %3386 = vmatprep.subr.bf16.mxu0 0
    %3387 = vmatpush1.bf16.xpose.msra.mxu0 0
    %3388 = vmatprep.subr.bf16.mxu0 0
    %3389 = vmatpush1.bf16.xpose.msra.mxu0 0
    %3390 = vmatprep.subr.bf16.mxu0 0
    %3391 = vmatpush1.bf16.xpose.msra.mxu0 0
    %3392 = vmatprep.mubr.bf16.mxu0 0
    %3393 = vmatmul.mubr.bf16.gmra.mrb[0].mxu0 %v3337
    %v3394 = vpop.f32.mrb[0].mxu0
    %v3395 = vadd.f32 %v129, %v3394
    %v3396 = vpop.f32.mrb[0].mxu0
    %v3397 = vpop.f32.mrb[0].mxu0
    %v3398 = vadd.f32 %v130, %v3397
    %v3399 = vpop.f32.mrb[0].mxu0
    %3400 = vmatprep.mubr.bf16.mxu0 0
    %3401 = vmatmul.mubr.bf16.gmra.mrb[0].mxu0 %v3340
    %v3402 = vpop.f32.mrb[0].mxu0
    %v3403 = vadd.f32 %v131, %v3402
    %v3404 = vpop.f32.mrb[0].mxu0
    %v3405 = vpop.f32.mrb[0].mxu0
    %v3406 = vadd.f32 %v132, %v3405
    %v3407 = vpop.f32.mrb[0].mxu0
    %3408 = vmatprep.mubr.bf16.mxu0 0
    %3409 = vmatmul.mubr.bf16.gmra.mrb[0].mxu0 %v3343
    %v3410 = vpop.f32.mrb[0].mxu0
    %v3411 = vadd.f32 %v133, %v3410
    %v3412 = vpop.f32.mrb[0].mxu0
    %v3413 = vpop.f32.mrb[0].mxu0
    %v3414 = vadd.f32 %v134, %v3413
    %v3415 = vpop.f32.mrb[0].mxu0
    %3416 = vmatprep.mubr.bf16.mxu0 0
    %3417 = vmatmul.mubr.bf16.gmra.mrb[0].mxu0 %v3346
    %v3418 = vpop.f32.mrb[0].mxu0
    %v3419 = vadd.f32 %v135, %v3418
    %v3420 = vpop.f32.mrb[0].mxu0
    %v3421 = vpop.f32.mrb[0].mxu0
    %v3422 = vadd.f32 %v136, %v3421
    %v3423 = vpop.f32.mrb[0].mxu0
    %3424 = vdwg.mxu0
    %v3425 = vsel %vm261, %v3395, -inf
    %3426 = vmax.xlane.f32.xlu0 %v3425
    %v3427 = vpop.xlane.xlu0 %3426
    %v3428 = vsel %vm261, %v3398, -inf
    %3429 = vmax.xlane.f32.xlu0 %v3428
    %v3430 = vpop.xlane.xlu0 %3429
    %v3431 = vsel %vm261, %v3403, -inf
    %3432 = vmax.xlane.f32.xlu0 %v3431
    %v3433 = vpop.xlane.xlu0 %3432
    %v3434 = vsel %vm261, %v3406, -inf
    %3435 = vmax.xlane.f32.xlu0 %v3434
    %v3436 = vpop.xlane.xlu0 %3435
    %v3437 = vsel %vm261, %v3411, -inf
    %3438 = vmax.xlane.f32.xlu0 %v3437
    %v3439 = vpop.xlane.xlu0 %3438
    %v3440 = vsel %vm261, %v3414, -inf
    %3441 = vmax.xlane.f32.xlu0 %v3440
    %v3442 = vpop.xlane.xlu0 %3441
    %v3443 = vsel %vm261, %v3419, -inf
    %3444 = vmax.xlane.f32.xlu0 %v3443
    %v3445 = vpop.xlane.xlu0 %3444
    %v3446 = vsel %vm261, %v3422, -inf
    %3447 = vmax.xlane.f32.xlu0 %v3446
    %v3448 = vpop.xlane.xlu0 %3447
    %v3449 = vsub.f32 %v3395, %v3427
    %v3450 = vsub.f32 %v3398, %v3430
    %v3451 = vsub.f32 %v3403, %v3433
    %v3452 = vsub.f32 %v3406, %v3436
    %v3453 = vsub.f32 %v3411, %v3439
    %v3454 = vsub.f32 %v3414, %v3442
    %v3455 = vsub.f32 %v3419, %v3445
    %v3456 = vsub.f32 %v3422, %v3448
    %v3457 = vmul.f32 %v3449, 1.442695
    %v3458 = vpow.pop %v3457
    %v3459 = vmul.f32 %v3450, 1.442695
    %v3460 = vpow.pop %v3459
    %v3461 = vmul.f32 %v3451, 1.442695
    %v3462 = vpow.pop %v3461
    %v3463 = vmul.f32 %v3452, 1.442695
    %v3464 = vpow.pop %v3463
    %v3465 = vmul.f32 %v3453, 1.442695
    %v3466 = vpow.pop %v3465
    %v3467 = vmul.f32 %v3454, 1.442695
    %v3468 = vpow.pop %v3467
    %v3469 = vmul.f32 %v3455, 1.442695
    %v3470 = vpow.pop %v3469
    %v3471 = vmul.f32 %v3456, 1.442695
    %v3472 = vpow.pop %v3471
    %v3473 = vsel %vm261, %v3458, 0.0
    %3474 = vadd.xlane.f32.xlu0 %v3473
    %v3475 = vpop.xlane.xlu0 %3474
    %v3476 = vsel %vm261, %v3460, 0.0
    %3477 = vadd.xlane.f32.xlu0 %v3476
    %v3478 = vpop.xlane.xlu0 %3477
    %v3479 = vsel %vm261, %v3462, 0.0
    %3480 = vadd.xlane.f32.xlu0 %v3479
    %v3481 = vpop.xlane.xlu0 %3480
    %v3482 = vsel %vm261, %v3464, 0.0
    %3483 = vadd.xlane.f32.xlu0 %v3482
    %v3484 = vpop.xlane.xlu0 %3483
    %v3485 = vsel %vm261, %v3466, 0.0
    %3486 = vadd.xlane.f32.xlu0 %v3485
    %v3487 = vpop.xlane.xlu0 %3486
    %v3488 = vsel %vm261, %v3468, 0.0
    %3489 = vadd.xlane.f32.xlu0 %v3488
    %v3490 = vpop.xlane.xlu0 %3489
    %v3491 = vsel %vm261, %v3470, 0.0
    %3492 = vadd.xlane.f32.xlu0 %v3491
    %v3493 = vpop.xlane.xlu0 %3492
    %v3494 = vsel %vm261, %v3472, 0.0
    %3495 = vadd.xlane.f32.xlu0 %v3494
    %v3496 = vpop.xlane.xlu0 %3495
    %v3497 = vpack.c.bf16 %v3460, %v3458
    %v3498 = vpack.c.bf16 %v3464, %v3462
    %v3499 = vpack.c.bf16 %v3468, %v3466
    %v3500 = vpack.c.bf16 %v3472, %v3470
    %3505 = vrot.lane.b32.xlu0 %v520, 112
    %v3506 = vpop.permute.xlu0 %3505
    %3507 = vrot.lane.b32.xlu0 %v522, 112
    %v3508 = vpop.permute.xlu0 %3507
    %3509 = vrot.lane.b32.xlu0 %v524, 112
    %v3510 = vpop.permute.xlu0 %3509
    %3511 = vrot.lane.b32.xlu0 %v526, 112
    %v3512 = vpop.permute.xlu0 %3511
    %v3518 = vsel %vm261, %v3497, 0
    %v3521 = vsel %vm261, %v3498, 0
    %v3524 = vsel %vm261, %v3499, 0
    %v3527 = vsel %vm261, %v3500, 0
    %3529 = vmatprep.subr.bf16.mxu0 0
    %3530 = vmatpush1.bf16.msra.mxu0 %v3506
    %3531 = vmatprep.subr.bf16.mxu0 0
    %3532 = vmatpush1.bf16.msra.mxu0 %v3508
    %3533 = vmatprep.subr.bf16.mxu0 0
    %3534 = vmatpush1.bf16.msra.mxu0 %v3510
    %3535 = vmatprep.subr.bf16.mxu0 0
    %3536 = vmatpush1.bf16.msra.mxu0 %v3512
    %3537 = vmatprep.subr.bf16.mxu0 0
    %3538 = vmatpush1.bf16.msra.mxu0 0
    %3539 = vmatprep.subr.bf16.mxu0 0
    %3540 = vmatpush1.bf16.msra.mxu0 0
    %3541 = vmatprep.subr.bf16.mxu0 0
    %3542 = vmatpush1.bf16.msra.mxu0 0
    %3543 = vmatprep.subr.bf16.mxu0 0
    %3544 = vmatpush1.bf16.msra.mxu0 0
    %3545 = vmatprep.subr.bf16.mxu0 0
    %3546 = vmatpush1.bf16.msra.mxu0 0
    %3547 = vmatprep.subr.bf16.mxu0 0
    %3548 = vmatpush1.bf16.msra.mxu0 0
    %3549 = vmatprep.subr.bf16.mxu0 0
    %3550 = vmatpush1.bf16.msra.mxu0 0
    %3551 = vmatprep.subr.bf16.mxu0 0
    %3552 = vmatpush1.bf16.msra.mxu0 0
    %3553 = vmatprep.subr.bf16.mxu0 0
    %3554 = vmatpush1.bf16.msra.mxu0 0
    %3555 = vmatprep.subr.bf16.mxu0 0
    %3556 = vmatpush1.bf16.msra.mxu0 0
    %3557 = vmatprep.subr.bf16.mxu0 0
    %3558 = vmatpush1.bf16.msra.mxu0 0
    %3559 = vmatprep.subr.bf16.mxu0 0
    %3560 = vmatpush1.bf16.msra.mxu0 0
    %3561 = vmatprep.mubr.bf16.mxu0 0
    %3562 = vmatmul.mubr.bf16.gmra.mrb[0].mxu0 %v3518
    %v3563 = vpop.f32.mrb[0].mxu0
    %v3564 = vadd.f32 0.0, %v3563
    %v3565 = vpop.f32.mrb[0].mxu0
    %v3566 = vpop.f32.mrb[0].mxu0
    %v3567 = vadd.f32 0.0, %v3566
    %v3568 = vpop.f32.mrb[0].mxu0
    %3569 = vmatprep.mubr.bf16.mxu0 0
    %3570 = vmatmul.mubr.bf16.gmra.mrb[0].mxu0 %v3521
    %v3571 = vpop.f32.mrb[0].mxu0
    %v3572 = vadd.f32 0.0, %v3571
    %v3573 = vpop.f32.mrb[0].mxu0
    %v3574 = vpop.f32.mrb[0].mxu0
    %v3575 = vadd.f32 0.0, %v3574
    %v3576 = vpop.f32.mrb[0].mxu0
    %3577 = vmatprep.mubr.bf16.mxu0 0
    %3578 = vmatmul.mubr.bf16.gmra.mrb[0].mxu0 %v3524
    %v3579 = vpop.f32.mrb[0].mxu0
    %v3580 = vadd.f32 0.0, %v3579
    %v3581 = vpop.f32.mrb[0].mxu0
    %v3582 = vpop.f32.mrb[0].mxu0
    %v3583 = vadd.f32 0.0, %v3582
    %v3584 = vpop.f32.mrb[0].mxu0
    %3585 = vmatprep.mubr.bf16.mxu0 0
    %3586 = vmatmul.mubr.bf16.gmra.mrb[0].mxu0 %v3527
    %v3587 = vpop.f32.mrb[0].mxu0
    %v3588 = vadd.f32 0.0, %v3587
    %v3589 = vpop.f32.mrb[0].mxu0
    %v3590 = vpop.f32.mrb[0].mxu0
    %v3591 = vadd.f32 0.0, %v3590
    %v3592 = vpop.f32.mrb[0].mxu0
    %3593 = vdwg.mxu0
    %v3594 = vrcp.pop %v3475
    %v3595 = vrcp.pop %v3478
    %v3596 = vrcp.pop %v3481
    %v3597 = vrcp.pop %v3484
    %v3598 = vrcp.pop %v3487
    %v3599 = vrcp.pop %v3490
    %v3600 = vrcp.pop %v3493
    %v3601 = vrcp.pop %v3496
    %v3602 = vmul.f32 %v3564, %v3594
    %v3603 = vmul.f32 %v3567, %v3595
    %v3604 = vmul.f32 %v3572, %v3596
    %v3605 = vmul.f32 %v3575, %v3597
    %v3606 = vmul.f32 %v3580, %v3598
    %v3607 = vmul.f32 %v3583, %v3599
    %v3608 = vmul.f32 %v3588, %v3600
    %v3609 = vmul.f32 %v3591, %v3601
    %3610 = vrot.lane.b32.xlu0 %v519, 96
    %v3611 = vpop.permute.xlu0 %3610
    %3612 = vrot.lane.b32.xlu0 %v521, 96
    %v3613 = vpop.permute.xlu0 %3612
    %3614 = vrot.lane.b32.xlu0 %v523, 96
    %v3615 = vpop.permute.xlu0 %3614
    %3616 = vrot.lane.b32.xlu0 %v525, 96
    %v3617 = vpop.permute.xlu0 %3616
    %3618 = vrot.lane.b32.xlu0 %v519, 32
    %v3619 = vpop.permute.xlu0 %3618
    %3620 = vrot.lane.b32.xlu0 %v521, 32
    %v3621 = vpop.permute.xlu0 %3620
    %3622 = vrot.lane.b32.xlu0 %v523, 32
    %v3623 = vpop.permute.xlu0 %3622
    %3624 = vrot.lane.b32.xlu0 %v525, 32
    %v3625 = vpop.permute.xlu0 %3624
    %v3627 = vsel %vm547, %v3611, 0
    %v3630 = vsel %vm547, %v3613, 0
    %v3633 = vsel %vm547, %v3615, 0
    %v3636 = vsel %vm547, %v3617, 0
    %v3639 = vsel %vm547, %v3619, 0
    %v3642 = vsel %vm547, %v3621, 0
    %v3645 = vsel %vm547, %v3623, 0
    %v3648 = vsel %vm547, %v3625, 0
    %3650 = vmatprep.subr.bf16.mxu0 0
    %3651 = vmatpush1.bf16.xpose.msra.mxu0 %v3639
    %3652 = vmatprep.subr.bf16.mxu0 0
    %3653 = vmatpush1.bf16.xpose.msra.mxu0 %v3642
    %3654 = vmatprep.subr.bf16.mxu0 0
    %3655 = vmatpush1.bf16.xpose.msra.mxu0 %v3645
    %3656 = vmatprep.subr.bf16.mxu0 0
    %3657 = vmatpush1.bf16.xpose.msra.mxu0 %v3648
    %3658 = vmatprep.subr.bf16.mxu0 0
    %3659 = vmatpush1.bf16.xpose.msra.mxu0 0
    %3660 = vmatprep.subr.bf16.mxu0 0
    %3661 = vmatpush1.bf16.xpose.msra.mxu0 0
    %3662 = vmatprep.subr.bf16.mxu0 0
    %3663 = vmatpush1.bf16.xpose.msra.mxu0 0
    %3664 = vmatprep.subr.bf16.mxu0 0
    %3665 = vmatpush1.bf16.xpose.msra.mxu0 0
    %3666 = vmatprep.subr.bf16.mxu0 0
    %3667 = vmatpush1.bf16.xpose.msra.mxu0 0
    %3668 = vmatprep.subr.bf16.mxu0 0
    %3669 = vmatpush1.bf16.xpose.msra.mxu0 0
    %3670 = vmatprep.subr.bf16.mxu0 0
    %3671 = vmatpush1.bf16.xpose.msra.mxu0 0
    %3672 = vmatprep.subr.bf16.mxu0 0
    %3673 = vmatpush1.bf16.xpose.msra.mxu0 0
    %3674 = vmatprep.subr.bf16.mxu0 0
    %3675 = vmatpush1.bf16.xpose.msra.mxu0 0
    %3676 = vmatprep.subr.bf16.mxu0 0
    %3677 = vmatpush1.bf16.xpose.msra.mxu0 0
    %3678 = vmatprep.subr.bf16.mxu0 0
    %3679 = vmatpush1.bf16.xpose.msra.mxu0 0
    %3680 = vmatprep.subr.bf16.mxu0 0
    %3681 = vmatpush1.bf16.xpose.msra.mxu0 0
    %3682 = vmatprep.mubr.bf16.mxu0 0
    %3683 = vmatmul.mubr.bf16.gmra.mrb[0].mxu0 %v3627
    %v3684 = vpop.f32.mrb[0].mxu0
    %v3685 = vadd.f32 %v137, %v3684
    %v3686 = vpop.f32.mrb[0].mxu0
    %v3687 = vpop.f32.mrb[0].mxu0
    %v3688 = vadd.f32 %v138, %v3687
    %v3689 = vpop.f32.mrb[0].mxu0
    %3690 = vmatprep.mubr.bf16.mxu0 0
    %3691 = vmatmul.mubr.bf16.gmra.mrb[0].mxu0 %v3630
    %v3692 = vpop.f32.mrb[0].mxu0
    %v3693 = vadd.f32 %v139, %v3692
    %v3694 = vpop.f32.mrb[0].mxu0
    %v3695 = vpop.f32.mrb[0].mxu0
    %v3696 = vadd.f32 %v140, %v3695
    %v3697 = vpop.f32.mrb[0].mxu0
    %3698 = vmatprep.mubr.bf16.mxu0 0
    %3699 = vmatmul.mubr.bf16.gmra.mrb[0].mxu0 %v3633
    %v3700 = vpop.f32.mrb[0].mxu0
    %v3701 = vadd.f32 %v141, %v3700
    %v3702 = vpop.f32.mrb[0].mxu0
    %v3703 = vpop.f32.mrb[0].mxu0
    %v3704 = vadd.f32 %v142, %v3703
    %v3705 = vpop.f32.mrb[0].mxu0
    %3706 = vmatprep.mubr.bf16.mxu0 0
    %3707 = vmatmul.mubr.bf16.gmra.mrb[0].mxu0 %v3636
    %v3708 = vpop.f32.mrb[0].mxu0
    %v3709 = vadd.f32 %v143, %v3708
    %v3710 = vpop.f32.mrb[0].mxu0
    %v3711 = vpop.f32.mrb[0].mxu0
    %v3712 = vadd.f32 %v144, %v3711
    %v3713 = vpop.f32.mrb[0].mxu0
    %3714 = vdwg.mxu0
    %v3715 = vsel %vm261, %v3685, -inf
    %3716 = vmax.xlane.f32.xlu0 %v3715
    %v3717 = vpop.xlane.xlu0 %3716
    %v3718 = vsel %vm261, %v3688, -inf
    %3719 = vmax.xlane.f32.xlu0 %v3718
    %v3720 = vpop.xlane.xlu0 %3719
    %v3721 = vsel %vm261, %v3693, -inf
    %3722 = vmax.xlane.f32.xlu0 %v3721
    %v3723 = vpop.xlane.xlu0 %3722
    %v3724 = vsel %vm261, %v3696, -inf
    %3725 = vmax.xlane.f32.xlu0 %v3724
    %v3726 = vpop.xlane.xlu0 %3725
    %v3727 = vsel %vm261, %v3701, -inf
    %3728 = vmax.xlane.f32.xlu0 %v3727
    %v3729 = vpop.xlane.xlu0 %3728
    %v3730 = vsel %vm261, %v3704, -inf
    %3731 = vmax.xlane.f32.xlu0 %v3730
    %v3732 = vpop.xlane.xlu0 %3731
    %v3733 = vsel %vm261, %v3709, -inf
    %3734 = vmax.xlane.f32.xlu0 %v3733
    %v3735 = vpop.xlane.xlu0 %3734
    %v3736 = vsel %vm261, %v3712, -inf
    %3737 = vmax.xlane.f32.xlu0 %v3736
    %v3738 = vpop.xlane.xlu0 %3737
    %v3739 = vsub.f32 %v3685, %v3717
    %v3740 = vsub.f32 %v3688, %v3720
    %v3741 = vsub.f32 %v3693, %v3723
    %v3742 = vsub.f32 %v3696, %v3726
    %v3743 = vsub.f32 %v3701, %v3729
    %v3744 = vsub.f32 %v3704, %v3732
    %v3745 = vsub.f32 %v3709, %v3735
    %v3746 = vsub.f32 %v3712, %v3738
    %v3747 = vmul.f32 %v3739, 1.442695
    %v3748 = vpow.pop %v3747
    %v3749 = vmul.f32 %v3740, 1.442695
    %v3750 = vpow.pop %v3749
    %v3751 = vmul.f32 %v3741, 1.442695
    %v3752 = vpow.pop %v3751
    %v3753 = vmul.f32 %v3742, 1.442695
    %v3754 = vpow.pop %v3753
    %v3755 = vmul.f32 %v3743, 1.442695
    %v3756 = vpow.pop %v3755
    %v3757 = vmul.f32 %v3744, 1.442695
    %v3758 = vpow.pop %v3757
    %v3759 = vmul.f32 %v3745, 1.442695
    %v3760 = vpow.pop %v3759
    %v3761 = vmul.f32 %v3746, 1.442695
    %v3762 = vpow.pop %v3761
    %v3763 = vsel %vm261, %v3748, 0.0
    %3764 = vadd.xlane.f32.xlu0 %v3763
    %v3765 = vpop.xlane.xlu0 %3764
    %v3766 = vsel %vm261, %v3750, 0.0
    %3767 = vadd.xlane.f32.xlu0 %v3766
    %v3768 = vpop.xlane.xlu0 %3767
    %v3769 = vsel %vm261, %v3752, 0.0
    %3770 = vadd.xlane.f32.xlu0 %v3769
    %v3771 = vpop.xlane.xlu0 %3770
    %v3772 = vsel %vm261, %v3754, 0.0
    %3773 = vadd.xlane.f32.xlu0 %v3772
    %v3774 = vpop.xlane.xlu0 %3773
    %v3775 = vsel %vm261, %v3756, 0.0
    %3776 = vadd.xlane.f32.xlu0 %v3775
    %v3777 = vpop.xlane.xlu0 %3776
    %v3778 = vsel %vm261, %v3758, 0.0
    %3779 = vadd.xlane.f32.xlu0 %v3778
    %v3780 = vpop.xlane.xlu0 %3779
    %v3781 = vsel %vm261, %v3760, 0.0
    %3782 = vadd.xlane.f32.xlu0 %v3781
    %v3783 = vpop.xlane.xlu0 %3782
    %v3784 = vsel %vm261, %v3762, 0.0
    %3785 = vadd.xlane.f32.xlu0 %v3784
    %v3786 = vpop.xlane.xlu0 %3785
    %v3787 = vpack.c.bf16 %v3750, %v3748
    %v3788 = vpack.c.bf16 %v3754, %v3752
    %v3789 = vpack.c.bf16 %v3758, %v3756
    %v3790 = vpack.c.bf16 %v3762, %v3760
    %3791 = vrot.lane.b32.xlu0 %v520, 96
    %v3792 = vpop.permute.xlu0 %3791
    %3793 = vrot.lane.b32.xlu0 %v522, 96
    %v3794 = vpop.permute.xlu0 %3793
    %3795 = vrot.lane.b32.xlu0 %v524, 96
    %v3796 = vpop.permute.xlu0 %3795
    %3797 = vrot.lane.b32.xlu0 %v526, 96
    %v3798 = vpop.permute.xlu0 %3797
    %v3804 = vsel %vm261, %v3787, 0
    %v3807 = vsel %vm261, %v3788, 0
    %v3810 = vsel %vm261, %v3789, 0
    %v3813 = vsel %vm261, %v3790, 0
    %3815 = vmatprep.subr.bf16.mxu0 0
    %3816 = vmatpush1.bf16.msra.mxu0 %v3792
    %3817 = vmatprep.subr.bf16.mxu0 0
    %3818 = vmatpush1.bf16.msra.mxu0 %v3794
    %3819 = vmatprep.subr.bf16.mxu0 0
    %3820 = vmatpush1.bf16.msra.mxu0 %v3796
    %3821 = vmatprep.subr.bf16.mxu0 0
    %3822 = vmatpush1.bf16.msra.mxu0 %v3798
    %3823 = vmatprep.subr.bf16.mxu0 0
    %3824 = vmatpush1.bf16.msra.mxu0 0
    %3825 = vmatprep.subr.bf16.mxu0 0
    %3826 = vmatpush1.bf16.msra.mxu0 0
    %3827 = vmatprep.subr.bf16.mxu0 0
    %3828 = vmatpush1.bf16.msra.mxu0 0
    %3829 = vmatprep.subr.bf16.mxu0 0
    %3830 = vmatpush1.bf16.msra.mxu0 0
    %3831 = vmatprep.subr.bf16.mxu0 0
    %3832 = vmatpush1.bf16.msra.mxu0 0
    %3833 = vmatprep.subr.bf16.mxu0 0
    %3834 = vmatpush1.bf16.msra.mxu0 0
    %3835 = vmatprep.subr.bf16.mxu0 0
    %3836 = vmatpush1.bf16.msra.mxu0 0
    %3837 = vmatprep.subr.bf16.mxu0 0
    %3838 = vmatpush1.bf16.msra.mxu0 0
    %3839 = vmatprep.subr.bf16.mxu0 0
    %3840 = vmatpush1.bf16.msra.mxu0 0
    %3841 = vmatprep.subr.bf16.mxu0 0
    %3842 = vmatpush1.bf16.msra.mxu0 0
    %3843 = vmatprep.subr.bf16.mxu0 0
    %3844 = vmatpush1.bf16.msra.mxu0 0
    %3845 = vmatprep.subr.bf16.mxu0 0
    %3846 = vmatpush1.bf16.msra.mxu0 0
    %3847 = vmatprep.mubr.bf16.mxu0 0
    %3848 = vmatmul.mubr.bf16.gmra.mrb[0].mxu0 %v3804
    %v3849 = vpop.f32.mrb[0].mxu0
    %v3850 = vadd.f32 0.0, %v3849
    %v3851 = vpop.f32.mrb[0].mxu0
    %v3852 = vpop.f32.mrb[0].mxu0
    %v3853 = vadd.f32 0.0, %v3852
    %v3854 = vpop.f32.mrb[0].mxu0
    %3855 = vmatprep.mubr.bf16.mxu0 0
    %3856 = vmatmul.mubr.bf16.gmra.mrb[0].mxu0 %v3807
    %v3857 = vpop.f32.mrb[0].mxu0
    %v3858 = vadd.f32 0.0, %v3857
    %v3859 = vpop.f32.mrb[0].mxu0
    %v3860 = vpop.f32.mrb[0].mxu0
    %v3861 = vadd.f32 0.0, %v3860
    %v3862 = vpop.f32.mrb[0].mxu0
    %3863 = vmatprep.mubr.bf16.mxu0 0
    %3864 = vmatmul.mubr.bf16.gmra.mrb[0].mxu0 %v3810
    %v3865 = vpop.f32.mrb[0].mxu0
    %v3866 = vadd.f32 0.0, %v3865
    %v3867 = vpop.f32.mrb[0].mxu0
    %v3868 = vpop.f32.mrb[0].mxu0
    %v3869 = vadd.f32 0.0, %v3868
    %v3870 = vpop.f32.mrb[0].mxu0
    %3871 = vmatprep.mubr.bf16.mxu0 0
    %3872 = vmatmul.mubr.bf16.gmra.mrb[0].mxu0 %v3813
    %v3873 = vpop.f32.mrb[0].mxu0
    %v3874 = vadd.f32 0.0, %v3873
    %v3875 = vpop.f32.mrb[0].mxu0
    %v3876 = vpop.f32.mrb[0].mxu0
    %v3877 = vadd.f32 0.0, %v3876
    %v3878 = vpop.f32.mrb[0].mxu0
    %3879 = vdwg.mxu0
    %v3880 = vrcp.pop %v3765
    %v3881 = vrcp.pop %v3768
    %v3882 = vrcp.pop %v3771
    %v3883 = vrcp.pop %v3774
    %v3884 = vrcp.pop %v3777
    %v3885 = vrcp.pop %v3780
    %v3886 = vrcp.pop %v3783
    %v3887 = vrcp.pop %v3786
    %v3888 = vmul.f32 %v3850, %v3880
    %v3889 = vmul.f32 %v3853, %v3881
    %v3890 = vmul.f32 %v3858, %v3882
    %v3891 = vmul.f32 %v3861, %v3883
    %v3892 = vmul.f32 %v3866, %v3884
    %v3893 = vmul.f32 %v3869, %v3885
    %v3894 = vmul.f32 %v3874, %v3886
    %v3895 = vmul.f32 %v3877, %v3887
    %3896 = vrot.lane.b32.xlu0 %v519, 80
    %v3897 = vpop.permute.xlu0 %3896
    %3898 = vrot.lane.b32.xlu0 %v521, 80
    %v3899 = vpop.permute.xlu0 %3898
    %3900 = vrot.lane.b32.xlu0 %v523, 80
    %v3901 = vpop.permute.xlu0 %3900
    %3902 = vrot.lane.b32.xlu0 %v525, 80
    %v3903 = vpop.permute.xlu0 %3902
    %3904 = vrot.lane.b32.xlu0 %v519, 16
    %v3905 = vpop.permute.xlu0 %3904
    %3906 = vrot.lane.b32.xlu0 %v521, 16
    %v3907 = vpop.permute.xlu0 %3906
    %3908 = vrot.lane.b32.xlu0 %v523, 16
    %v3909 = vpop.permute.xlu0 %3908
    %3910 = vrot.lane.b32.xlu0 %v525, 16
    %v3911 = vpop.permute.xlu0 %3910
    %v3913 = vsel %vm547, %v3897, 0
    %v3916 = vsel %vm547, %v3899, 0
    %v3919 = vsel %vm547, %v3901, 0
    %v3922 = vsel %vm547, %v3903, 0
    %v3925 = vsel %vm547, %v3905, 0
    %v3928 = vsel %vm547, %v3907, 0
    %v3931 = vsel %vm547, %v3909, 0
    %v3934 = vsel %vm547, %v3911, 0
    %3936 = vmatprep.subr.bf16.mxu0 0
    %3937 = vmatpush1.bf16.xpose.msra.mxu0 %v3925
    %3938 = vmatprep.subr.bf16.mxu0 0
    %3939 = vmatpush1.bf16.xpose.msra.mxu0 %v3928
    %3940 = vmatprep.subr.bf16.mxu0 0
    %3941 = vmatpush1.bf16.xpose.msra.mxu0 %v3931
    %3942 = vmatprep.subr.bf16.mxu0 0
    %3943 = vmatpush1.bf16.xpose.msra.mxu0 %v3934
    %3944 = vmatprep.subr.bf16.mxu0 0
    %3945 = vmatpush1.bf16.xpose.msra.mxu0 0
    %3946 = vmatprep.subr.bf16.mxu0 0
    %3947 = vmatpush1.bf16.xpose.msra.mxu0 0
    %3948 = vmatprep.subr.bf16.mxu0 0
    %3949 = vmatpush1.bf16.xpose.msra.mxu0 0
    %3950 = vmatprep.subr.bf16.mxu0 0
    %3951 = vmatpush1.bf16.xpose.msra.mxu0 0
    %3952 = vmatprep.subr.bf16.mxu0 0
    %3953 = vmatpush1.bf16.xpose.msra.mxu0 0
    %3954 = vmatprep.subr.bf16.mxu0 0
    %3955 = vmatpush1.bf16.xpose.msra.mxu0 0
    %3956 = vmatprep.subr.bf16.mxu0 0
    %3957 = vmatpush1.bf16.xpose.msra.mxu0 0
    %3958 = vmatprep.subr.bf16.mxu0 0
    %3959 = vmatpush1.bf16.xpose.msra.mxu0 0
    %3960 = vmatprep.subr.bf16.mxu0 0
    %3961 = vmatpush1.bf16.xpose.msra.mxu0 0
    %3962 = vmatprep.subr.bf16.mxu0 0
    %3963 = vmatpush1.bf16.xpose.msra.mxu0 0
    %3964 = vmatprep.subr.bf16.mxu0 0
    %3965 = vmatpush1.bf16.xpose.msra.mxu0 0
    %3966 = vmatprep.subr.bf16.mxu0 0
    %3967 = vmatpush1.bf16.xpose.msra.mxu0 0
    %3968 = vmatprep.mubr.bf16.mxu0 0
    %3969 = vmatmul.mubr.bf16.gmra.mrb[0].mxu0 %v3913
    %v3970 = vpop.f32.mrb[0].mxu0
    %v3971 = vadd.f32 %v145, %v3970
    %v3972 = vpop.f32.mrb[0].mxu0
    %v3973 = vpop.f32.mrb[0].mxu0
    %v3974 = vadd.f32 %v146, %v3973
    %v3975 = vpop.f32.mrb[0].mxu0
    %3976 = vmatprep.mubr.bf16.mxu0 0
    %3977 = vmatmul.mubr.bf16.gmra.mrb[0].mxu0 %v3916
    %v3978 = vpop.f32.mrb[0].mxu0
    %v3979 = vadd.f32 %v147, %v3978
    %v3980 = vpop.f32.mrb[0].mxu0
    %v3981 = vpop.f32.mrb[0].mxu0
    %v3982 = vadd.f32 %v148, %v3981
    %v3983 = vpop.f32.mrb[0].mxu0
    %3984 = vmatprep.mubr.bf16.mxu0 0
    %3985 = vmatmul.mubr.bf16.gmra.mrb[0].mxu0 %v3919
    %v3986 = vpop.f32.mrb[0].mxu0
    %v3987 = vadd.f32 %v149, %v3986
    %v3988 = vpop.f32.mrb[0].mxu0
    %v3989 = vpop.f32.mrb[0].mxu0
    %v3990 = vadd.f32 %v150, %v3989
    %v3991 = vpop.f32.mrb[0].mxu0
    %3992 = vmatprep.mubr.bf16.mxu0 0
    %3993 = vmatmul.mubr.bf16.gmra.mrb[0].mxu0 %v3922
    %v3994 = vpop.f32.mrb[0].mxu0
    %v3995 = vadd.f32 %v151, %v3994
    %v3996 = vpop.f32.mrb[0].mxu0
    %v3997 = vpop.f32.mrb[0].mxu0
    %v3998 = vadd.f32 %v152, %v3997
    %v3999 = vpop.f32.mrb[0].mxu0
    %4000 = vdwg.mxu0
    %v4001 = vsel %vm261, %v3971, -inf
    %4002 = vmax.xlane.f32.xlu0 %v4001
    %v4003 = vpop.xlane.xlu0 %4002
    %v4004 = vsel %vm261, %v3974, -inf
    %4005 = vmax.xlane.f32.xlu0 %v4004
    %v4006 = vpop.xlane.xlu0 %4005
    %v4007 = vsel %vm261, %v3979, -inf
    %4008 = vmax.xlane.f32.xlu0 %v4007
    %v4009 = vpop.xlane.xlu0 %4008
    %v4010 = vsel %vm261, %v3982, -inf
    %4011 = vmax.xlane.f32.xlu0 %v4010
    %v4012 = vpop.xlane.xlu0 %4011
    %v4013 = vsel %vm261, %v3987, -inf
    %4014 = vmax.xlane.f32.xlu0 %v4013
    %v4015 = vpop.xlane.xlu0 %4014
    %v4016 = vsel %vm261, %v3990, -inf
    %4017 = vmax.xlane.f32.xlu0 %v4016
    %v4018 = vpop.xlane.xlu0 %4017
    %v4019 = vsel %vm261, %v3995, -inf
    %4020 = vmax.xlane.f32.xlu0 %v4019
    %v4021 = vpop.xlane.xlu0 %4020
    %v4022 = vsel %vm261, %v3998, -inf
    %4023 = vmax.xlane.f32.xlu0 %v4022
    %v4024 = vpop.xlane.xlu0 %4023
    %v4025 = vsub.f32 %v3971, %v4003
    %v4026 = vsub.f32 %v3974, %v4006
    %v4027 = vsub.f32 %v3979, %v4009
    %v4028 = vsub.f32 %v3982, %v4012
    %v4029 = vsub.f32 %v3987, %v4015
    %v4030 = vsub.f32 %v3990, %v4018
    %v4031 = vsub.f32 %v3995, %v4021
    %v4032 = vsub.f32 %v3998, %v4024
    %v4033 = vmul.f32 %v4025, 1.442695
    %v4034 = vpow.pop %v4033
    %v4035 = vmul.f32 %v4026, 1.442695
    %v4036 = vpow.pop %v4035
    %v4037 = vmul.f32 %v4027, 1.442695
    %v4038 = vpow.pop %v4037
    %v4039 = vmul.f32 %v4028, 1.442695
    %v4040 = vpow.pop %v4039
    %v4041 = vmul.f32 %v4029, 1.442695
    %v4042 = vpow.pop %v4041
    %v4043 = vmul.f32 %v4030, 1.442695
    %v4044 = vpow.pop %v4043
    %v4045 = vmul.f32 %v4031, 1.442695
    %v4046 = vpow.pop %v4045
    %v4047 = vmul.f32 %v4032, 1.442695
    %v4048 = vpow.pop %v4047
    %v4049 = vsel %vm261, %v4034, 0.0
    %4050 = vadd.xlane.f32.xlu0 %v4049
    %v4051 = vpop.xlane.xlu0 %4050
    %v4052 = vsel %vm261, %v4036, 0.0
    %4053 = vadd.xlane.f32.xlu0 %v4052
    %v4054 = vpop.xlane.xlu0 %4053
    %v4055 = vsel %vm261, %v4038, 0.0
    %4056 = vadd.xlane.f32.xlu0 %v4055
    %v4057 = vpop.xlane.xlu0 %4056
    %v4058 = vsel %vm261, %v4040, 0.0
    %4059 = vadd.xlane.f32.xlu0 %v4058
    %v4060 = vpop.xlane.xlu0 %4059
    %v4061 = vsel %vm261, %v4042, 0.0
    %4062 = vadd.xlane.f32.xlu0 %v4061
    %v4063 = vpop.xlane.xlu0 %4062
    %v4064 = vsel %vm261, %v4044, 0.0
    %4065 = vadd.xlane.f32.xlu0 %v4064
    %v4066 = vpop.xlane.xlu0 %4065
    %v4067 = vsel %vm261, %v4046, 0.0
    %4068 = vadd.xlane.f32.xlu0 %v4067
    %v4069 = vpop.xlane.xlu0 %4068
    %v4070 = vsel %vm261, %v4048, 0.0
    %4071 = vadd.xlane.f32.xlu0 %v4070
    %v4072 = vpop.xlane.xlu0 %4071
    %v4073 = vpack.c.bf16 %v4036, %v4034
    %v4074 = vpack.c.bf16 %v4040, %v4038
    %v4075 = vpack.c.bf16 %v4044, %v4042
    %v4076 = vpack.c.bf16 %v4048, %v4046
    %4077 = vrot.lane.b32.xlu0 %v520, 80
    %v4078 = vpop.permute.xlu0 %4077
    %4079 = vrot.lane.b32.xlu0 %v522, 80
    %v4080 = vpop.permute.xlu0 %4079
    %4081 = vrot.lane.b32.xlu0 %v524, 80
    %v4082 = vpop.permute.xlu0 %4081
    %4083 = vrot.lane.b32.xlu0 %v526, 80
    %v4084 = vpop.permute.xlu0 %4083
    %v4090 = vsel %vm261, %v4073, 0
    %v4093 = vsel %vm261, %v4074, 0
    %v4096 = vsel %vm261, %v4075, 0
    %v4099 = vsel %vm261, %v4076, 0
    %4101 = vmatprep.subr.bf16.mxu0 0
    %4102 = vmatpush1.bf16.msra.mxu0 %v4078
    %4103 = vmatprep.subr.bf16.mxu0 0
    %4104 = vmatpush1.bf16.msra.mxu0 %v4080
    %4105 = vmatprep.subr.bf16.mxu0 0
    %4106 = vmatpush1.bf16.msra.mxu0 %v4082
    %4107 = vmatprep.subr.bf16.mxu0 0
    %4108 = vmatpush1.bf16.msra.mxu0 %v4084
    %4109 = vmatprep.subr.bf16.mxu0 0
    %4110 = vmatpush1.bf16.msra.mxu0 0
    %4111 = vmatprep.subr.bf16.mxu0 0
    %4112 = vmatpush1.bf16.msra.mxu0 0
    %4113 = vmatprep.subr.bf16.mxu0 0
    %4114 = vmatpush1.bf16.msra.mxu0 0
    %4115 = vmatprep.subr.bf16.mxu0 0
    %4116 = vmatpush1.bf16.msra.mxu0 0
    %4117 = vmatprep.subr.bf16.mxu0 0
    %4118 = vmatpush1.bf16.msra.mxu0 0
    %4119 = vmatprep.subr.bf16.mxu0 0
    %4120 = vmatpush1.bf16.msra.mxu0 0
    %4121 = vmatprep.subr.bf16.mxu0 0
    %4122 = vmatpush1.bf16.msra.mxu0 0
    %4123 = vmatprep.subr.bf16.mxu0 0
    %4124 = vmatpush1.bf16.msra.mxu0 0
    %4125 = vmatprep.subr.bf16.mxu0 0
    %4126 = vmatpush1.bf16.msra.mxu0 0
    %4127 = vmatprep.subr.bf16.mxu0 0
    %4128 = vmatpush1.bf16.msra.mxu0 0
    %4129 = vmatprep.subr.bf16.mxu0 0
    %4130 = vmatpush1.bf16.msra.mxu0 0
    %4131 = vmatprep.subr.bf16.mxu0 0
    %4132 = vmatpush1.bf16.msra.mxu0 0
    %4133 = vmatprep.mubr.bf16.mxu0 0
    %4134 = vmatmul.mubr.bf16.gmra.mrb[0].mxu0 %v4090
    %v4135 = vpop.f32.mrb[0].mxu0
    %v4136 = vadd.f32 0.0, %v4135
    %v4137 = vpop.f32.mrb[0].mxu0
    %v4138 = vpop.f32.mrb[0].mxu0
    %v4139 = vadd.f32 0.0, %v4138
    %v4140 = vpop.f32.mrb[0].mxu0
    %4141 = vmatprep.mubr.bf16.mxu0 0
    %4142 = vmatmul.mubr.bf16.gmra.mrb[0].mxu0 %v4093
    %v4143 = vpop.f32.mrb[0].mxu0
    %v4144 = vadd.f32 0.0, %v4143
    %v4145 = vpop.f32.mrb[0].mxu0
    %v4146 = vpop.f32.mrb[0].mxu0
    %v4147 = vadd.f32 0.0, %v4146
    %v4148 = vpop.f32.mrb[0].mxu0
    %4149 = vmatprep.mubr.bf16.mxu0 0
    %4150 = vmatmul.mubr.bf16.gmra.mrb[0].mxu0 %v4096
    %v4151 = vpop.f32.mrb[0].mxu0
    %v4152 = vadd.f32 0.0, %v4151
    %v4153 = vpop.f32.mrb[0].mxu0
    %v4154 = vpop.f32.mrb[0].mxu0
    %v4155 = vadd.f32 0.0, %v4154
    %v4156 = vpop.f32.mrb[0].mxu0
    %4157 = vmatprep.mubr.bf16.mxu0 0
    %4158 = vmatmul.mubr.bf16.gmra.mrb[0].mxu0 %v4099
    %v4159 = vpop.f32.mrb[0].mxu0
    %v4160 = vadd.f32 0.0, %v4159
    %v4161 = vpop.f32.mrb[0].mxu0
    %v4162 = vpop.f32.mrb[0].mxu0
    %v4163 = vadd.f32 0.0, %v4162
    %v4164 = vpop.f32.mrb[0].mxu0
    %4165 = vdwg.mxu0
    %v4166 = vrcp.pop %v4051
    %v4167 = vrcp.pop %v4054
    %v4168 = vrcp.pop %v4057
    %v4169 = vrcp.pop %v4060
    %v4170 = vrcp.pop %v4063
    %v4171 = vrcp.pop %v4066
    %v4172 = vrcp.pop %v4069
    %v4173 = vrcp.pop %v4072
    %v4174 = vmul.f32 %v4136, %v4166
    %v4175 = vmul.f32 %v4139, %v4167
    %v4176 = vmul.f32 %v4144, %v4168
    %v4177 = vmul.f32 %v4147, %v4169
    %v4178 = vmul.f32 %v4152, %v4170
    %v4179 = vmul.f32 %v4155, %v4171
    %v4180 = vmul.f32 %v4160, %v4172
    %v4181 = vmul.f32 %v4163, %v4173
    %4190 = vrot.lane.b32.xlu0 %v3602, 16
    %v4191 = vpop.permute.xlu0 %4190
    %4192 = vrot.lane.b32.xlu0 %v3603, 16
    %v4193 = vpop.permute.xlu0 %4192
    %4194 = vrot.lane.b32.xlu0 %v3604, 16
    %v4195 = vpop.permute.xlu0 %4194
    %4196 = vrot.lane.b32.xlu0 %v3605, 16
    %v4197 = vpop.permute.xlu0 %4196
    %4198 = vrot.lane.b32.xlu0 %v3606, 16
    %v4199 = vpop.permute.xlu0 %4198
    %4200 = vrot.lane.b32.xlu0 %v3607, 16
    %v4201 = vpop.permute.xlu0 %4200
    %4202 = vrot.lane.b32.xlu0 %v3608, 16
    %v4203 = vpop.permute.xlu0 %4202
    %4204 = vrot.lane.b32.xlu0 %v3609, 16
    %v4205 = vpop.permute.xlu0 %4204
    %4222 = vrot.lane.b32.xlu0 %v3888, 32
    %v4223 = vpop.permute.xlu0 %4222
    %4224 = vrot.lane.b32.xlu0 %v3889, 32
    %v4225 = vpop.permute.xlu0 %4224
    %4226 = vrot.lane.b32.xlu0 %v3890, 32
    %v4227 = vpop.permute.xlu0 %4226
    %4228 = vrot.lane.b32.xlu0 %v3891, 32
    %v4229 = vpop.permute.xlu0 %4228
    %4230 = vrot.lane.b32.xlu0 %v3892, 32
    %v4231 = vpop.permute.xlu0 %4230
    %4232 = vrot.lane.b32.xlu0 %v3893, 32
    %v4233 = vpop.permute.xlu0 %4232
    %4234 = vrot.lane.b32.xlu0 %v3894, 32
    %v4235 = vpop.permute.xlu0 %4234
    %4236 = vrot.lane.b32.xlu0 %v3895, 32
    %v4237 = vpop.permute.xlu0 %4236
    %4254 = vrot.lane.b32.xlu0 %v4174, 48
    %v4255 = vpop.permute.xlu0 %4254
    %4256 = vrot.lane.b32.xlu0 %v4175, 48
    %v4257 = vpop.permute.xlu0 %4256
    %4258 = vrot.lane.b32.xlu0 %v4176, 48
    %v4259 = vpop.permute.xlu0 %4258
    %4260 = vrot.lane.b32.xlu0 %v4177, 48
    %v4261 = vpop.permute.xlu0 %4260
    %4262 = vrot.lane.b32.xlu0 %v4178, 48
    %v4263 = vpop.permute.xlu0 %4262
    %4264 = vrot.lane.b32.xlu0 %v4179, 48
    %v4265 = vpop.permute.xlu0 %4264
    %4266 = vrot.lane.b32.xlu0 %v4180, 48
    %v4267 = vpop.permute.xlu0 %4266
    %4268 = vrot.lane.b32.xlu0 %v4181, 48
    %v4269 = vpop.permute.xlu0 %4268
    %v4278 = vsel %vm547, %v3312, %v4191
    %v4279 = vsel %vm547, %v3313, %v4193
    %v4280 = vsel %vm547, %v3314, %v4195
    %v4281 = vsel %vm547, %v3315, %v4197
    %v4282 = vsel %vm547, %v3316, %v4199
    %v4283 = vsel %vm547, %v3317, %v4201
    %v4284 = vsel %vm547, %v3318, %v4203
    %v4285 = vsel %vm547, %v3319, %v4205
    %v4286 = vsel %vm1772, %v4278, %v4223
    %v4287 = vsel %vm1772, %v4279, %v4225
    %v4288 = vsel %vm1772, %v4280, %v4227
    %v4289 = vsel %vm1772, %v4281, %v4229
    %v4290 = vsel %vm1772, %v4282, %v4231
    %v4291 = vsel %vm1772, %v4283, %v4233
    %v4292 = vsel %vm1772, %v4284, %v4235
    %v4293 = vsel %vm1772, %v4285, %v4237
    %v4294 = vsel %vm1781, %v4286, %v4255
    %v4295 = vsel %vm1781, %v4287, %v4257
    %v4296 = vsel %vm1781, %v4288, %v4259
    %v4297 = vsel %vm1781, %v4289, %v4261
    %v4298 = vsel %vm1781, %v4290, %v4263
    %v4299 = vsel %vm1781, %v4291, %v4265
    %v4300 = vsel %vm1781, %v4292, %v4267
    %v4301 = vsel %vm1781, %v4293, %v4269
    %v4302 = vpack.c.bf16 %v4295, %v4294
    %v4303 = vpack.c.bf16 %v4297, %v4296
    %v4304 = vpack.c.bf16 %v4299, %v4298
    %v4305 = vpack.c.bf16 %v4301, %v4300
    %4310 = vrot.lane.b32.xlu0 %v527, 64
    %v4311 = vpop.permute.xlu0 %4310
    %4312 = vrot.lane.b32.xlu0 %v529, 64
    %v4313 = vpop.permute.xlu0 %4312
    %4314 = vrot.lane.b32.xlu0 %v531, 64
    %v4315 = vpop.permute.xlu0 %4314
    %4316 = vrot.lane.b32.xlu0 %v533, 64
    %v4317 = vpop.permute.xlu0 %4316
    %v4319 = vsel %vm547, %v527, 0
    %v4322 = vsel %vm547, %v529, 0
    %v4325 = vsel %vm547, %v531, 0
    %v4328 = vsel %vm547, %v533, 0
    %v4331 = vsel %vm547, %v4311, 0
    %v4334 = vsel %vm547, %v4313, 0
    %v4337 = vsel %vm547, %v4315, 0
    %v4340 = vsel %vm547, %v4317, 0
    %4342 = vmatprep.subr.bf16.mxu0 0
    %4343 = vmatpush1.bf16.xpose.msra.mxu0 %v4331
    %4344 = vmatprep.subr.bf16.mxu0 0
    %4345 = vmatpush1.bf16.xpose.msra.mxu0 %v4334
    %4346 = vmatprep.subr.bf16.mxu0 0
    %4347 = vmatpush1.bf16.xpose.msra.mxu0 %v4337
    %4348 = vmatprep.subr.bf16.mxu0 0
    %4349 = vmatpush1.bf16.xpose.msra.mxu0 %v4340
    %4350 = vmatprep.subr.bf16.mxu0 0
    %4351 = vmatpush1.bf16.xpose.msra.mxu0 0
    %4352 = vmatprep.subr.bf16.mxu0 0
    %4353 = vmatpush1.bf16.xpose.msra.mxu0 0
    %4354 = vmatprep.subr.bf16.mxu0 0
    %4355 = vmatpush1.bf16.xpose.msra.mxu0 0
    %4356 = vmatprep.subr.bf16.mxu0 0
    %4357 = vmatpush1.bf16.xpose.msra.mxu0 0
    %4358 = vmatprep.subr.bf16.mxu0 0
    %4359 = vmatpush1.bf16.xpose.msra.mxu0 0
    %4360 = vmatprep.subr.bf16.mxu0 0
    %4361 = vmatpush1.bf16.xpose.msra.mxu0 0
    %4362 = vmatprep.subr.bf16.mxu0 0
    %4363 = vmatpush1.bf16.xpose.msra.mxu0 0
    %4364 = vmatprep.subr.bf16.mxu0 0
    %4365 = vmatpush1.bf16.xpose.msra.mxu0 0
    %4366 = vmatprep.subr.bf16.mxu0 0
    %4367 = vmatpush1.bf16.xpose.msra.mxu0 0
    %4368 = vmatprep.subr.bf16.mxu0 0
    %4369 = vmatpush1.bf16.xpose.msra.mxu0 0
    %4370 = vmatprep.subr.bf16.mxu0 0
    %4371 = vmatpush1.bf16.xpose.msra.mxu0 0
    %4372 = vmatprep.subr.bf16.mxu0 0
    %4373 = vmatpush1.bf16.xpose.msra.mxu0 0
    %4374 = vmatprep.mubr.bf16.mxu0 0
    %4375 = vmatmul.mubr.bf16.gmra.mrb[0].mxu0 %v4319
    %v4376 = vpop.f32.mrb[0].mxu0
    %v4377 = vadd.f32 %v121, %v4376
    %v4378 = vpop.f32.mrb[0].mxu0
    %v4379 = vpop.f32.mrb[0].mxu0
    %v4380 = vadd.f32 %v122, %v4379
    %v4381 = vpop.f32.mrb[0].mxu0
    %4382 = vmatprep.mubr.bf16.mxu0 0
    %4383 = vmatmul.mubr.bf16.gmra.mrb[0].mxu0 %v4322
    %v4384 = vpop.f32.mrb[0].mxu0
    %v4385 = vadd.f32 %v123, %v4384
    %v4386 = vpop.f32.mrb[0].mxu0
    %v4387 = vpop.f32.mrb[0].mxu0
    %v4388 = vadd.f32 %v124, %v4387
    %v4389 = vpop.f32.mrb[0].mxu0
    %4390 = vmatprep.mubr.bf16.mxu0 0
    %4391 = vmatmul.mubr.bf16.gmra.mrb[0].mxu0 %v4325
    %v4392 = vpop.f32.mrb[0].mxu0
    %v4393 = vadd.f32 %v125, %v4392
    %v4394 = vpop.f32.mrb[0].mxu0
    %v4395 = vpop.f32.mrb[0].mxu0
    %v4396 = vadd.f32 %v126, %v4395
    %v4397 = vpop.f32.mrb[0].mxu0
    %4398 = vmatprep.mubr.bf16.mxu0 0
    %4399 = vmatmul.mubr.bf16.gmra.mrb[0].mxu0 %v4328
    %v4400 = vpop.f32.mrb[0].mxu0
    %v4401 = vadd.f32 %v127, %v4400
    %v4402 = vpop.f32.mrb[0].mxu0
    %v4403 = vpop.f32.mrb[0].mxu0
    %v4404 = vadd.f32 %v128, %v4403
    %v4405 = vpop.f32.mrb[0].mxu0
    %4406 = vdwg.mxu0
    %v4407 = vsel %vm261, %v4377, -inf
    %4408 = vmax.xlane.f32.xlu0 %v4407
    %v4409 = vpop.xlane.xlu0 %4408
    %v4410 = vsel %vm261, %v4380, -inf
    %4411 = vmax.xlane.f32.xlu0 %v4410
    %v4412 = vpop.xlane.xlu0 %4411
    %v4413 = vsel %vm261, %v4385, -inf
    %4414 = vmax.xlane.f32.xlu0 %v4413
    %v4415 = vpop.xlane.xlu0 %4414
    %v4416 = vsel %vm261, %v4388, -inf
    %4417 = vmax.xlane.f32.xlu0 %v4416
    %v4418 = vpop.xlane.xlu0 %4417
    %v4419 = vsel %vm261, %v4393, -inf
    %4420 = vmax.xlane.f32.xlu0 %v4419
    %v4421 = vpop.xlane.xlu0 %4420
    %v4422 = vsel %vm261, %v4396, -inf
    %4423 = vmax.xlane.f32.xlu0 %v4422
    %v4424 = vpop.xlane.xlu0 %4423
    %v4425 = vsel %vm261, %v4401, -inf
    %4426 = vmax.xlane.f32.xlu0 %v4425
    %v4427 = vpop.xlane.xlu0 %4426
    %v4428 = vsel %vm261, %v4404, -inf
    %4429 = vmax.xlane.f32.xlu0 %v4428
    %v4430 = vpop.xlane.xlu0 %4429
    %v4431 = vsub.f32 %v4377, %v4409
    %v4432 = vsub.f32 %v4380, %v4412
    %v4433 = vsub.f32 %v4385, %v4415
    %v4434 = vsub.f32 %v4388, %v4418
    %v4435 = vsub.f32 %v4393, %v4421
    %v4436 = vsub.f32 %v4396, %v4424
    %v4437 = vsub.f32 %v4401, %v4427
    %v4438 = vsub.f32 %v4404, %v4430
    %v4439 = vmul.f32 %v4431, 1.442695
    %v4440 = vpow.pop %v4439
    %v4441 = vmul.f32 %v4432, 1.442695
    %v4442 = vpow.pop %v4441
    %v4443 = vmul.f32 %v4433, 1.442695
    %v4444 = vpow.pop %v4443
    %v4445 = vmul.f32 %v4434, 1.442695
    %v4446 = vpow.pop %v4445
    %v4447 = vmul.f32 %v4435, 1.442695
    %v4448 = vpow.pop %v4447
    %v4449 = vmul.f32 %v4436, 1.442695
    %v4450 = vpow.pop %v4449
    %v4451 = vmul.f32 %v4437, 1.442695
    %v4452 = vpow.pop %v4451
    %v4453 = vmul.f32 %v4438, 1.442695
    %v4454 = vpow.pop %v4453
    %v4455 = vsel %vm261, %v4440, 0.0
    %4456 = vadd.xlane.f32.xlu0 %v4455
    %v4457 = vpop.xlane.xlu0 %4456
    %v4458 = vsel %vm261, %v4442, 0.0
    %4459 = vadd.xlane.f32.xlu0 %v4458
    %v4460 = vpop.xlane.xlu0 %4459
    %v4461 = vsel %vm261, %v4444, 0.0
    %4462 = vadd.xlane.f32.xlu0 %v4461
    %v4463 = vpop.xlane.xlu0 %4462
    %v4464 = vsel %vm261, %v4446, 0.0
    %4465 = vadd.xlane.f32.xlu0 %v4464
    %v4466 = vpop.xlane.xlu0 %4465
    %v4467 = vsel %vm261, %v4448, 0.0
    %4468 = vadd.xlane.f32.xlu0 %v4467
    %v4469 = vpop.xlane.xlu0 %4468
    %v4470 = vsel %vm261, %v4450, 0.0
    %4471 = vadd.xlane.f32.xlu0 %v4470
    %v4472 = vpop.xlane.xlu0 %4471
    %v4473 = vsel %vm261, %v4452, 0.0
    %4474 = vadd.xlane.f32.xlu0 %v4473
    %v4475 = vpop.xlane.xlu0 %4474
    %v4476 = vsel %vm261, %v4454, 0.0
    %4477 = vadd.xlane.f32.xlu0 %v4476
    %v4478 = vpop.xlane.xlu0 %4477
    %v4479 = vpack.c.bf16 %v4442, %v4440
    %v4480 = vpack.c.bf16 %v4446, %v4444
    %v4481 = vpack.c.bf16 %v4450, %v4448
    %v4482 = vpack.c.bf16 %v4454, %v4452
    %v4484 = vsel %vm261, %v4479, 0
    %v4487 = vsel %vm261, %v4480, 0
    %v4490 = vsel %vm261, %v4481, 0
    %v4493 = vsel %vm261, %v4482, 0
    %4495 = vmatprep.subr.bf16.mxu0 0
    %4496 = vmatpush1.bf16.msra.mxu0 %v528
    %4497 = vmatprep.subr.bf16.mxu0 0
    %4498 = vmatpush1.bf16.msra.mxu0 %v530
    %4499 = vmatprep.subr.bf16.mxu0 0
    %4500 = vmatpush1.bf16.msra.mxu0 %v532
    %4501 = vmatprep.subr.bf16.mxu0 0
    %4502 = vmatpush1.bf16.msra.mxu0 %v534
    %4503 = vmatprep.subr.bf16.mxu0 0
    %4504 = vmatpush1.bf16.msra.mxu0 0
    %4505 = vmatprep.subr.bf16.mxu0 0
    %4506 = vmatpush1.bf16.msra.mxu0 0
    %4507 = vmatprep.subr.bf16.mxu0 0
    %4508 = vmatpush1.bf16.msra.mxu0 0
    %4509 = vmatprep.subr.bf16.mxu0 0
    %4510 = vmatpush1.bf16.msra.mxu0 0
    %4511 = vmatprep.subr.bf16.mxu0 0
    %4512 = vmatpush1.bf16.msra.mxu0 0
    %4513 = vmatprep.subr.bf16.mxu0 0
    %4514 = vmatpush1.bf16.msra.mxu0 0
    %4515 = vmatprep.subr.bf16.mxu0 0
    %4516 = vmatpush1.bf16.msra.mxu0 0
    %4517 = vmatprep.subr.bf16.mxu0 0
    %4518 = vmatpush1.bf16.msra.mxu0 0
    %4519 = vmatprep.subr.bf16.mxu0 0
    %4520 = vmatpush1.bf16.msra.mxu0 0
    %4521 = vmatprep.subr.bf16.mxu0 0
    %4522 = vmatpush1.bf16.msra.mxu0 0
    %4523 = vmatprep.subr.bf16.mxu0 0
    %4524 = vmatpush1.bf16.msra.mxu0 0
    %4525 = vmatprep.subr.bf16.mxu0 0
    %4526 = vmatpush1.bf16.msra.mxu0 0
    %4527 = vmatprep.mubr.bf16.mxu0 0
    %4528 = vmatmul.mubr.bf16.gmra.mrb[0].mxu0 %v4484
    %v4529 = vpop.f32.mrb[0].mxu0
    %v4530 = vadd.f32 0.0, %v4529
    %v4531 = vpop.f32.mrb[0].mxu0
    %v4532 = vpop.f32.mrb[0].mxu0
    %v4533 = vadd.f32 0.0, %v4532
    %v4534 = vpop.f32.mrb[0].mxu0
    %4535 = vmatprep.mubr.bf16.mxu0 0
    %4536 = vmatmul.mubr.bf16.gmra.mrb[0].mxu0 %v4487
    %v4537 = vpop.f32.mrb[0].mxu0
    %v4538 = vadd.f32 0.0, %v4537
    %v4539 = vpop.f32.mrb[0].mxu0
    %v4540 = vpop.f32.mrb[0].mxu0
    %v4541 = vadd.f32 0.0, %v4540
    %v4542 = vpop.f32.mrb[0].mxu0
    %4543 = vmatprep.mubr.bf16.mxu0 0
    %4544 = vmatmul.mubr.bf16.gmra.mrb[0].mxu0 %v4490
    %v4545 = vpop.f32.mrb[0].mxu0
    %v4546 = vadd.f32 0.0, %v4545
    %v4547 = vpop.f32.mrb[0].mxu0
    %v4548 = vpop.f32.mrb[0].mxu0
    %v4549 = vadd.f32 0.0, %v4548
    %v4550 = vpop.f32.mrb[0].mxu0
    %4551 = vmatprep.mubr.bf16.mxu0 0
    %4552 = vmatmul.mubr.bf16.gmra.mrb[0].mxu0 %v4493
    %v4553 = vpop.f32.mrb[0].mxu0
    %v4554 = vadd.f32 0.0, %v4553
    %v4555 = vpop.f32.mrb[0].mxu0
    %v4556 = vpop.f32.mrb[0].mxu0
    %v4557 = vadd.f32 0.0, %v4556
    %v4558 = vpop.f32.mrb[0].mxu0
    %4559 = vdwg.mxu0
    %v4560 = vrcp.pop %v4457
    %v4561 = vrcp.pop %v4460
    %v4562 = vrcp.pop %v4463
    %v4563 = vrcp.pop %v4466
    %v4564 = vrcp.pop %v4469
    %v4565 = vrcp.pop %v4472
    %v4566 = vrcp.pop %v4475
    %v4567 = vrcp.pop %v4478
    %v4568 = vmul.f32 %v4530, %v4560
    %v4569 = vmul.f32 %v4533, %v4561
    %v4570 = vmul.f32 %v4538, %v4562
    %v4571 = vmul.f32 %v4541, %v4563
    %v4572 = vmul.f32 %v4546, %v4564
    %v4573 = vmul.f32 %v4549, %v4565
    %v4574 = vmul.f32 %v4554, %v4566
    %v4575 = vmul.f32 %v4557, %v4567
    %4576 = vrot.lane.b32.xlu0 %v527, 112
    %v4577 = vpop.permute.xlu0 %4576
    %4578 = vrot.lane.b32.xlu0 %v529, 112
    %v4579 = vpop.permute.xlu0 %4578
    %4580 = vrot.lane.b32.xlu0 %v531, 112
    %v4581 = vpop.permute.xlu0 %4580
    %4582 = vrot.lane.b32.xlu0 %v533, 112
    %v4583 = vpop.permute.xlu0 %4582
    %4584 = vrot.lane.b32.xlu0 %v527, 48
    %v4585 = vpop.permute.xlu0 %4584
    %4586 = vrot.lane.b32.xlu0 %v529, 48
    %v4587 = vpop.permute.xlu0 %4586
    %4588 = vrot.lane.b32.xlu0 %v531, 48
    %v4589 = vpop.permute.xlu0 %4588
    %4590 = vrot.lane.b32.xlu0 %v533, 48
    %v4591 = vpop.permute.xlu0 %4590
    %v4593 = vsel %vm547, %v4577, 0
    %v4596 = vsel %vm547, %v4579, 0
    %v4599 = vsel %vm547, %v4581, 0
    %v4602 = vsel %vm547, %v4583, 0
    %v4605 = vsel %vm547, %v4585, 0
    %v4608 = vsel %vm547, %v4587, 0
    %v4611 = vsel %vm547, %v4589, 0
    %v4614 = vsel %vm547, %v4591, 0
    %4616 = vmatprep.subr.bf16.mxu0 0
    %4617 = vmatpush1.bf16.xpose.msra.mxu0 %v4605
    %4618 = vmatprep.subr.bf16.mxu0 0
    %4619 = vmatpush1.bf16.xpose.msra.mxu0 %v4608
    %4620 = vmatprep.subr.bf16.mxu0 0
    %4621 = vmatpush1.bf16.xpose.msra.mxu0 %v4611
    %4622 = vmatprep.subr.bf16.mxu0 0
    %4623 = vmatpush1.bf16.xpose.msra.mxu0 %v4614
    %4624 = vmatprep.subr.bf16.mxu0 0
    %4625 = vmatpush1.bf16.xpose.msra.mxu0 0
    %4626 = vmatprep.subr.bf16.mxu0 0
    %4627 = vmatpush1.bf16.xpose.msra.mxu0 0
    %4628 = vmatprep.subr.bf16.mxu0 0
    %4629 = vmatpush1.bf16.xpose.msra.mxu0 0
    %4630 = vmatprep.subr.bf16.mxu0 0
    %4631 = vmatpush1.bf16.xpose.msra.mxu0 0
    %4632 = vmatprep.subr.bf16.mxu0 0
    %4633 = vmatpush1.bf16.xpose.msra.mxu0 0
    %4634 = vmatprep.subr.bf16.mxu0 0
    %4635 = vmatpush1.bf16.xpose.msra.mxu0 0
    %4636 = vmatprep.subr.bf16.mxu0 0
    %4637 = vmatpush1.bf16.xpose.msra.mxu0 0
    %4638 = vmatprep.subr.bf16.mxu0 0
    %4639 = vmatpush1.bf16.xpose.msra.mxu0 0
    %4640 = vmatprep.subr.bf16.mxu0 0
    %4641 = vmatpush1.bf16.xpose.msra.mxu0 0
    %4642 = vmatprep.subr.bf16.mxu0 0
    %4643 = vmatpush1.bf16.xpose.msra.mxu0 0
    %4644 = vmatprep.subr.bf16.mxu0 0
    %4645 = vmatpush1.bf16.xpose.msra.mxu0 0
    %4646 = vmatprep.subr.bf16.mxu0 0
    %4647 = vmatpush1.bf16.xpose.msra.mxu0 0
    %4648 = vmatprep.mubr.bf16.mxu0 0
    %4649 = vmatmul.mubr.bf16.gmra.mrb[0].mxu0 %v4593
    %v4650 = vpop.f32.mrb[0].mxu0
    %v4651 = vadd.f32 %v129, %v4650
    %v4652 = vpop.f32.mrb[0].mxu0
    %v4653 = vpop.f32.mrb[0].mxu0
    %v4654 = vadd.f32 %v130, %v4653
    %v4655 = vpop.f32.mrb[0].mxu0
    %4656 = vmatprep.mubr.bf16.mxu0 0
    %4657 = vmatmul.mubr.bf16.gmra.mrb[0].mxu0 %v4596
    %v4658 = vpop.f32.mrb[0].mxu0
    %v4659 = vadd.f32 %v131, %v4658
    %v4660 = vpop.f32.mrb[0].mxu0
    %v4661 = vpop.f32.mrb[0].mxu0
    %v4662 = vadd.f32 %v132, %v4661
    %v4663 = vpop.f32.mrb[0].mxu0
    %4664 = vmatprep.mubr.bf16.mxu0 0
    %4665 = vmatmul.mubr.bf16.gmra.mrb[0].mxu0 %v4599
    %v4666 = vpop.f32.mrb[0].mxu0
    %v4667 = vadd.f32 %v133, %v4666
    %v4668 = vpop.f32.mrb[0].mxu0
    %v4669 = vpop.f32.mrb[0].mxu0
    %v4670 = vadd.f32 %v134, %v4669
    %v4671 = vpop.f32.mrb[0].mxu0
    %4672 = vmatprep.mubr.bf16.mxu0 0
    %4673 = vmatmul.mubr.bf16.gmra.mrb[0].mxu0 %v4602
    %v4674 = vpop.f32.mrb[0].mxu0
    %v4675 = vadd.f32 %v135, %v4674
    %v4676 = vpop.f32.mrb[0].mxu0
    %v4677 = vpop.f32.mrb[0].mxu0
    %v4678 = vadd.f32 %v136, %v4677
    %v4679 = vpop.f32.mrb[0].mxu0
    %4680 = vdwg.mxu0
    %v4681 = vsel %vm261, %v4651, -inf
    %4682 = vmax.xlane.f32.xlu0 %v4681
    %v4683 = vpop.xlane.xlu0 %4682
    %v4684 = vsel %vm261, %v4654, -inf
    %4685 = vmax.xlane.f32.xlu0 %v4684
    %v4686 = vpop.xlane.xlu0 %4685
    %v4687 = vsel %vm261, %v4659, -inf
    %4688 = vmax.xlane.f32.xlu0 %v4687
    %v4689 = vpop.xlane.xlu0 %4688
    %v4690 = vsel %vm261, %v4662, -inf
    %4691 = vmax.xlane.f32.xlu0 %v4690
    %v4692 = vpop.xlane.xlu0 %4691
    %v4693 = vsel %vm261, %v4667, -inf
    %4694 = vmax.xlane.f32.xlu0 %v4693
    %v4695 = vpop.xlane.xlu0 %4694
    %v4696 = vsel %vm261, %v4670, -inf
    %4697 = vmax.xlane.f32.xlu0 %v4696
    %v4698 = vpop.xlane.xlu0 %4697
    %v4699 = vsel %vm261, %v4675, -inf
    %4700 = vmax.xlane.f32.xlu0 %v4699
    %v4701 = vpop.xlane.xlu0 %4700
    %v4702 = vsel %vm261, %v4678, -inf
    %4703 = vmax.xlane.f32.xlu0 %v4702
    %v4704 = vpop.xlane.xlu0 %4703
    %v4705 = vsub.f32 %v4651, %v4683
    %v4706 = vsub.f32 %v4654, %v4686
    %v4707 = vsub.f32 %v4659, %v4689
    %v4708 = vsub.f32 %v4662, %v4692
    %v4709 = vsub.f32 %v4667, %v4695
    %v4710 = vsub.f32 %v4670, %v4698
    %v4711 = vsub.f32 %v4675, %v4701
    %v4712 = vsub.f32 %v4678, %v4704
    %v4713 = vmul.f32 %v4705, 1.442695
    %v4714 = vpow.pop %v4713
    %v4715 = vmul.f32 %v4706, 1.442695
    %v4716 = vpow.pop %v4715
    %v4717 = vmul.f32 %v4707, 1.442695
    %v4718 = vpow.pop %v4717
    %v4719 = vmul.f32 %v4708, 1.442695
    %v4720 = vpow.pop %v4719
    %v4721 = vmul.f32 %v4709, 1.442695
    %v4722 = vpow.pop %v4721
    %v4723 = vmul.f32 %v4710, 1.442695
    %v4724 = vpow.pop %v4723
    %v4725 = vmul.f32 %v4711, 1.442695
    %v4726 = vpow.pop %v4725
    %v4727 = vmul.f32 %v4712, 1.442695
    %v4728 = vpow.pop %v4727
    %v4729 = vsel %vm261, %v4714, 0.0
    %4730 = vadd.xlane.f32.xlu0 %v4729
    %v4731 = vpop.xlane.xlu0 %4730
    %v4732 = vsel %vm261, %v4716, 0.0
    %4733 = vadd.xlane.f32.xlu0 %v4732
    %v4734 = vpop.xlane.xlu0 %4733
    %v4735 = vsel %vm261, %v4718, 0.0
    %4736 = vadd.xlane.f32.xlu0 %v4735
    %v4737 = vpop.xlane.xlu0 %4736
    %v4738 = vsel %vm261, %v4720, 0.0
    %4739 = vadd.xlane.f32.xlu0 %v4738
    %v4740 = vpop.xlane.xlu0 %4739
    %v4741 = vsel %vm261, %v4722, 0.0
    %4742 = vadd.xlane.f32.xlu0 %v4741
    %v4743 = vpop.xlane.xlu0 %4742
    %v4744 = vsel %vm261, %v4724, 0.0
    %4745 = vadd.xlane.f32.xlu0 %v4744
    %v4746 = vpop.xlane.xlu0 %4745
    %v4747 = vsel %vm261, %v4726, 0.0
    %4748 = vadd.xlane.f32.xlu0 %v4747
    %v4749 = vpop.xlane.xlu0 %4748
    %v4750 = vsel %vm261, %v4728, 0.0
    %4751 = vadd.xlane.f32.xlu0 %v4750
    %v4752 = vpop.xlane.xlu0 %4751
    %v4753 = vpack.c.bf16 %v4716, %v4714
    %v4754 = vpack.c.bf16 %v4720, %v4718
    %v4755 = vpack.c.bf16 %v4724, %v4722
    %v4756 = vpack.c.bf16 %v4728, %v4726
    %4761 = vrot.lane.b32.xlu0 %v528, 112
    %v4762 = vpop.permute.xlu0 %4761
    %4763 = vrot.lane.b32.xlu0 %v530, 112
    %v4764 = vpop.permute.xlu0 %4763
    %4765 = vrot.lane.b32.xlu0 %v532, 112
    %v4766 = vpop.permute.xlu0 %4765
    %4767 = vrot.lane.b32.xlu0 %v534, 112
    %v4768 = vpop.permute.xlu0 %4767
    %v4774 = vsel %vm261, %v4753, 0
    %v4777 = vsel %vm261, %v4754, 0
    %v4780 = vsel %vm261, %v4755, 0
    %v4783 = vsel %vm261, %v4756, 0
    %4785 = vmatprep.subr.bf16.mxu0 0
    %4786 = vmatpush1.bf16.msra.mxu0 %v4762
    %4787 = vmatprep.subr.bf16.mxu0 0
    %4788 = vmatpush1.bf16.msra.mxu0 %v4764
    %4789 = vmatprep.subr.bf16.mxu0 0
    %4790 = vmatpush1.bf16.msra.mxu0 %v4766
    %4791 = vmatprep.subr.bf16.mxu0 0
    %4792 = vmatpush1.bf16.msra.mxu0 %v4768
    %4793 = vmatprep.subr.bf16.mxu0 0
    %4794 = vmatpush1.bf16.msra.mxu0 0
    %4795 = vmatprep.subr.bf16.mxu0 0
    %4796 = vmatpush1.bf16.msra.mxu0 0
    %4797 = vmatprep.subr.bf16.mxu0 0
    %4798 = vmatpush1.bf16.msra.mxu0 0
    %4799 = vmatprep.subr.bf16.mxu0 0
    %4800 = vmatpush1.bf16.msra.mxu0 0
    %4801 = vmatprep.subr.bf16.mxu0 0
    %4802 = vmatpush1.bf16.msra.mxu0 0
    %4803 = vmatprep.subr.bf16.mxu0 0
    %4804 = vmatpush1.bf16.msra.mxu0 0
    %4805 = vmatprep.subr.bf16.mxu0 0
    %4806 = vmatpush1.bf16.msra.mxu0 0
    %4807 = vmatprep.subr.bf16.mxu0 0
    %4808 = vmatpush1.bf16.msra.mxu0 0
    %4809 = vmatprep.subr.bf16.mxu0 0
    %4810 = vmatpush1.bf16.msra.mxu0 0
    %4811 = vmatprep.subr.bf16.mxu0 0
    %4812 = vmatpush1.bf16.msra.mxu0 0
    %4813 = vmatprep.subr.bf16.mxu0 0
    %4814 = vmatpush1.bf16.msra.mxu0 0
    %4815 = vmatprep.subr.bf16.mxu0 0
    %4816 = vmatpush1.bf16.msra.mxu0 0
    %4817 = vmatprep.mubr.bf16.mxu0 0
    %4818 = vmatmul.mubr.bf16.gmra.mrb[0].mxu0 %v4774
    %v4819 = vpop.f32.mrb[0].mxu0
    %v4820 = vadd.f32 0.0, %v4819
    %v4821 = vpop.f32.mrb[0].mxu0
    %v4822 = vpop.f32.mrb[0].mxu0
    %v4823 = vadd.f32 0.0, %v4822
    %v4824 = vpop.f32.mrb[0].mxu0
    %4825 = vmatprep.mubr.bf16.mxu0 0
    %4826 = vmatmul.mubr.bf16.gmra.mrb[0].mxu0 %v4777
    %v4827 = vpop.f32.mrb[0].mxu0
    %v4828 = vadd.f32 0.0, %v4827
    %v4829 = vpop.f32.mrb[0].mxu0
    %v4830 = vpop.f32.mrb[0].mxu0
    %v4831 = vadd.f32 0.0, %v4830
    %v4832 = vpop.f32.mrb[0].mxu0
    %4833 = vmatprep.mubr.bf16.mxu0 0
    %4834 = vmatmul.mubr.bf16.gmra.mrb[0].mxu0 %v4780
    %v4835 = vpop.f32.mrb[0].mxu0
    %v4836 = vadd.f32 0.0, %v4835
    %v4837 = vpop.f32.mrb[0].mxu0
    %v4838 = vpop.f32.mrb[0].mxu0
    %v4839 = vadd.f32 0.0, %v4838
    %v4840 = vpop.f32.mrb[0].mxu0
    %4841 = vmatprep.mubr.bf16.mxu0 0
    %4842 = vmatmul.mubr.bf16.gmra.mrb[0].mxu0 %v4783
    %v4843 = vpop.f32.mrb[0].mxu0
    %v4844 = vadd.f32 0.0, %v4843
    %v4845 = vpop.f32.mrb[0].mxu0
    %v4846 = vpop.f32.mrb[0].mxu0
    %v4847 = vadd.f32 0.0, %v4846
    %v4848 = vpop.f32.mrb[0].mxu0
    %4849 = vdwg.mxu0
    %v4850 = vrcp.pop %v4731
    %v4851 = vrcp.pop %v4734
    %v4852 = vrcp.pop %v4737
    %v4853 = vrcp.pop %v4740
    %v4854 = vrcp.pop %v4743
    %v4855 = vrcp.pop %v4746
    %v4856 = vrcp.pop %v4749
    %v4857 = vrcp.pop %v4752
    %v4858 = vmul.f32 %v4820, %v4850
    %v4859 = vmul.f32 %v4823, %v4851
    %v4860 = vmul.f32 %v4828, %v4852
    %v4861 = vmul.f32 %v4831, %v4853
    %v4862 = vmul.f32 %v4836, %v4854
    %v4863 = vmul.f32 %v4839, %v4855
    %v4864 = vmul.f32 %v4844, %v4856
    %v4865 = vmul.f32 %v4847, %v4857
    %4866 = vrot.lane.b32.xlu0 %v527, 96
    %v4867 = vpop.permute.xlu0 %4866
    %4868 = vrot.lane.b32.xlu0 %v529, 96
    %v4869 = vpop.permute.xlu0 %4868
    %4870 = vrot.lane.b32.xlu0 %v531, 96
    %v4871 = vpop.permute.xlu0 %4870
    %4872 = vrot.lane.b32.xlu0 %v533, 96
    %v4873 = vpop.permute.xlu0 %4872
    %4874 = vrot.lane.b32.xlu0 %v527, 32
    %v4875 = vpop.permute.xlu0 %4874
    %4876 = vrot.lane.b32.xlu0 %v529, 32
    %v4877 = vpop.permute.xlu0 %4876
    %4878 = vrot.lane.b32.xlu0 %v531, 32
    %v4879 = vpop.permute.xlu0 %4878
    %4880 = vrot.lane.b32.xlu0 %v533, 32
    %v4881 = vpop.permute.xlu0 %4880
    %v4883 = vsel %vm547, %v4867, 0
    %v4886 = vsel %vm547, %v4869, 0
    %v4889 = vsel %vm547, %v4871, 0
    %v4892 = vsel %vm547, %v4873, 0
    %v4895 = vsel %vm547, %v4875, 0
    %v4898 = vsel %vm547, %v4877, 0
    %v4901 = vsel %vm547, %v4879, 0
    %v4904 = vsel %vm547, %v4881, 0
    %4906 = vmatprep.subr.bf16.mxu0 0
    %4907 = vmatpush1.bf16.xpose.msra.mxu0 %v4895
    %4908 = vmatprep.subr.bf16.mxu0 0
    %4909 = vmatpush1.bf16.xpose.msra.mxu0 %v4898
    %4910 = vmatprep.subr.bf16.mxu0 0
    %4911 = vmatpush1.bf16.xpose.msra.mxu0 %v4901
    %4912 = vmatprep.subr.bf16.mxu0 0
    %4913 = vmatpush1.bf16.xpose.msra.mxu0 %v4904
    %4914 = vmatprep.subr.bf16.mxu0 0
    %4915 = vmatpush1.bf16.xpose.msra.mxu0 0
    %4916 = vmatprep.subr.bf16.mxu0 0
    %4917 = vmatpush1.bf16.xpose.msra.mxu0 0
    %4918 = vmatprep.subr.bf16.mxu0 0
    %4919 = vmatpush1.bf16.xpose.msra.mxu0 0
    %4920 = vmatprep.subr.bf16.mxu0 0
    %4921 = vmatpush1.bf16.xpose.msra.mxu0 0
    %4922 = vmatprep.subr.bf16.mxu0 0
    %4923 = vmatpush1.bf16.xpose.msra.mxu0 0
    %4924 = vmatprep.subr.bf16.mxu0 0
    %4925 = vmatpush1.bf16.xpose.msra.mxu0 0
    %4926 = vmatprep.subr.bf16.mxu0 0
    %4927 = vmatpush1.bf16.xpose.msra.mxu0 0
    %4928 = vmatprep.subr.bf16.mxu0 0
    %4929 = vmatpush1.bf16.xpose.msra.mxu0 0
    %4930 = vmatprep.subr.bf16.mxu0 0
    %4931 = vmatpush1.bf16.xpose.msra.mxu0 0
    %4932 = vmatprep.subr.bf16.mxu0 0
    %4933 = vmatpush1.bf16.xpose.msra.mxu0 0
    %4934 = vmatprep.subr.bf16.mxu0 0
    %4935 = vmatpush1.bf16.xpose.msra.mxu0 0
    %4936 = vmatprep.subr.bf16.mxu0 0
    %4937 = vmatpush1.bf16.xpose.msra.mxu0 0
    %4938 = vmatprep.mubr.bf16.mxu0 0
    %4939 = vmatmul.mubr.bf16.gmra.mrb[0].mxu0 %v4883
    %v4940 = vpop.f32.mrb[0].mxu0
    %v4941 = vadd.f32 %v137, %v4940
    %v4942 = vpop.f32.mrb[0].mxu0
    %v4943 = vpop.f32.mrb[0].mxu0
    %v4944 = vadd.f32 %v138, %v4943
    %v4945 = vpop.f32.mrb[0].mxu0
    %4946 = vmatprep.mubr.bf16.mxu0 0
    %4947 = vmatmul.mubr.bf16.gmra.mrb[0].mxu0 %v4886
    %v4948 = vpop.f32.mrb[0].mxu0
    %v4949 = vadd.f32 %v139, %v4948
    %v4950 = vpop.f32.mrb[0].mxu0
    %v4951 = vpop.f32.mrb[0].mxu0
    %v4952 = vadd.f32 %v140, %v4951
    %v4953 = vpop.f32.mrb[0].mxu0
    %4954 = vmatprep.mubr.bf16.mxu0 0
    %4955 = vmatmul.mubr.bf16.gmra.mrb[0].mxu0 %v4889
    %v4956 = vpop.f32.mrb[0].mxu0
    %v4957 = vadd.f32 %v141, %v4956
    %v4958 = vpop.f32.mrb[0].mxu0
    %v4959 = vpop.f32.mrb[0].mxu0
    %v4960 = vadd.f32 %v142, %v4959
    %v4961 = vpop.f32.mrb[0].mxu0
    %4962 = vmatprep.mubr.bf16.mxu0 0
    %4963 = vmatmul.mubr.bf16.gmra.mrb[0].mxu0 %v4892
    %v4964 = vpop.f32.mrb[0].mxu0
    %v4965 = vadd.f32 %v143, %v4964
    %v4966 = vpop.f32.mrb[0].mxu0
    %v4967 = vpop.f32.mrb[0].mxu0
    %v4968 = vadd.f32 %v144, %v4967
    %v4969 = vpop.f32.mrb[0].mxu0
    %4970 = vdwg.mxu0
    %v4971 = vsel %vm261, %v4941, -inf
    %4972 = vmax.xlane.f32.xlu0 %v4971
    %v4973 = vpop.xlane.xlu0 %4972
    %v4974 = vsel %vm261, %v4944, -inf
    %4975 = vmax.xlane.f32.xlu0 %v4974
    %v4976 = vpop.xlane.xlu0 %4975
    %v4977 = vsel %vm261, %v4949, -inf
    %4978 = vmax.xlane.f32.xlu0 %v4977
    %v4979 = vpop.xlane.xlu0 %4978
    %v4980 = vsel %vm261, %v4952, -inf
    %4981 = vmax.xlane.f32.xlu0 %v4980
    %v4982 = vpop.xlane.xlu0 %4981
    %v4983 = vsel %vm261, %v4957, -inf
    %4984 = vmax.xlane.f32.xlu0 %v4983
    %v4985 = vpop.xlane.xlu0 %4984
    %v4986 = vsel %vm261, %v4960, -inf
    %4987 = vmax.xlane.f32.xlu0 %v4986
    %v4988 = vpop.xlane.xlu0 %4987
    %v4989 = vsel %vm261, %v4965, -inf
    %4990 = vmax.xlane.f32.xlu0 %v4989
    %v4991 = vpop.xlane.xlu0 %4990
    %v4992 = vsel %vm261, %v4968, -inf
    %4993 = vmax.xlane.f32.xlu0 %v4992
    %v4994 = vpop.xlane.xlu0 %4993
    %v4995 = vsub.f32 %v4941, %v4973
    %v4996 = vsub.f32 %v4944, %v4976
    %v4997 = vsub.f32 %v4949, %v4979
    %v4998 = vsub.f32 %v4952, %v4982
    %v4999 = vsub.f32 %v4957, %v4985
    %v5000 = vsub.f32 %v4960, %v4988
    %v5001 = vsub.f32 %v4965, %v4991
    %v5002 = vsub.f32 %v4968, %v4994
    %v5003 = vmul.f32 %v4995, 1.442695
    %v5004 = vpow.pop %v5003
    %v5005 = vmul.f32 %v4996, 1.442695
    %v5006 = vpow.pop %v5005
    %v5007 = vmul.f32 %v4997, 1.442695
    %v5008 = vpow.pop %v5007
    %v5009 = vmul.f32 %v4998, 1.442695
    %v5010 = vpow.pop %v5009
    %v5011 = vmul.f32 %v4999, 1.442695
    %v5012 = vpow.pop %v5011
    %v5013 = vmul.f32 %v5000, 1.442695
    %v5014 = vpow.pop %v5013
    %v5015 = vmul.f32 %v5001, 1.442695
    %v5016 = vpow.pop %v5015
    %v5017 = vmul.f32 %v5002, 1.442695
    %v5018 = vpow.pop %v5017
    %v5019 = vsel %vm261, %v5004, 0.0
    %5020 = vadd.xlane.f32.xlu0 %v5019
    %v5021 = vpop.xlane.xlu0 %5020
    %v5022 = vsel %vm261, %v5006, 0.0
    %5023 = vadd.xlane.f32.xlu0 %v5022
    %v5024 = vpop.xlane.xlu0 %5023
    %v5025 = vsel %vm261, %v5008, 0.0
    %5026 = vadd.xlane.f32.xlu0 %v5025
    %v5027 = vpop.xlane.xlu0 %5026
    %v5028 = vsel %vm261, %v5010, 0.0
    %5029 = vadd.xlane.f32.xlu0 %v5028
    %v5030 = vpop.xlane.xlu0 %5029
    %v5031 = vsel %vm261, %v5012, 0.0
    %5032 = vadd.xlane.f32.xlu0 %v5031
    %v5033 = vpop.xlane.xlu0 %5032
    %v5034 = vsel %vm261, %v5014, 0.0
    %5035 = vadd.xlane.f32.xlu0 %v5034
    %v5036 = vpop.xlane.xlu0 %5035
    %v5037 = vsel %vm261, %v5016, 0.0
    %5038 = vadd.xlane.f32.xlu0 %v5037
    %v5039 = vpop.xlane.xlu0 %5038
    %v5040 = vsel %vm261, %v5018, 0.0
    %5041 = vadd.xlane.f32.xlu0 %v5040
    %v5042 = vpop.xlane.xlu0 %5041
    %v5043 = vpack.c.bf16 %v5006, %v5004
    %v5044 = vpack.c.bf16 %v5010, %v5008
    %v5045 = vpack.c.bf16 %v5014, %v5012
    %v5046 = vpack.c.bf16 %v5018, %v5016
    %5047 = vrot.lane.b32.xlu0 %v528, 96
    %v5048 = vpop.permute.xlu0 %5047
    %5049 = vrot.lane.b32.xlu0 %v530, 96
    %v5050 = vpop.permute.xlu0 %5049
    %5051 = vrot.lane.b32.xlu0 %v532, 96
    %v5052 = vpop.permute.xlu0 %5051
    %5053 = vrot.lane.b32.xlu0 %v534, 96
    %v5054 = vpop.permute.xlu0 %5053
    %v5060 = vsel %vm261, %v5043, 0
    %v5063 = vsel %vm261, %v5044, 0
    %v5066 = vsel %vm261, %v5045, 0
    %v5069 = vsel %vm261, %v5046, 0
    %5071 = vmatprep.subr.bf16.mxu0 0
    %5072 = vmatpush1.bf16.msra.mxu0 %v5048
    %5073 = vmatprep.subr.bf16.mxu0 0
    %5074 = vmatpush1.bf16.msra.mxu0 %v5050
    %5075 = vmatprep.subr.bf16.mxu0 0
    %5076 = vmatpush1.bf16.msra.mxu0 %v5052
    %5077 = vmatprep.subr.bf16.mxu0 0
    %5078 = vmatpush1.bf16.msra.mxu0 %v5054
    %5079 = vmatprep.subr.bf16.mxu0 0
    %5080 = vmatpush1.bf16.msra.mxu0 0
    %5081 = vmatprep.subr.bf16.mxu0 0
    %5082 = vmatpush1.bf16.msra.mxu0 0
    %5083 = vmatprep.subr.bf16.mxu0 0
    %5084 = vmatpush1.bf16.msra.mxu0 0
    %5085 = vmatprep.subr.bf16.mxu0 0
    %5086 = vmatpush1.bf16.msra.mxu0 0
    %5087 = vmatprep.subr.bf16.mxu0 0
    %5088 = vmatpush1.bf16.msra.mxu0 0
    %5089 = vmatprep.subr.bf16.mxu0 0
    %5090 = vmatpush1.bf16.msra.mxu0 0
    %5091 = vmatprep.subr.bf16.mxu0 0
    %5092 = vmatpush1.bf16.msra.mxu0 0
    %5093 = vmatprep.subr.bf16.mxu0 0
    %5094 = vmatpush1.bf16.msra.mxu0 0
    %5095 = vmatprep.subr.bf16.mxu0 0
    %5096 = vmatpush1.bf16.msra.mxu0 0
    %5097 = vmatprep.subr.bf16.mxu0 0
    %5098 = vmatpush1.bf16.msra.mxu0 0
    %5099 = vmatprep.subr.bf16.mxu0 0
    %5100 = vmatpush1.bf16.msra.mxu0 0
    %5101 = vmatprep.subr.bf16.mxu0 0
    %5102 = vmatpush1.bf16.msra.mxu0 0
    %5103 = vmatprep.mubr.bf16.mxu0 0
    %5104 = vmatmul.mubr.bf16.gmra.mrb[0].mxu0 %v5060
    %v5105 = vpop.f32.mrb[0].mxu0
    %v5106 = vadd.f32 0.0, %v5105
    %v5107 = vpop.f32.mrb[0].mxu0
    %v5108 = vpop.f32.mrb[0].mxu0
    %v5109 = vadd.f32 0.0, %v5108
    %v5110 = vpop.f32.mrb[0].mxu0
    %5111 = vmatprep.mubr.bf16.mxu0 0
    %5112 = vmatmul.mubr.bf16.gmra.mrb[0].mxu0 %v5063
    %v5113 = vpop.f32.mrb[0].mxu0
    %v5114 = vadd.f32 0.0, %v5113
    %v5115 = vpop.f32.mrb[0].mxu0
    %v5116 = vpop.f32.mrb[0].mxu0
    %v5117 = vadd.f32 0.0, %v5116
    %v5118 = vpop.f32.mrb[0].mxu0
    %5119 = vmatprep.mubr.bf16.mxu0 0
    %5120 = vmatmul.mubr.bf16.gmra.mrb[0].mxu0 %v5066
    %v5121 = vpop.f32.mrb[0].mxu0
    %v5122 = vadd.f32 0.0, %v5121
    %v5123 = vpop.f32.mrb[0].mxu0
    %v5124 = vpop.f32.mrb[0].mxu0
    %v5125 = vadd.f32 0.0, %v5124
    %v5126 = vpop.f32.mrb[0].mxu0
    %5127 = vmatprep.mubr.bf16.mxu0 0
    %5128 = vmatmul.mubr.bf16.gmra.mrb[0].mxu0 %v5069
    %v5129 = vpop.f32.mrb[0].mxu0
    %v5130 = vadd.f32 0.0, %v5129
    %v5131 = vpop.f32.mrb[0].mxu0
    %v5132 = vpop.f32.mrb[0].mxu0
    %v5133 = vadd.f32 0.0, %v5132
    %v5134 = vpop.f32.mrb[0].mxu0
    %5135 = vdwg.mxu0
    %v5136 = vrcp.pop %v5021
    %v5137 = vrcp.pop %v5024
    %v5138 = vrcp.pop %v5027
    %v5139 = vrcp.pop %v5030
    %v5140 = vrcp.pop %v5033
    %v5141 = vrcp.pop %v5036
    %v5142 = vrcp.pop %v5039
    %v5143 = vrcp.pop %v5042
    %v5144 = vmul.f32 %v5106, %v5136
    %v5145 = vmul.f32 %v5109, %v5137
    %v5146 = vmul.f32 %v5114, %v5138
    %v5147 = vmul.f32 %v5117, %v5139
    %v5148 = vmul.f32 %v5122, %v5140
    %v5149 = vmul.f32 %v5125, %v5141
    %v5150 = vmul.f32 %v5130, %v5142
    %v5151 = vmul.f32 %v5133, %v5143
    %5152 = vrot.lane.b32.xlu0 %v527, 80
    %v5153 = vpop.permute.xlu0 %5152
    %5154 = vrot.lane.b32.xlu0 %v529, 80
    %v5155 = vpop.permute.xlu0 %5154
    %5156 = vrot.lane.b32.xlu0 %v531, 80
    %v5157 = vpop.permute.xlu0 %5156
    %5158 = vrot.lane.b32.xlu0 %v533, 80
    %v5159 = vpop.permute.xlu0 %5158
    %5160 = vrot.lane.b32.xlu0 %v527, 16
    %v5161 = vpop.permute.xlu0 %5160
    %5162 = vrot.lane.b32.xlu0 %v529, 16
    %v5163 = vpop.permute.xlu0 %5162
    %5164 = vrot.lane.b32.xlu0 %v531, 16
    %v5165 = vpop.permute.xlu0 %5164
    %5166 = vrot.lane.b32.xlu0 %v533, 16
    %v5167 = vpop.permute.xlu0 %5166
    %v5169 = vsel %vm547, %v5153, 0
    %v5172 = vsel %vm547, %v5155, 0
    %v5175 = vsel %vm547, %v5157, 0
    %v5178 = vsel %vm547, %v5159, 0
    %v5181 = vsel %vm547, %v5161, 0
    %v5184 = vsel %vm547, %v5163, 0
    %v5187 = vsel %vm547, %v5165, 0
    %v5190 = vsel %vm547, %v5167, 0
    %5192 = vmatprep.subr.bf16.mxu0 0
    %5193 = vmatpush1.bf16.xpose.msra.mxu0 %v5181
    %5194 = vmatprep.subr.bf16.mxu0 0
    %5195 = vmatpush1.bf16.xpose.msra.mxu0 %v5184
    %5196 = vmatprep.subr.bf16.mxu0 0
    %5197 = vmatpush1.bf16.xpose.msra.mxu0 %v5187
    %5198 = vmatprep.subr.bf16.mxu0 0
    %5199 = vmatpush1.bf16.xpose.msra.mxu0 %v5190
    %5200 = vmatprep.subr.bf16.mxu0 0
    %5201 = vmatpush1.bf16.xpose.msra.mxu0 0
    %5202 = vmatprep.subr.bf16.mxu0 0
    %5203 = vmatpush1.bf16.xpose.msra.mxu0 0
    %5204 = vmatprep.subr.bf16.mxu0 0
    %5205 = vmatpush1.bf16.xpose.msra.mxu0 0
    %5206 = vmatprep.subr.bf16.mxu0 0
    %5207 = vmatpush1.bf16.xpose.msra.mxu0 0
    %5208 = vmatprep.subr.bf16.mxu0 0
    %5209 = vmatpush1.bf16.xpose.msra.mxu0 0
    %5210 = vmatprep.subr.bf16.mxu0 0
    %5211 = vmatpush1.bf16.xpose.msra.mxu0 0
    %5212 = vmatprep.subr.bf16.mxu0 0
    %5213 = vmatpush1.bf16.xpose.msra.mxu0 0
    %5214 = vmatprep.subr.bf16.mxu0 0
    %5215 = vmatpush1.bf16.xpose.msra.mxu0 0
    %5216 = vmatprep.subr.bf16.mxu0 0
    %5217 = vmatpush1.bf16.xpose.msra.mxu0 0
    %5218 = vmatprep.subr.bf16.mxu0 0
    %5219 = vmatpush1.bf16.xpose.msra.mxu0 0
    %5220 = vmatprep.subr.bf16.mxu0 0
    %5221 = vmatpush1.bf16.xpose.msra.mxu0 0
    %5222 = vmatprep.subr.bf16.mxu0 0
    %5223 = vmatpush1.bf16.xpose.msra.mxu0 0
    %5224 = vmatprep.mubr.bf16.mxu0 0
    %5225 = vmatmul.mubr.bf16.gmra.mrb[0].mxu0 %v5169
    %v5226 = vpop.f32.mrb[0].mxu0
    %v5227 = vadd.f32 %v145, %v5226
    %v5228 = vpop.f32.mrb[0].mxu0
    %v5229 = vpop.f32.mrb[0].mxu0
    %v5230 = vadd.f32 %v146, %v5229
    %v5231 = vpop.f32.mrb[0].mxu0
    %5232 = vmatprep.mubr.bf16.mxu0 0
    %5233 = vmatmul.mubr.bf16.gmra.mrb[0].mxu0 %v5172
    %v5234 = vpop.f32.mrb[0].mxu0
    %v5235 = vadd.f32 %v147, %v5234
    %v5236 = vpop.f32.mrb[0].mxu0
    %v5237 = vpop.f32.mrb[0].mxu0
    %v5238 = vadd.f32 %v148, %v5237
    %v5239 = vpop.f32.mrb[0].mxu0
    %5240 = vmatprep.mubr.bf16.mxu0 0
    %5241 = vmatmul.mubr.bf16.gmra.mrb[0].mxu0 %v5175
    %v5242 = vpop.f32.mrb[0].mxu0
    %v5243 = vadd.f32 %v149, %v5242
    %v5244 = vpop.f32.mrb[0].mxu0
    %v5245 = vpop.f32.mrb[0].mxu0
    %v5246 = vadd.f32 %v150, %v5245
    %v5247 = vpop.f32.mrb[0].mxu0
    %5248 = vmatprep.mubr.bf16.mxu0 0
    %5249 = vmatmul.mubr.bf16.gmra.mrb[0].mxu0 %v5178
    %v5250 = vpop.f32.mrb[0].mxu0
    %v5251 = vadd.f32 %v151, %v5250
    %v5252 = vpop.f32.mrb[0].mxu0
    %v5253 = vpop.f32.mrb[0].mxu0
    %v5254 = vadd.f32 %v152, %v5253
    %v5255 = vpop.f32.mrb[0].mxu0
    %5256 = vdwg.mxu0
    %v5257 = vsel %vm261, %v5227, -inf
    %5258 = vmax.xlane.f32.xlu0 %v5257
    %v5259 = vpop.xlane.xlu0 %5258
    %v5260 = vsel %vm261, %v5230, -inf
    %5261 = vmax.xlane.f32.xlu0 %v5260
    %v5262 = vpop.xlane.xlu0 %5261
    %v5263 = vsel %vm261, %v5235, -inf
    %5264 = vmax.xlane.f32.xlu0 %v5263
    %v5265 = vpop.xlane.xlu0 %5264
    %v5266 = vsel %vm261, %v5238, -inf
    %5267 = vmax.xlane.f32.xlu0 %v5266
    %v5268 = vpop.xlane.xlu0 %5267
    %v5269 = vsel %vm261, %v5243, -inf
    %5270 = vmax.xlane.f32.xlu0 %v5269
    %v5271 = vpop.xlane.xlu0 %5270
    %v5272 = vsel %vm261, %v5246, -inf
    %5273 = vmax.xlane.f32.xlu0 %v5272
    %v5274 = vpop.xlane.xlu0 %5273
    %v5275 = vsel %vm261, %v5251, -inf
    %5276 = vmax.xlane.f32.xlu0 %v5275
    %v5277 = vpop.xlane.xlu0 %5276
    %v5278 = vsel %vm261, %v5254, -inf
    %5279 = vmax.xlane.f32.xlu0 %v5278
    %v5280 = vpop.xlane.xlu0 %5279
    %v5281 = vsub.f32 %v5227, %v5259
    %v5282 = vsub.f32 %v5230, %v5262
    %v5283 = vsub.f32 %v5235, %v5265
    %v5284 = vsub.f32 %v5238, %v5268
    %v5285 = vsub.f32 %v5243, %v5271
    %v5286 = vsub.f32 %v5246, %v5274
    %v5287 = vsub.f32 %v5251, %v5277
    %v5288 = vsub.f32 %v5254, %v5280
    %v5289 = vmul.f32 %v5281, 1.442695
    %v5290 = vpow.pop %v5289
    %v5291 = vmul.f32 %v5282, 1.442695
    %v5292 = vpow.pop %v5291
    %v5293 = vmul.f32 %v5283, 1.442695
    %v5294 = vpow.pop %v5293
    %v5295 = vmul.f32 %v5284, 1.442695
    %v5296 = vpow.pop %v5295
    %v5297 = vmul.f32 %v5285, 1.442695
    %v5298 = vpow.pop %v5297
    %v5299 = vmul.f32 %v5286, 1.442695
    %v5300 = vpow.pop %v5299
    %v5301 = vmul.f32 %v5287, 1.442695
    %v5302 = vpow.pop %v5301
    %v5303 = vmul.f32 %v5288, 1.442695
    %v5304 = vpow.pop %v5303
    %v5305 = vsel %vm261, %v5290, 0.0
    %5306 = vadd.xlane.f32.xlu0 %v5305
    %v5307 = vpop.xlane.xlu0 %5306
    %v5308 = vsel %vm261, %v5292, 0.0
    %5309 = vadd.xlane.f32.xlu0 %v5308
    %v5310 = vpop.xlane.xlu0 %5309
    %v5311 = vsel %vm261, %v5294, 0.0
    %5312 = vadd.xlane.f32.xlu0 %v5311
    %v5313 = vpop.xlane.xlu0 %5312
    %v5314 = vsel %vm261, %v5296, 0.0
    %5315 = vadd.xlane.f32.xlu0 %v5314
    %v5316 = vpop.xlane.xlu0 %5315
    %v5317 = vsel %vm261, %v5298, 0.0
    %5318 = vadd.xlane.f32.xlu0 %v5317
    %v5319 = vpop.xlane.xlu0 %5318
    %v5320 = vsel %vm261, %v5300, 0.0
    %5321 = vadd.xlane.f32.xlu0 %v5320
    %v5322 = vpop.xlane.xlu0 %5321
    %v5323 = vsel %vm261, %v5302, 0.0
    %5324 = vadd.xlane.f32.xlu0 %v5323
    %v5325 = vpop.xlane.xlu0 %5324
    %v5326 = vsel %vm261, %v5304, 0.0
    %5327 = vadd.xlane.f32.xlu0 %v5326
    %v5328 = vpop.xlane.xlu0 %5327
    %v5329 = vpack.c.bf16 %v5292, %v5290
    %v5330 = vpack.c.bf16 %v5296, %v5294
    %v5331 = vpack.c.bf16 %v5300, %v5298
    %v5332 = vpack.c.bf16 %v5304, %v5302
    %5333 = vrot.lane.b32.xlu0 %v528, 80
    %v5334 = vpop.permute.xlu0 %5333
    %5335 = vrot.lane.b32.xlu0 %v530, 80
    %v5336 = vpop.permute.xlu0 %5335
    %5337 = vrot.lane.b32.xlu0 %v532, 80
    %v5338 = vpop.permute.xlu0 %5337
    %5339 = vrot.lane.b32.xlu0 %v534, 80
    %v5340 = vpop.permute.xlu0 %5339
    %v5346 = vsel %vm261, %v5329, 0
    %v5349 = vsel %vm261, %v5330, 0
    %v5352 = vsel %vm261, %v5331, 0
    %v5355 = vsel %vm261, %v5332, 0
    %5357 = vmatprep.subr.bf16.mxu0 0
    %5358 = vmatpush1.bf16.msra.mxu0 %v5334
    %5359 = vmatprep.subr.bf16.mxu0 0
    %5360 = vmatpush1.bf16.msra.mxu0 %v5336
    %5361 = vmatprep.subr.bf16.mxu0 0
    %5362 = vmatpush1.bf16.msra.mxu0 %v5338
    %5363 = vmatprep.subr.bf16.mxu0 0
    %5364 = vmatpush1.bf16.msra.mxu0 %v5340
    %5365 = vmatprep.subr.bf16.mxu0 0
    %5366 = vmatpush1.bf16.msra.mxu0 0
    %5367 = vmatprep.subr.bf16.mxu0 0
    %5368 = vmatpush1.bf16.msra.mxu0 0
    %5369 = vmatprep.subr.bf16.mxu0 0
    %5370 = vmatpush1.bf16.msra.mxu0 0
    %5371 = vmatprep.subr.bf16.mxu0 0
    %5372 = vmatpush1.bf16.msra.mxu0 0
    %5373 = vmatprep.subr.bf16.mxu0 0
    %5374 = vmatpush1.bf16.msra.mxu0 0
    %5375 = vmatprep.subr.bf16.mxu0 0
    %5376 = vmatpush1.bf16.msra.mxu0 0
    %5377 = vmatprep.subr.bf16.mxu0 0
    %5378 = vmatpush1.bf16.msra.mxu0 0
    %5379 = vmatprep.subr.bf16.mxu0 0
    %5380 = vmatpush1.bf16.msra.mxu0 0
    %5381 = vmatprep.subr.bf16.mxu0 0
    %5382 = vmatpush1.bf16.msra.mxu0 0
    %5383 = vmatprep.subr.bf16.mxu0 0
    %5384 = vmatpush1.bf16.msra.mxu0 0
    %5385 = vmatprep.subr.bf16.mxu0 0
    %5386 = vmatpush1.bf16.msra.mxu0 0
    %5387 = vmatprep.subr.bf16.mxu0 0
    %5388 = vmatpush1.bf16.msra.mxu0 0
    %5389 = vmatprep.mubr.bf16.mxu0 0
    %5390 = vmatmul.mubr.bf16.gmra.mrb[0].mxu0 %v5346
    %v5391 = vpop.f32.mrb[0].mxu0
    %v5392 = vadd.f32 0.0, %v5391
    %v5393 = vpop.f32.mrb[0].mxu0
    %v5394 = vpop.f32.mrb[0].mxu0
    %v5395 = vadd.f32 0.0, %v5394
    %v5396 = vpop.f32.mrb[0].mxu0
    %5397 = vmatprep.mubr.bf16.mxu0 0
    %5398 = vmatmul.mubr.bf16.gmra.mrb[0].mxu0 %v5349
    %v5399 = vpop.f32.mrb[0].mxu0
    %v5400 = vadd.f32 0.0, %v5399
    %v5401 = vpop.f32.mrb[0].mxu0
    %v5402 = vpop.f32.mrb[0].mxu0
    %v5403 = vadd.f32 0.0, %v5402
    %v5404 = vpop.f32.mrb[0].mxu0
    %5405 = vmatprep.mubr.bf16.mxu0 0
    %5406 = vmatmul.mubr.bf16.gmra.mrb[0].mxu0 %v5352
    %v5407 = vpop.f32.mrb[0].mxu0
    %v5408 = vadd.f32 0.0, %v5407
    %v5409 = vpop.f32.mrb[0].mxu0
    %v5410 = vpop.f32.mrb[0].mxu0
    %v5411 = vadd.f32 0.0, %v5410
    %v5412 = vpop.f32.mrb[0].mxu0
    %5413 = vmatprep.mubr.bf16.mxu0 0
    %5414 = vmatmul.mubr.bf16.gmra.mrb[0].mxu0 %v5355
    %v5415 = vpop.f32.mrb[0].mxu0
    %v5416 = vadd.f32 0.0, %v5415
    %v5417 = vpop.f32.mrb[0].mxu0
    %v5418 = vpop.f32.mrb[0].mxu0
    %v5419 = vadd.f32 0.0, %v5418
    %v5420 = vpop.f32.mrb[0].mxu0
    %5421 = vdwg.mxu0
    %v5422 = vrcp.pop %v5307
    %v5423 = vrcp.pop %v5310
    %v5424 = vrcp.pop %v5313
    %v5425 = vrcp.pop %v5316
    %v5426 = vrcp.pop %v5319
    %v5427 = vrcp.pop %v5322
    %v5428 = vrcp.pop %v5325
    %v5429 = vrcp.pop %v5328
    %v5430 = vmul.f32 %v5392, %v5422
    %v5431 = vmul.f32 %v5395, %v5423
    %v5432 = vmul.f32 %v5400, %v5424
    %v5433 = vmul.f32 %v5403, %v5425
    %v5434 = vmul.f32 %v5408, %v5426
    %v5435 = vmul.f32 %v5411, %v5427
    %v5436 = vmul.f32 %v5416, %v5428
    %v5437 = vmul.f32 %v5419, %v5429
    %5446 = vrot.lane.b32.xlu0 %v4858, 16
    %v5447 = vpop.permute.xlu0 %5446
    %5448 = vrot.lane.b32.xlu0 %v4859, 16
    %v5449 = vpop.permute.xlu0 %5448
    %5450 = vrot.lane.b32.xlu0 %v4860, 16
    %v5451 = vpop.permute.xlu0 %5450
    %5452 = vrot.lane.b32.xlu0 %v4861, 16
    %v5453 = vpop.permute.xlu0 %5452
    %5454 = vrot.lane.b32.xlu0 %v4862, 16
    %v5455 = vpop.permute.xlu0 %5454
    %5456 = vrot.lane.b32.xlu0 %v4863, 16
    %v5457 = vpop.permute.xlu0 %5456
    %5458 = vrot.lane.b32.xlu0 %v4864, 16
    %v5459 = vpop.permute.xlu0 %5458
    %5460 = vrot.lane.b32.xlu0 %v4865, 16
    %v5461 = vpop.permute.xlu0 %5460
    %5478 = vrot.lane.b32.xlu0 %v5144, 32
    %v5479 = vpop.permute.xlu0 %5478
    %5480 = vrot.lane.b32.xlu0 %v5145, 32
    %v5481 = vpop.permute.xlu0 %5480
    %5482 = vrot.lane.b32.xlu0 %v5146, 32
    %v5483 = vpop.permute.xlu0 %5482
    %5484 = vrot.lane.b32.xlu0 %v5147, 32
    %v5485 = vpop.permute.xlu0 %5484
    %5486 = vrot.lane.b32.xlu0 %v5148, 32
    %v5487 = vpop.permute.xlu0 %5486
    %5488 = vrot.lane.b32.xlu0 %v5149, 32
    %v5489 = vpop.permute.xlu0 %5488
    %5490 = vrot.lane.b32.xlu0 %v5150, 32
    %v5491 = vpop.permute.xlu0 %5490
    %5492 = vrot.lane.b32.xlu0 %v5151, 32
    %v5493 = vpop.permute.xlu0 %5492
    %5510 = vrot.lane.b32.xlu0 %v5430, 48
    %v5511 = vpop.permute.xlu0 %5510
    %5512 = vrot.lane.b32.xlu0 %v5431, 48
    %v5513 = vpop.permute.xlu0 %5512
    %5514 = vrot.lane.b32.xlu0 %v5432, 48
    %v5515 = vpop.permute.xlu0 %5514
    %5516 = vrot.lane.b32.xlu0 %v5433, 48
    %v5517 = vpop.permute.xlu0 %5516
    %5518 = vrot.lane.b32.xlu0 %v5434, 48
    %v5519 = vpop.permute.xlu0 %5518
    %5520 = vrot.lane.b32.xlu0 %v5435, 48
    %v5521 = vpop.permute.xlu0 %5520
    %5522 = vrot.lane.b32.xlu0 %v5436, 48
    %v5523 = vpop.permute.xlu0 %5522
    %5524 = vrot.lane.b32.xlu0 %v5437, 48
    %v5525 = vpop.permute.xlu0 %5524
    %v5534 = vsel %vm547, %v4568, %v5447
    %v5535 = vsel %vm547, %v4569, %v5449
    %v5536 = vsel %vm547, %v4570, %v5451
    %v5537 = vsel %vm547, %v4571, %v5453
    %v5538 = vsel %vm547, %v4572, %v5455
    %v5539 = vsel %vm547, %v4573, %v5457
    %v5540 = vsel %vm547, %v4574, %v5459
    %v5541 = vsel %vm547, %v4575, %v5461
    %v5542 = vsel %vm1772, %v5534, %v5479
    %v5543 = vsel %vm1772, %v5535, %v5481
    %v5544 = vsel %vm1772, %v5536, %v5483
    %v5545 = vsel %vm1772, %v5537, %v5485
    %v5546 = vsel %vm1772, %v5538, %v5487
    %v5547 = vsel %vm1772, %v5539, %v5489
    %v5548 = vsel %vm1772, %v5540, %v5491
    %v5549 = vsel %vm1772, %v5541, %v5493
    %v5550 = vsel %vm1781, %v5542, %v5511
    %v5551 = vsel %vm1781, %v5543, %v5513
    %v5552 = vsel %vm1781, %v5544, %v5515
    %v5553 = vsel %vm1781, %v5545, %v5517
    %v5554 = vsel %vm1781, %v5546, %v5519
    %v5555 = vsel %vm1781, %v5547, %v5521
    %v5556 = vsel %vm1781, %v5548, %v5523
    %v5557 = vsel %vm1781, %v5549, %v5525
    %v5558 = vpack.c.bf16 %v5551, %v5550
    %v5559 = vpack.c.bf16 %v5553, %v5552
    %v5560 = vpack.c.bf16 %v5555, %v5554
    %v5561 = vpack.c.bf16 %v5557, %v5556
    %v5563 = vlaneseq
    %v5564 = vshrl.u32 %v5563, 7
    %v5565 = vsub.s32 0, %v5564
    %v5566 = vrot.slane %v161, %v5565
    %v5576 = vunpack.c.l.b16 %v153
    %v5577 = vunpack.c.l.b16 %v154
    %v5578 = vunpack.c.l.b16 %v155
    %v5579 = vunpack.c.l.b16 %v156
    %v5580 = vunpack.c.l.b16 %v157
    %v5581 = vunpack.c.l.b16 %v158
    %v5582 = vunpack.c.l.b16 %v159
    %v5583 = vunpack.c.l.b16 %v160
    %v5584 = vpack.c.b16 %v5577, %v5576
    %v5585 = vpack.c.b16 %v5579, %v5578
    %v5586 = vpack.c.b16 %v5581, %v5580
    %v5587 = vpack.c.b16 %v5583, %v5582
    %v5593 = vsel %vm261, %v1790, 0
    %v5596 = vsel %vm261, %v1791, 0
    %v5599 = vsel %vm261, %v1792, 0
    %v5602 = vsel %vm261, %v1793, 0
    %v5605 = vsel %vm261, %v3046, 0
    %v5608 = vsel %vm261, %v3047, 0
    %v5611 = vsel %vm261, %v3048, 0
    %v5614 = vsel %vm261, %v3049, 0
    %v5617 = vsel %vm261, %v4302, 0
    %v5620 = vsel %vm261, %v4303, 0
    %v5623 = vsel %vm261, %v4304, 0
    %v5626 = vsel %vm261, %v4305, 0
    %v5629 = vsel %vm261, %v5558, 0
    %v5632 = vsel %vm261, %v5559, 0
    %v5635 = vsel %vm261, %v5560, 0
    %v5638 = vsel %vm261, %v5561, 0
    %5640 = vmatprep.subr.bf16.mxu0 0
    %5641 = vmatpush1.bf16.msra.mxu0 %v5584
    %5642 = vmatprep.subr.bf16.mxu0 0
    %5643 = vmatpush1.bf16.msra.mxu0 %v5585
    %5644 = vmatprep.subr.bf16.mxu0 0
    %5645 = vmatpush1.bf16.msra.mxu0 %v5586
    %5646 = vmatprep.subr.bf16.mxu0 0
    %5647 = vmatpush1.bf16.msra.mxu0 %v5587
    %5648 = vmatprep.subr.bf16.mxu0 0
    %5649 = vmatpush1.bf16.msra.mxu0 0
    %5650 = vmatprep.subr.bf16.mxu0 0
    %5651 = vmatpush1.bf16.msra.mxu0 0
    %5652 = vmatprep.subr.bf16.mxu0 0
    %5653 = vmatpush1.bf16.msra.mxu0 0
    %5654 = vmatprep.subr.bf16.mxu0 0
    %5655 = vmatpush1.bf16.msra.mxu0 0
    %5656 = vmatprep.subr.bf16.mxu0 0
    %5657 = vmatpush1.bf16.msra.mxu0 0
    %5658 = vmatprep.subr.bf16.mxu0 0
    %5659 = vmatpush1.bf16.msra.mxu0 0
    %5660 = vmatprep.subr.bf16.mxu0 0
    %5661 = vmatpush1.bf16.msra.mxu0 0
    %5662 = vmatprep.subr.bf16.mxu0 0
    %5663 = vmatpush1.bf16.msra.mxu0 0
    %5664 = vmatprep.subr.bf16.mxu0 0
    %5665 = vmatpush1.bf16.msra.mxu0 0
    %5666 = vmatprep.subr.bf16.mxu0 0
    %5667 = vmatpush1.bf16.msra.mxu0 0
    %5668 = vmatprep.subr.bf16.mxu0 0
    %5669 = vmatpush1.bf16.msra.mxu0 0
    %5670 = vmatprep.subr.bf16.mxu0 0
    %5671 = vmatpush1.bf16.msra.mxu0 0
    %5672 = vmatprep.mubr.bf16.mxu0 0
    %5673 = vmatmul.mubr.bf16.gmra.mrb[0].mxu0 %v5593
    %v5674 = vpop.f32.mrb[0].mxu0
    %v5675 = vadd.f32 %v5566, %v5674
    %v5676 = vpop.f32.mrb[0].mxu0
    %v5677 = vpop.f32.mrb[0].mxu0
    %v5678 = vadd.f32 %v5566, %v5677
    %v5679 = vpop.f32.mrb[0].mxu0
    %5680 = vmatprep.mubr.bf16.mxu0 0
    %5681 = vmatmul.mubr.bf16.gmra.mrb[0].mxu0 %v5596
    %v5682 = vpop.f32.mrb[0].mxu0
    %v5683 = vadd.f32 %v5566, %v5682
    %v5684 = vpop.f32.mrb[0].mxu0
    %v5685 = vpop.f32.mrb[0].mxu0
    %v5686 = vadd.f32 %v5566, %v5685
    %v5687 = vpop.f32.mrb[0].mxu0
    %5688 = vmatprep.mubr.bf16.mxu0 0
    %5689 = vmatmul.mubr.bf16.gmra.mrb[0].mxu0 %v5599
    %v5690 = vpop.f32.mrb[0].mxu0
    %v5691 = vadd.f32 %v5566, %v5690
    %v5692 = vpop.f32.mrb[0].mxu0
    %v5693 = vpop.f32.mrb[0].mxu0
    %v5694 = vadd.f32 %v5566, %v5693
    %v5695 = vpop.f32.mrb[0].mxu0
    %5696 = vmatprep.mubr.bf16.mxu0 0
    %5697 = vmatmul.mubr.bf16.gmra.mrb[0].mxu0 %v5602
    %v5698 = vpop.f32.mrb[0].mxu0
    %v5699 = vadd.f32 %v5566, %v5698
    %v5700 = vpop.f32.mrb[0].mxu0
    %v5701 = vpop.f32.mrb[0].mxu0
    %v5702 = vadd.f32 %v5566, %v5701
    %v5703 = vpop.f32.mrb[0].mxu0
    %5704 = vmatprep.mubr.bf16.mxu0 0
    %5705 = vmatmul.mubr.bf16.gmra.mrb[0].mxu0 %v5605
    %v5706 = vpop.f32.mrb[0].mxu0
    %v5707 = vadd.f32 %v5566, %v5706
    %v5708 = vpop.f32.mrb[0].mxu0
    %v5709 = vpop.f32.mrb[0].mxu0
    %v5710 = vadd.f32 %v5566, %v5709
    %v5711 = vpop.f32.mrb[0].mxu0
    %5712 = vmatprep.mubr.bf16.mxu0 0
    %5713 = vmatmul.mubr.bf16.gmra.mrb[0].mxu0 %v5608
    %v5714 = vpop.f32.mrb[0].mxu0
    %v5715 = vadd.f32 %v5566, %v5714
    %v5716 = vpop.f32.mrb[0].mxu0
    %v5717 = vpop.f32.mrb[0].mxu0
    %v5718 = vadd.f32 %v5566, %v5717
    %v5719 = vpop.f32.mrb[0].mxu0
    %5720 = vmatprep.mubr.bf16.mxu0 0
    %5721 = vmatmul.mubr.bf16.gmra.mrb[0].mxu0 %v5611
    %v5722 = vpop.f32.mrb[0].mxu0
    %v5723 = vadd.f32 %v5566, %v5722
    %v5724 = vpop.f32.mrb[0].mxu0
    %v5725 = vpop.f32.mrb[0].mxu0
    %v5726 = vadd.f32 %v5566, %v5725
    %v5727 = vpop.f32.mrb[0].mxu0
    %5728 = vmatprep.mubr.bf16.mxu0 0
    %5729 = vmatmul.mubr.bf16.gmra.mrb[0].mxu0 %v5614
    %v5730 = vpop.f32.mrb[0].mxu0
    %v5731 = vadd.f32 %v5566, %v5730
    %v5732 = vpop.f32.mrb[0].mxu0
    %v5733 = vpop.f32.mrb[0].mxu0
    %v5734 = vadd.f32 %v5566, %v5733
    %v5735 = vpop.f32.mrb[0].mxu0
    %5736 = vmatprep.mubr.bf16.mxu0 0
    %5737 = vmatmul.mubr.bf16.gmra.mrb[0].mxu0 %v5617
    %v5738 = vpop.f32.mrb[0].mxu0
    %v5739 = vadd.f32 %v5566, %v5738
    %v5740 = vpop.f32.mrb[0].mxu0
    %v5741 = vpop.f32.mrb[0].mxu0
    %v5742 = vadd.f32 %v5566, %v5741
    %v5743 = vpop.f32.mrb[0].mxu0
    %5744 = vmatprep.mubr.bf16.mxu0 0
    %5745 = vmatmul.mubr.bf16.gmra.mrb[0].mxu0 %v5620
    %v5746 = vpop.f32.mrb[0].mxu0
    %v5747 = vadd.f32 %v5566, %v5746
    %v5748 = vpop.f32.mrb[0].mxu0
    %v5749 = vpop.f32.mrb[0].mxu0
    %v5750 = vadd.f32 %v5566, %v5749
    %v5751 = vpop.f32.mrb[0].mxu0
    %5752 = vmatprep.mubr.bf16.mxu0 0
    %5753 = vmatmul.mubr.bf16.gmra.mrb[0].mxu0 %v5623
    %v5754 = vpop.f32.mrb[0].mxu0
    %v5755 = vadd.f32 %v5566, %v5754
    %v5756 = vpop.f32.mrb[0].mxu0
    %v5757 = vpop.f32.mrb[0].mxu0
    %v5758 = vadd.f32 %v5566, %v5757
    %v5759 = vpop.f32.mrb[0].mxu0
    %5760 = vmatprep.mubr.bf16.mxu0 0
    %5761 = vmatmul.mubr.bf16.gmra.mrb[0].mxu0 %v5626
    %v5762 = vpop.f32.mrb[0].mxu0
    %v5763 = vadd.f32 %v5566, %v5762
    %v5764 = vpop.f32.mrb[0].mxu0
    %v5765 = vpop.f32.mrb[0].mxu0
    %v5766 = vadd.f32 %v5566, %v5765
    %v5767 = vpop.f32.mrb[0].mxu0
    %5768 = vmatprep.mubr.bf16.mxu0 0
    %5769 = vmatmul.mubr.bf16.gmra.mrb[0].mxu0 %v5629
    %v5770 = vpop.f32.mrb[0].mxu0
    %v5771 = vadd.f32 %v5566, %v5770
    %v5772 = vpop.f32.mrb[0].mxu0
    %v5773 = vpop.f32.mrb[0].mxu0
    %v5774 = vadd.f32 %v5566, %v5773
    %v5775 = vpop.f32.mrb[0].mxu0
    %5776 = vmatprep.mubr.bf16.mxu0 0
    %5777 = vmatmul.mubr.bf16.gmra.mrb[0].mxu0 %v5632
    %v5778 = vpop.f32.mrb[0].mxu0
    %v5779 = vadd.f32 %v5566, %v5778
    %v5780 = vpop.f32.mrb[0].mxu0
    %v5781 = vpop.f32.mrb[0].mxu0
    %v5782 = vadd.f32 %v5566, %v5781
    %v5783 = vpop.f32.mrb[0].mxu0
    %5784 = vmatprep.mubr.bf16.mxu0 0
    %5785 = vmatmul.mubr.bf16.gmra.mrb[0].mxu0 %v5635
    %v5786 = vpop.f32.mrb[0].mxu0
    %v5787 = vadd.f32 %v5566, %v5786
    %v5788 = vpop.f32.mrb[0].mxu0
    %v5789 = vpop.f32.mrb[0].mxu0
    %v5790 = vadd.f32 %v5566, %v5789
    %v5791 = vpop.f32.mrb[0].mxu0
    %5792 = vmatprep.mubr.bf16.mxu0 0
    %5793 = vmatmul.mubr.bf16.gmra.mrb[0].mxu0 %v5638
    %v5794 = vpop.f32.mrb[0].mxu0
    %v5795 = vadd.f32 %v5566, %v5794
    %v5796 = vpop.f32.mrb[0].mxu0
    %v5797 = vpop.f32.mrb[0].mxu0
    %v5798 = vadd.f32 %v5566, %v5797
    %v5799 = vpop.f32.mrb[0].mxu0
    %5800 = vdwg.mxu0
    %5801 = vst.msk [vmem:[#allocation10] sm:$0xff] %vm261, %v5675
    %5802 = vst.msk [vmem:[#allocation10 + $0x8] sm:$0xff] %vm261, %v5678
    %5803 = vst.msk [vmem:[#allocation10 + $0x10] sm:$0xff] %vm261, %v5683
    %5804 = vst.msk [vmem:[#allocation10 + $0x18] sm:$0xff] %vm261, %v5686
    %5805 = vst.msk [vmem:[#allocation10 + $0x20] sm:$0xff] %vm261, %v5691
    %5806 = vst.msk [vmem:[#allocation10 + $0x28] sm:$0xff] %vm261, %v5694
    %5807 = vst.msk [vmem:[#allocation10 + $0x30] sm:$0xff] %vm261, %v5699
    %5808 = vst.msk [vmem:[#allocation10 + $0x38] sm:$0xff] %vm261, %v5702
    %5809 = vst.msk [vmem:[#allocation10 + $0x40] sm:$0xff] %vm261, %v5707
    %5810 = vst.msk [vmem:[#allocation10 + $0x48] sm:$0xff] %vm261, %v5710
    %5811 = vst.msk [vmem:[#allocation10 + $0x50] sm:$0xff] %vm261, %v5715
    %5812 = vst.msk [vmem:[#allocation10 + $0x58] sm:$0xff] %vm261, %v5718
    %5813 = vst.msk [vmem:[#allocation10 + $0x60] sm:$0xff] %vm261, %v5723
    %5814 = vst.msk [vmem:[#allocation10 + $0x68] sm:$0xff] %vm261, %v5726
    %5815 = vst.msk [vmem:[#allocation10 + $0x70] sm:$0xff] %vm261, %v5731
    %5816 = vst.msk [vmem:[#allocation10 + $0x78] sm:$0xff] %vm261, %v5734
    %5817 = vst.msk [vmem:[#allocation10 + $0x80] sm:$0xff] %vm261, %v5739
    %5818 = vst.msk [vmem:[#allocation10 + $0x88] sm:$0xff] %vm261, %v5742
    %5819 = vst.msk [vmem:[#allocation10 + $0x90] sm:$0xff] %vm261, %v5747
    %5820 = vst.msk [vmem:[#allocation10 + $0x98] sm:$0xff] %vm261, %v5750
    %5821 = vst.msk [vmem:[#allocation10 + $0xa0] sm:$0xff] %vm261, %v5755
    %5822 = vst.msk [vmem:[#allocation10 + $0xa8] sm:$0xff] %vm261, %v5758
    %5823 = vst.msk [vmem:[#allocation10 + $0xb0] sm:$0xff] %vm261, %v5763
    %5824 = vst.msk [vmem:[#allocation10 + $0xb8] sm:$0xff] %vm261, %v5766
    %5825 = vst.msk [vmem:[#allocation10 + $0xc0] sm:$0xff] %vm261, %v5771
    %5826 = vst.msk [vmem:[#allocation10 + $0xc8] sm:$0xff] %vm261, %v5774
    %5827 = vst.msk [vmem:[#allocation10 + $0xd0] sm:$0xff] %vm261, %v5779
    %5828 = vst.msk [vmem:[#allocation10 + $0xd8] sm:$0xff] %vm261, %v5782
    %5829 = vst.msk [vmem:[#allocation10 + $0xe0] sm:$0xff] %vm261, %v5787
    %5830 = vst.msk [vmem:[#allocation10 + $0xe8] sm:$0xff] %vm261, %v5790
    %5831 = vst.msk [vmem:[#allocation10 + $0xf0] sm:$0xff] %vm261, %v5795
    %5832 = vst.msk [vmem:[#allocation10 + $0xf8] sm:$0xff] %vm261, %v5798
    // Predicated region
    $region42: #{tpu_custom_call.1} parent=1 // pred_check
      _
    $region43: #{tpu_custom_call.1} parent=1 // pred_check_branch
      %5834 = sbr.rel (0) target = $region45
    $region44: #{tpu_custom_call.1} parent=1 // pred_region
      %s5836 = ssub.s32 4096, 4096
      %5837 = vsyncadd [#allocation4], %s5836
      %s5838 = sshll.u32 [#allocation10], 4
      %s5839 = int_to_ptr.vmem [resolvable:$true] %s5838
      %5844 = dma.vmem_to_hbm [thread:$0]  %s5839, 4096, %s6, [#allocation4], 128, 128, 8
    $region45: #{tpu_custom_call.1} parent=1 // pred_fallthru
      _
    // Predicated region
    $region46: #{tpu_custom_call.1} parent=1 // pred_check
      _
    $region47: #{tpu_custom_call.1} parent=1 // pred_check_branch
      %5846 = sbr.rel (0) target = $region49
    $region48: #{tpu_custom_call.1} parent=1 // pred_region
      %5847 = dma.done [#allocation4], 4096
    $region49: #{tpu_custom_call.1} parent=1 // pred_fallthru
      _
    %5848 = vsyncpa [#allocation3], 1
    %5849 = vsyncpa [#allocation6], 1
    %5850 = vsyncpa [#allocation9], 1
    %5851 = vsyncpa [#allocation4], 1

</llo_original>
